<compile_context>
chip_gen: v7x
topology: tpu7x:2x2x1
jax: 0.10.0
libtpu: 0.0.40
codegen_flags: <defaults>
</compile_context>

<pallas_src>
import functools

import jax
import jax.numpy as jnp
from jax import lax
from jax.experimental import pallas as pl
from jax.experimental.pallas import tpu as pltpu

# Y row of the YIQ color matrix (the only row the loss uses).
_YIQ_Y = (0.299, 0.587, 0.114)


def _gngc_kernel(x_ref, y_ref, band_ref, out_ref, sx_ref, sy_ref, *,
                 k, channels, bt):
    """One grid step: processes `bt` images and writes (c_sum, v_sum) partials."""
    h, w = sx_ref.shape
    c0 = k // 2
    h1, w1 = h - k + 1, w - k + 1
    h2, w2 = h1 - k + 1, w1 - k + 1
    inv_k2 = 1.0 / float(k * k)

    # Banded 0/1 matrix, loaded into vregs once per grid step.  The second-level
    # filter's band is just the top-left crop of the first-level band.
    band = band_ref[...]                 # (w,  w1)
    band2 = band[0:w1, 0:w2]             # (w1, w2)

    def box_mean(src_ref, hh, ww, bnd):
        """Valid k x k box mean of src_ref[0:hh, 0:ww] (f32 scratch)."""
        hh1 = hh - k + 1
        # Row (sublane) taps: offset loads from VMEM -> plain vld, no XLU rotate.
        rows = src_ref[0:hh1, 0:ww]
        for d in range(1, k):
            rows = rows + src_ref[d:d + hh1, 0:ww]
        # Column (lane) taps: banded matmul on the otherwise idle MXU.
        # HIGHEST keeps f32 accuracy through the multi-pass MXU path.
        out = jnp.dot(rows, bnd,
                      precision=lax.Precision.HIGHEST,
                      preferred_element_type=jnp.float32)
        return out * inv_k2

    c_acc = jnp.float32(0.0)
    v_acc = jnp.float32(0.0)

    for b in range(bt):
        # Per-channel plane loads (no (C, H, W) slab value ever materialized).
        if channels == 3:
            x_g = (_YIQ_Y[0] * x_ref[b, 0].astype(jnp.float32)
                   + _YIQ_Y[1] * x_ref[b, 1].astype(jnp.float32)
                   + _YIQ_Y[2] * x_ref[b, 2].astype(jnp.float32))
            y_g = (_YIQ_Y[0] * y_ref[b, 0].astype(jnp.float32)
                   + _YIQ_Y[1] * y_ref[b, 1].astype(jnp.float32)
                   + _YIQ_Y[2] * y_ref[b, 2].astype(jnp.float32))
        else:
            x_g = x_ref[b, 0].astype(jnp.float32)
            y_g = y_ref[b, 0].astype(jnp.float32)

        # Park the grayscale planes in VMEM scratch so the row taps of the box
        # filters are offset loads instead of sublane rotates.
        sx_ref[...] = x_g
        sy_ref[...] = y_g

        # E[x] - x_center on the valid region (delta-conv minus mean-conv).
        ex = sx_ref[c0:c0 + h1, c0:c0 + w1] - box_mean(sx_ref, h, w, band)
        ey = sy_ref[c0:c0 + h1, c0:c0 + w1] - box_mean(sy_ref, h, w, band)

        # Covariance term: reuse the x scratch for the (h1, w1) product slab.
        sx_ref[0:h1, 0:w1] = ex * ey
        cov = box_mean(sx_ref, h1, w1, band2)        # (h2, w2)
        c_acc = c_acc + jnp.sum(cov * cov)

        # Variance terms.
        sx_ref[0:h1, 0:w1] = ex * ex
        var_x = box_mean(sx_ref, h1, w1, band2)
        sy_ref[0:h1, 0:w1] = ey * ey
        var_y = box_mean(sy_ref, h1, w1, band2)
        v_acc = v_acc + jnp.sum(var_x * var_y)

    # Single merged, lane-dense output block: c partial in lanes 0-127,
    # v partial in lanes 128-255 (one writeback per grid step).
    out_ref[0, :, 0:128] = jnp.full((8, 128), c_acc, jnp.float32)
    out_ref[0, :, 128:256] = jnp.full((8, 128), v_acc, jnp.float32)


def yiq_gngc_pallas(x, y, shape=5):
    """YIQGNGCLoss.forward(x, y); x, y: (N, C, H, W) with C in {1, 3}."""
    n, ch, h, w = x.shape
    assert y.shape == x.shape
    assert ch in (1, 3), "YIQGNGCLoss expects 1 or 3 channels"
    k = shape
    h1, w1 = h - k + 1, w - k + 1
    h2, w2 = h1 - k + 1, w1 - k + 1
    assert h2 > 0 and w2 > 0, "image too small for the 5x5 double convolution"

    # Batch-tile small images so the ~0.35 us per-grid-step overhead amortizes.
    plane_bytes = ch * h * w * x.dtype.itemsize
    bt = 1
    if plane_bytes <= (1 << 20):
        for cand in (8, 4, 2):
            if n % cand == 0:
                bt = cand
                break
    steps = n // bt

    # Banded 0/1 matrix for the lane-direction (column) filter on the MXU:
    # band[j, c] = 1  iff  c <= j < c + k.
    rows_idx = jnp.arange(w, dtype=jnp.int32)[:, None]
    cols_idx = jnp.arange(w1, dtype=jnp.int32)[None, :]
    band = ((rows_idx >= cols_idx) & (rows_idx < cols_idx + k)).astype(jnp.float32)

    kernel = functools.partial(_gngc_kernel, k=k, channels=ch, bt=bt)

    # Explicit VMEM budget: double-buffered inputs + scratch + band + outputs
    # + headroom for temporaries.
    in_bytes = 2 * bt * ch * h * w * x.dtype.itemsize          # x + y tiles
    need = (2 * in_bytes                                        # double buffered
            + 2 * h * w * 4                                     # f32 scratch x2
            + 2 * w * w1 * 4                                    # band (buffered)
            + 2 * 8 * 256 * 4                                   # output block
            + 16 * h * w * 4)                                   # temporaries
    vmem_limit = int(min(64 << 20, max(32 << 20, 2 * need)))

    out = pl.pallas_call(
        kernel,
        out_shape=jax.ShapeDtypeStruct((steps, 8, 256), jnp.float32),
        grid_spec=pltpu.PrefetchScalarGridSpec(
            num_scalar_prefetch=0,
            grid=(steps,),
            in_specs=[
                pl.BlockSpec((bt, ch, h, w), lambda i: (i, 0, 0, 0)),
                pl.BlockSpec((bt, ch, h, w), lambda i: (i, 0, 0, 0)),
                # Constant block index -> fetched once, reused every step.
                pl.BlockSpec((w, w1), lambda i: (0, 0)),
            ],
            out_specs=pl.BlockSpec((1, 8, 256), lambda i: (i, 0, 0)),
            scratch_shapes=[
                pltpu.VMEM((h, w), jnp.float32),
                pltpu.VMEM((h, w), jnp.float32),
            ],
        ),
        compiler_params=pltpu.CompilerParams(
            dimension_semantics=("parallel",),
            vmem_limit_bytes=vmem_limit,
        ),
    )(x, y, band)

    denom = jnp.float32(n * h2 * w2)
    c_mean = jnp.sum(out[:, 0, 0]) / denom      # torch.mean(covar(x,y)**2)
    v_mean = jnp.sum(out[:, 0, 128]) / denom    # torch.mean(var(x)*var(y))
    return c_mean / v_mean


def _yiq_gngc_ref(x, y, shape=5):
    """Pure-JAX reference mirroring the PyTorch module (valid conv2d path)."""
    x = x.astype(jnp.float32)
    y = y.astype(jnp.float32)
    if x.shape[1] == 3:
        wv = jnp.asarray(_YIQ_Y, jnp.float32)
        x_g = jnp.einsum("nchw,c->nhw", x, wv)[:, None]
        y_g = jnp.einsum("nchw,c->nhw", y, wv)[:, None]
    else:
        x_g, y_g = x, y
    k = shape
    mean_k = jnp.ones((1, 1, k, k), jnp.float32) / (k * k)
    dn = ("NCHW", "OIHW", "NCHW")

    def conv(img):
        return lax.conv_general_dilated(img, mean_k, (1, 1), "VALID",
                                        dimension_numbers=dn,
                                        precision=lax.Precision.HIGHEST)

    c0 = k // 2

    def crop(img):
        return img[:, :, c0:img.shape[2] - c0, c0:img.shape[3] - c0]

    ex = crop(x_g) - conv(x_g)
    ey = crop(y_g) - conv(y_g)
    cov = conv(ex * ey)
    vx = conv(ex * ex)
    vy = conv(ey * ey)
    c = jnp.mean(cov ** 2)
    vv = jnp.mean(vx * vy)
    return c / vv


if __name__ == "__main__":
    key = jax.random.PRNGKey(0)
    k1, k2, k3, k4 = jax.random.split(key, 4)

    # Tolerance leaves margin for the multi-pass f32 MXU accumulation order
    # vs. the XLA conv reference; structural errors would be orders larger.
    RTOL, ATOL = 2e-3, 1e-6

    # RGB path (the main path of the module).
    x = jax.random.normal(k1, (2, 3, 16, 16), dtype=jnp.float32)
    y = jax.random.normal(k2, (2, 3, 16, 16), dtype=jnp.float32)
    out = jax.block_until_ready(yiq_gngc_pallas(x, y, shape=5))
    ref = jax.block_until_ready(_yiq_gngc_ref(x, y, shape=5))
    assert jnp.allclose(out, ref, rtol=RTOL, atol=ATOL), (out, ref)

    # Single-channel path.
    x1 = jax.random.normal(k3, (2, 1, 16, 16), dtype=jnp.float32)
    y1 = jax.random.normal(k4, (2, 1, 16, 16), dtype=jnp.float32)
    out1 = jax.block_until_ready(yiq_gngc_pallas(x1, y1, shape=5))
    ref1 = jax.block_until_ready(_yiq_gngc_ref(x1, y1, shape=5))
    assert jnp.allclose(out1, ref1, rtol=RTOL, atol=ATOL), (out1, ref1)

    print("KERNEL_OK")
</pallas_src>

<mosaic_0001>
module attributes {stable_mosaic.version = 11 : i64} {
  func.func @_gngc_kernel(%arg0: i32, %arg1: memref<2x3x16x16xf32, #tpu.memory_space<vmem>>, %arg2: memref<2x3x16x16xf32, #tpu.memory_space<vmem>>, %arg3: memref<16x12xf32, #tpu.memory_space<vmem>>, %arg4: memref<1x8x256xf32, #tpu.memory_space<vmem>>, %arg5: memref<16x16xf32, #tpu.memory_space<vmem>>, %arg6: memref<16x16xf32, #tpu.memory_space<vmem>>) attributes {dimension_semantics = [#tpu.dimension_semantics<parallel>], iteration_bounds = array<i64: 1>, scalar_prefetch = 0 : i64, scratch_operands = 2 : i64, tpu.core_type = #tpu.core_type<tc>, window_params = [{transform_indices = @transform_0, window_bounds = array<i64: 2, 3, 16, 16>}, {transform_indices = @transform_1, window_bounds = array<i64: 2, 3, 16, 16>}, {pipeline_mode = #tpu.pipeline_mode<synchronous>, transform_indices = @transform_2, window_bounds = array<i64: 16, 12>}, {transform_indices = @transform_3, window_bounds = array<i64: 1, 8, 256>}]} {
    %c0 = arith.constant 0 : index
    %c0_0 = arith.constant 0 : index
    %0 = vector.load %arg3[%c0, %c0_0] : memref<16x12xf32, #tpu.memory_space<vmem>>, vector<16x12xf32>
    %1 = vector.extract_strided_slice %0 {offsets = [0, 0], sizes = [12, 8], strides = [1, 1]} : vector<16x12xf32> to vector<12x8xf32>
    %c0_1 = arith.constant 0 : index
    %c0_2 = arith.constant 0 : index
    %c0_3 = arith.constant 0 : index
    %c0_4 = arith.constant 0 : index
    %2 = vector.load %arg1[%c0_1, %c0_2, %c0_3, %c0_4] : memref<2x3x16x16xf32, #tpu.memory_space<vmem>>, vector<1x1x16x16xf32>
    %3 = vector.shape_cast %2 : vector<1x1x16x16xf32> to vector<16x16xf32>
    %cst = arith.constant 2.990000e-01 : f32
    %4 = vector.broadcast %cst : f32 to vector<16x16xf32>
    %5 = arith.mulf %4, %3 : vector<16x16xf32>
    %c0_5 = arith.constant 0 : index
    %c1 = arith.constant 1 : index
    %c0_6 = arith.constant 0 : index
    %c0_7 = arith.constant 0 : index
    %6 = vector.load %arg1[%c0_5, %c1, %c0_6, %c0_7] : memref<2x3x16x16xf32, #tpu.memory_space<vmem>>, vector<1x1x16x16xf32>
    %7 = vector.shape_cast %6 : vector<1x1x16x16xf32> to vector<16x16xf32>
    %cst_8 = arith.constant 5.870000e-01 : f32
    %8 = vector.broadcast %cst_8 : f32 to vector<16x16xf32>
    %9 = arith.mulf %8, %7 : vector<16x16xf32>
    %10 = arith.addf %5, %9 : vector<16x16xf32>
    %c0_9 = arith.constant 0 : index
    %c2 = arith.constant 2 : index
    %c0_10 = arith.constant 0 : index
    %c0_11 = arith.constant 0 : index
    %11 = vector.load %arg1[%c0_9, %c2, %c0_10, %c0_11] : memref<2x3x16x16xf32, #tpu.memory_space<vmem>>, vector<1x1x16x16xf32>
    %12 = vector.shape_cast %11 : vector<1x1x16x16xf32> to vector<16x16xf32>
    %cst_12 = arith.constant 1.140000e-01 : f32
    %13 = vector.broadcast %cst_12 : f32 to vector<16x16xf32>
    %14 = arith.mulf %13, %12 : vector<16x16xf32>
    %15 = arith.addf %10, %14 : vector<16x16xf32>
    %c0_13 = arith.constant 0 : index
    %c0_14 = arith.constant 0 : index
    %c0_15 = arith.constant 0 : index
    %c0_16 = arith.constant 0 : index
    %16 = vector.load %arg2[%c0_13, %c0_14, %c0_15, %c0_16] : memref<2x3x16x16xf32, #tpu.memory_space<vmem>>, vector<1x1x16x16xf32>
    %17 = vector.shape_cast %16 : vector<1x1x16x16xf32> to vector<16x16xf32>
    %cst_17 = arith.constant 2.990000e-01 : f32
    %18 = vector.broadcast %cst_17 : f32 to vector<16x16xf32>
    %19 = arith.mulf %18, %17 : vector<16x16xf32>
    %c0_18 = arith.constant 0 : index
    %c1_19 = arith.constant 1 : index
    %c0_20 = arith.constant 0 : index
    %c0_21 = arith.constant 0 : index
    %20 = vector.load %arg2[%c0_18, %c1_19, %c0_20, %c0_21] : memref<2x3x16x16xf32, #tpu.memory_space<vmem>>, vector<1x1x16x16xf32>
    %21 = vector.shape_cast %20 : vector<1x1x16x16xf32> to vector<16x16xf32>
    %cst_22 = arith.constant 5.870000e-01 : f32
    %22 = vector.broadcast %cst_22 : f32 to vector<16x16xf32>
    %23 = arith.mulf %22, %21 : vector<16x16xf32>
    %24 = arith.addf %19, %23 : vector<16x16xf32>
    %c0_23 = arith.constant 0 : index
    %c2_24 = arith.constant 2 : index
    %c0_25 = arith.constant 0 : index
    %c0_26 = arith.constant 0 : index
    %25 = vector.load %arg2[%c0_23, %c2_24, %c0_25, %c0_26] : memref<2x3x16x16xf32, #tpu.memory_space<vmem>>, vector<1x1x16x16xf32>
    %26 = vector.shape_cast %25 : vector<1x1x16x16xf32> to vector<16x16xf32>
    %cst_27 = arith.constant 1.140000e-01 : f32
    %27 = vector.broadcast %cst_27 : f32 to vector<16x16xf32>
    %28 = arith.mulf %27, %26 : vector<16x16xf32>
    %29 = arith.addf %24, %28 : vector<16x16xf32>
    %c0_28 = arith.constant 0 : index
    %c0_29 = arith.constant 0 : index
    %30 = vector.load %arg5[%c0_28, %c0_29] : memref<16x16xf32, #tpu.memory_space<vmem>>, vector<16x16xf32>
    tpu.vector_store %arg5[%c0_28, %c0_29], %15 {strides = array<i32>} : memref<16x16xf32, #tpu.memory_space<vmem>>, vector<16x16xf32>,
    %c0_30 = arith.constant 0 : index
    %c0_31 = arith.constant 0 : index
    %31 = vector.load %arg6[%c0_30, %c0_31] : memref<16x16xf32, #tpu.memory_space<vmem>>, vector<16x16xf32>
    tpu.vector_store %arg6[%c0_30, %c0_31], %29 {strides = array<i32>} : memref<16x16xf32, #tpu.memory_space<vmem>>, vector<16x16xf32>,
    %c2_32 = arith.constant 2 : index
    %c2_33 = arith.constant 2 : index
    %32 = vector.load %arg5[%c2_32, %c2_33] : memref<16x16xf32, #tpu.memory_space<vmem>>, vector<12x12xf32>
    %c0_34 = arith.constant 0 : index
    %c0_35 = arith.constant 0 : index
    %33 = vector.load %arg5[%c0_34, %c0_35] : memref<16x16xf32, #tpu.memory_space<vmem>>, vector<12x16xf32>
    %c1_36 = arith.constant 1 : index
    %c0_37 = arith.constant 0 : index
    %34 = vector.load %arg5[%c1_36, %c0_37] : memref<16x16xf32, #tpu.memory_space<vmem>>, vector<12x16xf32>
    %35 = arith.addf %33, %34 : vector<12x16xf32>
    %c2_38 = arith.constant 2 : index
    %c0_39 = arith.constant 0 : index
    %36 = vector.load %arg5[%c2_38, %c0_39] : memref<16x16xf32, #tpu.memory_space<vmem>>, vector<12x16xf32>
    %37 = arith.addf %35, %36 : vector<12x16xf32>
    %c3 = arith.constant 3 : index
    %c0_40 = arith.constant 0 : index
    %38 = vector.load %arg5[%c3, %c0_40] : memref<16x16xf32, #tpu.memory_space<vmem>>, vector<12x16xf32>
    %39 = arith.addf %37, %38 : vector<12x16xf32>
    %c4 = arith.constant 4 : index
    %c0_41 = arith.constant 0 : index
    %40 = vector.load %arg5[%c4, %c0_41] : memref<16x16xf32, #tpu.memory_space<vmem>>, vector<12x16xf32>
    %41 = arith.addf %39, %40 : vector<12x16xf32>
    %cst_42 = arith.constant dense<0.000000e+00> : vector<12x12xf32>
    %42 = tpu.matmul %41, %0, %cst_42 {dimension_numbers = #tpu.dot_dimension_numbers<[1], [0], [0], [1], [0, 0, 1, 1], [], []>, precision = #tpu.contract_precision<fp32>} : vector<12x16xf32>, vector<16x12xf32>, vector<12x12xf32> -> vector<12x12xf32>
    %cst_43 = arith.constant 4.000000e-02 : f32
    %43 = vector.broadcast %cst_43 : f32 to vector<12x12xf32>
    %44 = arith.mulf %42, %43 : vector<12x12xf32>
    %45 = arith.subf %32, %44 : vector<12x12xf32>
    %c2_44 = arith.constant 2 : index
    %c2_45 = arith.constant 2 : index
    %46 = vector.load %arg6[%c2_44, %c2_45] : memref<16x16xf32, #tpu.memory_space<vmem>>, vector<12x12xf32>
    %c0_46 = arith.constant 0 : index
    %c0_47 = arith.constant 0 : index
    %47 = vector.load %arg6[%c0_46, %c0_47] : memref<16x16xf32, #tpu.memory_space<vmem>>, vector<12x16xf32>
    %c1_48 = arith.constant 1 : index
    %c0_49 = arith.constant 0 : index
    %48 = vector.load %arg6[%c1_48, %c0_49] : memref<16x16xf32, #tpu.memory_space<vmem>>, vector<12x16xf32>
    %49 = arith.addf %47, %48 : vector<12x16xf32>
    %c2_50 = arith.constant 2 : index
    %c0_51 = arith.constant 0 : index
    %50 = vector.load %arg6[%c2_50, %c0_51] : memref<16x16xf32, #tpu.memory_space<vmem>>, vector<12x16xf32>
    %51 = arith.addf %49, %50 : vector<12x16xf32>
    %c3_52 = arith.constant 3 : index
    %c0_53 = arith.constant 0 : index
    %52 = vector.load %arg6[%c3_52, %c0_53] : memref<16x16xf32, #tpu.memory_space<vmem>>, vector<12x16xf32>
    %53 = arith.addf %51, %52 : vector<12x16xf32>
    %c4_54 = arith.constant 4 : index
    %c0_55 = arith.constant 0 : index
    %54 = vector.load %arg6[%c4_54, %c0_55] : memref<16x16xf32, #tpu.memory_space<vmem>>, vector<12x16xf32>
    %55 = arith.addf %53, %54 : vector<12x16xf32>
    %cst_56 = arith.constant dense<0.000000e+00> : vector<12x12xf32>
    %56 = tpu.matmul %55, %0, %cst_56 {dimension_numbers = #tpu.dot_dimension_numbers<[1], [0], [0], [1], [0, 0, 1, 1], [], []>, precision = #tpu.contract_precision<fp32>} : vector<12x16xf32>, vector<16x12xf32>, vector<12x12xf32> -> vector<12x12xf32>
    %cst_57 = arith.constant 4.000000e-02 : f32
    %57 = vector.broadcast %cst_57 : f32 to vector<12x12xf32>
    %58 = arith.mulf %56, %57 : vector<12x12xf32>
    %59 = arith.subf %46, %58 : vector<12x12xf32>
    %60 = arith.mulf %45, %59 : vector<12x12xf32>
    %c0_58 = arith.constant 0 : index
    %c0_59 = arith.constant 0 : index
    %61 = vector.load %arg5[%c0_58, %c0_59] : memref<16x16xf32, #tpu.memory_space<vmem>>, vector<12x12xf32>
    tpu.vector_store %arg5[%c0_58, %c0_59], %60 {strides = array<i32>} : memref<16x16xf32, #tpu.memory_space<vmem>>, vector<12x12xf32>,
    %c0_60 = arith.constant 0 : index
    %c0_61 = arith.constant 0 : index
    %62 = vector.load %arg5[%c0_60, %c0_61] : memref<16x16xf32, #tpu.memory_space<vmem>>, vector<8x12xf32>
    %c1_62 = arith.constant 1 : index
    %c0_63 = arith.constant 0 : index
    %63 = vector.load %arg5[%c1_62, %c0_63] : memref<16x16xf32, #tpu.memory_space<vmem>>, vector<8x12xf32>
    %64 = arith.addf %62, %63 : vector<8x12xf32>
    %c2_64 = arith.constant 2 : index
    %c0_65 = arith.constant 0 : index
    %65 = vector.load %arg5[%c2_64, %c0_65] : memref<16x16xf32, #tpu.memory_space<vmem>>, vector<8x12xf32>
    %66 = arith.addf %64, %65 : vector<8x12xf32>
    %c3_66 = arith.constant 3 : index
    %c0_67 = arith.constant 0 : index
    %67 = vector.load %arg5[%c3_66, %c0_67] : memref<16x16xf32, #tpu.memory_space<vmem>>, vector<8x12xf32>
    %68 = arith.addf %66, %67 : vector<8x12xf32>
    %c4_68 = arith.constant 4 : index
    %c0_69 = arith.constant 0 : index
    %69 = vector.load %arg5[%c4_68, %c0_69] : memref<16x16xf32, #tpu.memory_space<vmem>>, vector<8x12xf32>
    %70 = arith.addf %68, %69 : vector<8x12xf32>
    %cst_70 = arith.constant dense<0.000000e+00> : vector<8x8xf32>
    %71 = tpu.matmul %70, %1, %cst_70 {dimension_numbers = #tpu.dot_dimension_numbers<[1], [0], [0], [1], [0, 0, 1, 1], [], []>, precision = #tpu.contract_precision<fp32>} : vector<8x12xf32>, vector<12x8xf32>, vector<8x8xf32> -> vector<8x8xf32>
    %cst_71 = arith.constant 4.000000e-02 : f32
    %72 = vector.broadcast %cst_71 : f32 to vector<8x8xf32>
    %73 = arith.mulf %71, %72 : vector<8x8xf32>
    %74 = arith.mulf %73, %73 : vector<8x8xf32>
    %75 = vector.shape_cast %74 : vector<8x8xf32> to vector<1x8x8xf32>
    %cst_72 = arith.constant dense<0.000000e+00> : vector<1xf32>
    %76 = vector.multi_reduction <add>, %75, %cst_72 [1, 2] : vector<1x8x8xf32> to vector<1xf32>
    %77 = vector.shape_cast %76 : vector<1xf32> to vector<1x1x1xf32>
    %78 = vector.extract %77[0, 0, 0] : f32 from vector<1x1x1xf32>
    %cst_73 = arith.constant 0.000000e+00 : f32
    %79 = arith.addf %cst_73, %78 : f32
    %80 = arith.mulf %45, %45 : vector<12x12xf32>
    %c0_74 = arith.constant 0 : index
    %c0_75 = arith.constant 0 : index
    %81 = vector.load %arg5[%c0_74, %c0_75] : memref<16x16xf32, #tpu.memory_space<vmem>>, vector<12x12xf32>
    tpu.vector_store %arg5[%c0_74, %c0_75], %80 {strides = array<i32>} : memref<16x16xf32, #tpu.memory_space<vmem>>, vector<12x12xf32>,
    %c0_76 = arith.constant 0 : index
    %c0_77 = arith.constant 0 : index
    %82 = vector.load %arg5[%c0_76, %c0_77] : memref<16x16xf32, #tpu.memory_space<vmem>>, vector<8x12xf32>
    %c1_78 = arith.constant 1 : index
    %c0_79 = arith.constant 0 : index
    %83 = vector.load %arg5[%c1_78, %c0_79] : memref<16x16xf32, #tpu.memory_space<vmem>>, vector<8x12xf32>
    %84 = arith.addf %82, %83 : vector<8x12xf32>
    %c2_80 = arith.constant 2 : index
    %c0_81 = arith.constant 0 : index
    %85 = vector.load %arg5[%c2_80, %c0_81] : memref<16x16xf32, #tpu.memory_space<vmem>>, vector<8x12xf32>
    %86 = arith.addf %84, %85 : vector<8x12xf32>
    %c3_82 = arith.constant 3 : index
    %c0_83 = arith.constant 0 : index
    %87 = vector.load %arg5[%c3_82, %c0_83] : memref<16x16xf32, #tpu.memory_space<vmem>>, vector<8x12xf32>
    %88 = arith.addf %86, %87 : vector<8x12xf32>
    %c4_84 = arith.constant 4 : index
    %c0_85 = arith.constant 0 : index
    %89 = vector.load %arg5[%c4_84, %c0_85] : memref<16x16xf32, #tpu.memory_space<vmem>>, vector<8x12xf32>
    %90 = arith.addf %88, %89 : vector<8x12xf32>
    %cst_86 = arith.constant dense<0.000000e+00> : vector<8x8xf32>
    %91 = tpu.matmul %90, %1, %cst_86 {dimension_numbers = #tpu.dot_dimension_numbers<[1], [0], [0], [1], [0, 0, 1, 1], [], []>, precision = #tpu.contract_precision<fp32>} : vector<8x12xf32>, vector<12x8xf32>, vector<8x8xf32> -> vector<8x8xf32>
    %cst_87 = arith.constant 4.000000e-02 : f32
    %92 = vector.broadcast %cst_87 : f32 to vector<8x8xf32>
    %93 = arith.mulf %91, %92 : vector<8x8xf32>
    %94 = arith.mulf %59, %59 : vector<12x12xf32>
    %c0_88 = arith.constant 0 : index
    %c0_89 = arith.constant 0 : index
    %95 = vector.load %arg6[%c0_88, %c0_89] : memref<16x16xf32, #tpu.memory_space<vmem>>, vector<12x12xf32>
    tpu.vector_store %arg6[%c0_88, %c0_89], %94 {strides = array<i32>} : memref<16x16xf32, #tpu.memory_space<vmem>>, vector<12x12xf32>,
    %c0_90 = arith.constant 0 : index
    %c0_91 = arith.constant 0 : index
    %96 = vector.load %arg6[%c0_90, %c0_91] : memref<16x16xf32, #tpu.memory_space<vmem>>, vector<8x12xf32>
    %c1_92 = arith.constant 1 : index
    %c0_93 = arith.constant 0 : index
    %97 = vector.load %arg6[%c1_92, %c0_93] : memref<16x16xf32, #tpu.memory_space<vmem>>, vector<8x12xf32>
    %98 = arith.addf %96, %97 : vector<8x12xf32>
    %c2_94 = arith.constant 2 : index
    %c0_95 = arith.constant 0 : index
    %99 = vector.load %arg6[%c2_94, %c0_95] : memref<16x16xf32, #tpu.memory_space<vmem>>, vector<8x12xf32>
    %100 = arith.addf %98, %99 : vector<8x12xf32>
    %c3_96 = arith.constant 3 : index
    %c0_97 = arith.constant 0 : index
    %101 = vector.load %arg6[%c3_96, %c0_97] : memref<16x16xf32, #tpu.memory_space<vmem>>, vector<8x12xf32>
    %102 = arith.addf %100, %101 : vector<8x12xf32>
    %c4_98 = arith.constant 4 : index
    %c0_99 = arith.constant 0 : index
    %103 = vector.load %arg6[%c4_98, %c0_99] : memref<16x16xf32, #tpu.memory_space<vmem>>, vector<8x12xf32>
    %104 = arith.addf %102, %103 : vector<8x12xf32>
    %cst_100 = arith.constant dense<0.000000e+00> : vector<8x8xf32>
    %105 = tpu.matmul %104, %1, %cst_100 {dimension_numbers = #tpu.dot_dimension_numbers<[1], [0], [0], [1], [0, 0, 1, 1], [], []>, precision = #tpu.contract_precision<fp32>} : vector<8x12xf32>, vector<12x8xf32>, vector<8x8xf32> -> vector<8x8xf32>
    %cst_101 = arith.constant 4.000000e-02 : f32
    %106 = vector.broadcast %cst_101 : f32 to vector<8x8xf32>
    %107 = arith.mulf %105, %106 : vector<8x8xf32>
    %108 = arith.mulf %93, %107 : vector<8x8xf32>
    %109 = vector.shape_cast %108 : vector<8x8xf32> to vector<1x8x8xf32>
    %cst_102 = arith.constant dense<0.000000e+00> : vector<1xf32>
    %110 = vector.multi_reduction <add>, %109, %cst_102 [1, 2] : vector<1x8x8xf32> to vector<1xf32>
    %111 = vector.shape_cast %110 : vector<1xf32> to vector<1x1x1xf32>
    %112 = vector.extract %111[0, 0, 0] : f32 from vector<1x1x1xf32>
    %cst_103 = arith.constant 0.000000e+00 : f32
    %113 = arith.addf %cst_103, %112 : f32
    %c1_104 = arith.constant 1 : index
    %c0_105 = arith.constant 0 : index
    %c0_106 = arith.constant 0 : index
    %c0_107 = arith.constant 0 : index
    %114 = vector.load %arg1[%c1_104, %c0_105, %c0_106, %c0_107] : memref<2x3x16x16xf32, #tpu.memory_space<vmem>>, vector<1x1x16x16xf32>
    %115 = vector.shape_cast %114 : vector<1x1x16x16xf32> to vector<16x16xf32>
    %cst_108 = arith.constant 2.990000e-01 : f32
    %116 = vector.broadcast %cst_108 : f32 to vector<16x16xf32>
    %117 = arith.mulf %116, %115 : vector<16x16xf32>
    %c1_109 = arith.constant 1 : index
    %c1_110 = arith.constant 1 : index
    %c0_111 = arith.constant 0 : index
    %c0_112 = arith.constant 0 : index
    %118 = vector.load %arg1[%c1_109, %c1_110, %c0_111, %c0_112] : memref<2x3x16x16xf32, #tpu.memory_space<vmem>>, vector<1x1x16x16xf32>
    %119 = vector.shape_cast %118 : vector<1x1x16x16xf32> to vector<16x16xf32>
    %cst_113 = arith.constant 5.870000e-01 : f32
    %120 = vector.broadcast %cst_113 : f32 to vector<16x16xf32>
    %121 = arith.mulf %120, %119 : vector<16x16xf32>
    %122 = arith.addf %117, %121 : vector<16x16xf32>
    %c1_114 = arith.constant 1 : index
    %c2_115 = arith.constant 2 : index
    %c0_116 = arith.constant 0 : index
    %c0_117 = arith.constant 0 : index
    %123 = vector.load %arg1[%c1_114, %c2_115, %c0_116, %c0_117] : memref<2x3x16x16xf32, #tpu.memory_space<vmem>>, vector<1x1x16x16xf32>
    %124 = vector.shape_cast %123 : vector<1x1x16x16xf32> to vector<16x16xf32>
    %cst_118 = arith.constant 1.140000e-01 : f32
    %125 = vector.broadcast %cst_118 : f32 to vector<16x16xf32>
    %126 = arith.mulf %125, %124 : vector<16x16xf32>
    %127 = arith.addf %122, %126 : vector<16x16xf32>
    %c1_119 = arith.constant 1 : index
    %c0_120 = arith.constant 0 : index
    %c0_121 = arith.constant 0 : index
    %c0_122 = arith.constant 0 : index
    %128 = vector.load %arg2[%c1_119, %c0_120, %c0_121, %c0_122] : memref<2x3x16x16xf32, #tpu.memory_space<vmem>>, vector<1x1x16x16xf32>
    %129 = vector.shape_cast %128 : vector<1x1x16x16xf32> to vector<16x16xf32>
    %cst_123 = arith.constant 2.990000e-01 : f32
    %130 = vector.broadcast %cst_123 : f32 to vector<16x16xf32>
    %131 = arith.mulf %130, %129 : vector<16x16xf32>
    %c1_124 = arith.constant 1 : index
    %c1_125 = arith.constant 1 : index
    %c0_126 = arith.constant 0 : index
    %c0_127 = arith.constant 0 : index
    %132 = vector.load %arg2[%c1_124, %c1_125, %c0_126, %c0_127] : memref<2x3x16x16xf32, #tpu.memory_space<vmem>>, vector<1x1x16x16xf32>
    %133 = vector.shape_cast %132 : vector<1x1x16x16xf32> to vector<16x16xf32>
    %cst_128 = arith.constant 5.870000e-01 : f32
    %134 = vector.broadcast %cst_128 : f32 to vector<16x16xf32>
    %135 = arith.mulf %134, %133 : vector<16x16xf32>
    %136 = arith.addf %131, %135 : vector<16x16xf32>
    %c1_129 = arith.constant 1 : index
    %c2_130 = arith.constant 2 : index
    %c0_131 = arith.constant 0 : index
    %c0_132 = arith.constant 0 : index
    %137 = vector.load %arg2[%c1_129, %c2_130, %c0_131, %c0_132] : memref<2x3x16x16xf32, #tpu.memory_space<vmem>>, vector<1x1x16x16xf32>
    %138 = vector.shape_cast %137 : vector<1x1x16x16xf32> to vector<16x16xf32>
    %cst_133 = arith.constant 1.140000e-01 : f32
    %139 = vector.broadcast %cst_133 : f32 to vector<16x16xf32>
    %140 = arith.mulf %139, %138 : vector<16x16xf32>
    %141 = arith.addf %136, %140 : vector<16x16xf32>
    %c0_134 = arith.constant 0 : index
    %c0_135 = arith.constant 0 : index
    %142 = vector.load %arg5[%c0_134, %c0_135] : memref<16x16xf32, #tpu.memory_space<vmem>>, vector<16x16xf32>
    tpu.vector_store %arg5[%c0_134, %c0_135], %127 {strides = array<i32>} : memref<16x16xf32, #tpu.memory_space<vmem>>, vector<16x16xf32>,
    %c0_136 = arith.constant 0 : index
    %c0_137 = arith.constant 0 : index
    %143 = vector.load %arg6[%c0_136, %c0_137] : memref<16x16xf32, #tpu.memory_space<vmem>>, vector<16x16xf32>
    tpu.vector_store %arg6[%c0_136, %c0_137], %141 {strides = array<i32>} : memref<16x16xf32, #tpu.memory_space<vmem>>, vector<16x16xf32>,
    %c2_138 = arith.constant 2 : index
    %c2_139 = arith.constant 2 : index
    %144 = vector.load %arg5[%c2_138, %c2_139] : memref<16x16xf32, #tpu.memory_space<vmem>>, vector<12x12xf32>
    %c0_140 = arith.constant 0 : index
    %c0_141 = arith.constant 0 : index
    %145 = vector.load %arg5[%c0_140, %c0_141] : memref<16x16xf32, #tpu.memory_space<vmem>>, vector<12x16xf32>
    %c1_142 = arith.constant 1 : index
    %c0_143 = arith.constant 0 : index
    %146 = vector.load %arg5[%c1_142, %c0_143] : memref<16x16xf32, #tpu.memory_space<vmem>>, vector<12x16xf32>
    %147 = arith.addf %145, %146 : vector<12x16xf32>
    %c2_144 = arith.constant 2 : index
    %c0_145 = arith.constant 0 : index
    %148 = vector.load %arg5[%c2_144, %c0_145] : memref<16x16xf32, #tpu.memory_space<vmem>>, vector<12x16xf32>
    %149 = arith.addf %147, %148 : vector<12x16xf32>
    %c3_146 = arith.constant 3 : index
    %c0_147 = arith.constant 0 : index
    %150 = vector.load %arg5[%c3_146, %c0_147] : memref<16x16xf32, #tpu.memory_space<vmem>>, vector<12x16xf32>
    %151 = arith.addf %149, %150 : vector<12x16xf32>
    %c4_148 = arith.constant 4 : index
    %c0_149 = arith.constant 0 : index
    %152 = vector.load %arg5[%c4_148, %c0_149] : memref<16x16xf32, #tpu.memory_space<vmem>>, vector<12x16xf32>
    %153 = arith.addf %151, %152 : vector<12x16xf32>
    %cst_150 = arith.constant dense<0.000000e+00> : vector<12x12xf32>
    %154 = tpu.matmul %153, %0, %cst_150 {dimension_numbers = #tpu.dot_dimension_numbers<[1], [0], [0], [1], [0, 0, 1, 1], [], []>, precision = #tpu.contract_precision<fp32>} : vector<12x16xf32>, vector<16x12xf32>, vector<12x12xf32> -> vector<12x12xf32>
    %cst_151 = arith.constant 4.000000e-02 : f32
    %155 = vector.broadcast %cst_151 : f32 to vector<12x12xf32>
    %156 = arith.mulf %154, %155 : vector<12x12xf32>
    %157 = arith.subf %144, %156 : vector<12x12xf32>
    %c2_152 = arith.constant 2 : index
    %c2_153 = arith.constant 2 : index
    %158 = vector.load %arg6[%c2_152, %c2_153] : memref<16x16xf32, #tpu.memory_space<vmem>>, vector<12x12xf32>
    %c0_154 = arith.constant 0 : index
    %c0_155 = arith.constant 0 : index
    %159 = vector.load %arg6[%c0_154, %c0_155] : memref<16x16xf32, #tpu.memory_space<vmem>>, vector<12x16xf32>
    %c1_156 = arith.constant 1 : index
    %c0_157 = arith.constant 0 : index
    %160 = vector.load %arg6[%c1_156, %c0_157] : memref<16x16xf32, #tpu.memory_space<vmem>>, vector<12x16xf32>
    %161 = arith.addf %159, %160 : vector<12x16xf32>
    %c2_158 = arith.constant 2 : index
    %c0_159 = arith.constant 0 : index
    %162 = vector.load %arg6[%c2_158, %c0_159] : memref<16x16xf32, #tpu.memory_space<vmem>>, vector<12x16xf32>
    %163 = arith.addf %161, %162 : vector<12x16xf32>
    %c3_160 = arith.constant 3 : index
    %c0_161 = arith.constant 0 : index
    %164 = vector.load %arg6[%c3_160, %c0_161] : memref<16x16xf32, #tpu.memory_space<vmem>>, vector<12x16xf32>
    %165 = arith.addf %163, %164 : vector<12x16xf32>
    %c4_162 = arith.constant 4 : index
    %c0_163 = arith.constant 0 : index
    %166 = vector.load %arg6[%c4_162, %c0_163] : memref<16x16xf32, #tpu.memory_space<vmem>>, vector<12x16xf32>
    %167 = arith.addf %165, %166 : vector<12x16xf32>
    %cst_164 = arith.constant dense<0.000000e+00> : vector<12x12xf32>
    %168 = tpu.matmul %167, %0, %cst_164 {dimension_numbers = #tpu.dot_dimension_numbers<[1], [0], [0], [1], [0, 0, 1, 1], [], []>, precision = #tpu.contract_precision<fp32>} : vector<12x16xf32>, vector<16x12xf32>, vector<12x12xf32> -> vector<12x12xf32>
    %cst_165 = arith.constant 4.000000e-02 : f32
    %169 = vector.broadcast %cst_165 : f32 to vector<12x12xf32>
    %170 = arith.mulf %168, %169 : vector<12x12xf32>
    %171 = arith.subf %158, %170 : vector<12x12xf32>
    %172 = arith.mulf %157, %171 : vector<12x12xf32>
    %c0_166 = arith.constant 0 : index
    %c0_167 = arith.constant 0 : index
    %173 = vector.load %arg5[%c0_166, %c0_167] : memref<16x16xf32, #tpu.memory_space<vmem>>, vector<12x12xf32>
    tpu.vector_store %arg5[%c0_166, %c0_167], %172 {strides = array<i32>} : memref<16x16xf32, #tpu.memory_space<vmem>>, vector<12x12xf32>,
    %c0_168 = arith.constant 0 : index
    %c0_169 = arith.constant 0 : index
    %174 = vector.load %arg5[%c0_168, %c0_169] : memref<16x16xf32, #tpu.memory_space<vmem>>, vector<8x12xf32>
    %c1_170 = arith.constant 1 : index
    %c0_171 = arith.constant 0 : index
    %175 = vector.load %arg5[%c1_170, %c0_171] : memref<16x16xf32, #tpu.memory_space<vmem>>, vector<8x12xf32>
    %176 = arith.addf %174, %175 : vector<8x12xf32>
    %c2_172 = arith.constant 2 : index
    %c0_173 = arith.constant 0 : index
    %177 = vector.load %arg5[%c2_172, %c0_173] : memref<16x16xf32, #tpu.memory_space<vmem>>, vector<8x12xf32>
    %178 = arith.addf %176, %177 : vector<8x12xf32>
    %c3_174 = arith.constant 3 : index
    %c0_175 = arith.constant 0 : index
    %179 = vector.load %arg5[%c3_174, %c0_175] : memref<16x16xf32, #tpu.memory_space<vmem>>, vector<8x12xf32>
    %180 = arith.addf %178, %179 : vector<8x12xf32>
    %c4_176 = arith.constant 4 : index
    %c0_177 = arith.constant 0 : index
    %181 = vector.load %arg5[%c4_176, %c0_177] : memref<16x16xf32, #tpu.memory_space<vmem>>, vector<8x12xf32>
    %182 = arith.addf %180, %181 : vector<8x12xf32>
    %cst_178 = arith.constant dense<0.000000e+00> : vector<8x8xf32>
    %183 = tpu.matmul %182, %1, %cst_178 {dimension_numbers = #tpu.dot_dimension_numbers<[1], [0], [0], [1], [0, 0, 1, 1], [], []>, precision = #tpu.contract_precision<fp32>} : vector<8x12xf32>, vector<12x8xf32>, vector<8x8xf32> -> vector<8x8xf32>
    %cst_179 = arith.constant 4.000000e-02 : f32
    %184 = vector.broadcast %cst_179 : f32 to vector<8x8xf32>
    %185 = arith.mulf %183, %184 : vector<8x8xf32>
    %186 = arith.mulf %185, %185 : vector<8x8xf32>
    %187 = vector.shape_cast %186 : vector<8x8xf32> to vector<1x8x8xf32>
    %cst_180 = arith.constant dense<0.000000e+00> : vector<1xf32>
    %188 = vector.multi_reduction <add>, %187, %cst_180 [1, 2] : vector<1x8x8xf32> to vector<1xf32>
    %189 = vector.shape_cast %188 : vector<1xf32> to vector<1x1x1xf32>
    %190 = vector.extract %189[0, 0, 0] : f32 from vector<1x1x1xf32>
    %191 = arith.addf %79, %190 : f32
    %192 = arith.mulf %157, %157 : vector<12x12xf32>
    %c0_181 = arith.constant 0 : index
    %c0_182 = arith.constant 0 : index
    %193 = vector.load %arg5[%c0_181, %c0_182] : memref<16x16xf32, #tpu.memory_space<vmem>>, vector<12x12xf32>
    tpu.vector_store %arg5[%c0_181, %c0_182], %192 {strides = array<i32>} : memref<16x16xf32, #tpu.memory_space<vmem>>, vector<12x12xf32>,
    %c0_183 = arith.constant 0 : index
    %c0_184 = arith.constant 0 : index
    %194 = vector.load %arg5[%c0_183, %c0_184] : memref<16x16xf32, #tpu.memory_space<vmem>>, vector<8x12xf32>
    %c1_185 = arith.constant 1 : index
    %c0_186 = arith.constant 0 : index
    %195 = vector.load %arg5[%c1_185, %c0_186] : memref<16x16xf32, #tpu.memory_space<vmem>>, vector<8x12xf32>
    %196 = arith.addf %194, %195 : vector<8x12xf32>
    %c2_187 = arith.constant 2 : index
    %c0_188 = arith.constant 0 : index
    %197 = vector.load %arg5[%c2_187, %c0_188] : memref<16x16xf32, #tpu.memory_space<vmem>>, vector<8x12xf32>
    %198 = arith.addf %196, %197 : vector<8x12xf32>
    %c3_189 = arith.constant 3 : index
    %c0_190 = arith.constant 0 : index
    %199 = vector.load %arg5[%c3_189, %c0_190] : memref<16x16xf32, #tpu.memory_space<vmem>>, vector<8x12xf32>
    %200 = arith.addf %198, %199 : vector<8x12xf32>
    %c4_191 = arith.constant 4 : index
    %c0_192 = arith.constant 0 : index
    %201 = vector.load %arg5[%c4_191, %c0_192] : memref<16x16xf32, #tpu.memory_space<vmem>>, vector<8x12xf32>
    %202 = arith.addf %200, %201 : vector<8x12xf32>
    %cst_193 = arith.constant dense<0.000000e+00> : vector<8x8xf32>
    %203 = tpu.matmul %202, %1, %cst_193 {dimension_numbers = #tpu.dot_dimension_numbers<[1], [0], [0], [1], [0, 0, 1, 1], [], []>, precision = #tpu.contract_precision<fp32>} : vector<8x12xf32>, vector<12x8xf32>, vector<8x8xf32> -> vector<8x8xf32>
    %cst_194 = arith.constant 4.000000e-02 : f32
    %204 = vector.broadcast %cst_194 : f32 to vector<8x8xf32>
    %205 = arith.mulf %203, %204 : vector<8x8xf32>
    %206 = arith.mulf %171, %171 : vector<12x12xf32>
    %c0_195 = arith.constant 0 : index
    %c0_196 = arith.constant 0 : index
    %207 = vector.load %arg6[%c0_195, %c0_196] : memref<16x16xf32, #tpu.memory_space<vmem>>, vector<12x12xf32>
    tpu.vector_store %arg6[%c0_195, %c0_196], %206 {strides = array<i32>} : memref<16x16xf32, #tpu.memory_space<vmem>>, vector<12x12xf32>,
    %c0_197 = arith.constant 0 : index
    %c0_198 = arith.constant 0 : index
    %208 = vector.load %arg6[%c0_197, %c0_198] : memref<16x16xf32, #tpu.memory_space<vmem>>, vector<8x12xf32>
    %c1_199 = arith.constant 1 : index
    %c0_200 = arith.constant 0 : index
    %209 = vector.load %arg6[%c1_199, %c0_200] : memref<16x16xf32, #tpu.memory_space<vmem>>, vector<8x12xf32>
    %210 = arith.addf %208, %209 : vector<8x12xf32>
    %c2_201 = arith.constant 2 : index
    %c0_202 = arith.constant 0 : index
    %211 = vector.load %arg6[%c2_201, %c0_202] : memref<16x16xf32, #tpu.memory_space<vmem>>, vector<8x12xf32>
    %212 = arith.addf %210, %211 : vector<8x12xf32>
    %c3_203 = arith.constant 3 : index
    %c0_204 = arith.constant 0 : index
    %213 = vector.load %arg6[%c3_203, %c0_204] : memref<16x16xf32, #tpu.memory_space<vmem>>, vector<8x12xf32>
    %214 = arith.addf %212, %213 : vector<8x12xf32>
    %c4_205 = arith.constant 4 : index
    %c0_206 = arith.constant 0 : index
    %215 = vector.load %arg6[%c4_205, %c0_206] : memref<16x16xf32, #tpu.memory_space<vmem>>, vector<8x12xf32>
    %216 = arith.addf %214, %215 : vector<8x12xf32>
    %cst_207 = arith.constant dense<0.000000e+00> : vector<8x8xf32>
    %217 = tpu.matmul %216, %1, %cst_207 {dimension_numbers = #tpu.dot_dimension_numbers<[1], [0], [0], [1], [0, 0, 1, 1], [], []>, precision = #tpu.contract_precision<fp32>} : vector<8x12xf32>, vector<12x8xf32>, vector<8x8xf32> -> vector<8x8xf32>
    %cst_208 = arith.constant 4.000000e-02 : f32
    %218 = vector.broadcast %cst_208 : f32 to vector<8x8xf32>
    %219 = arith.mulf %217, %218 : vector<8x8xf32>
    %220 = arith.mulf %205, %219 : vector<8x8xf32>
    %221 = vector.shape_cast %220 : vector<8x8xf32> to vector<1x8x8xf32>
    %cst_209 = arith.constant dense<0.000000e+00> : vector<1xf32>
    %222 = vector.multi_reduction <add>, %221, %cst_209 [1, 2] : vector<1x8x8xf32> to vector<1xf32>
    %223 = vector.shape_cast %222 : vector<1xf32> to vector<1x1x1xf32>
    %224 = vector.extract %223[0, 0, 0] : f32 from vector<1x1x1xf32>
    %225 = arith.addf %113, %224 : f32
    %226 = vector.broadcast %191 : f32 to vector<8x128xf32>
    %c0_210 = arith.constant 0 : index
    %c0_211 = arith.constant 0 : index
    %c0_212 = arith.constant 0 : index
    %227 = vector.load %arg4[%c0_210, %c0_211, %c0_212] : memref<1x8x256xf32, #tpu.memory_space<vmem>>, vector<1x8x128xf32>
    %228 = vector.shape_cast %227 : vector<1x8x128xf32> to vector<8x128xf32>
    %229 = vector.shape_cast %226 : vector<8x128xf32> to vector<1x8x128xf32>
    tpu.vector_store %arg4[%c0_210, %c0_211, %c0_212], %229 {strides = array<i32>} : memref<1x8x256xf32, #tpu.memory_space<vmem>>, vector<1x8x128xf32>,
    %230 = vector.broadcast %225 : f32 to vector<8x128xf32>
    %c0_213 = arith.constant 0 : index
    %c0_214 = arith.constant 0 : index
    %c128 = arith.constant 128 : index
    %231 = vector.load %arg4[%c0_213, %c0_214, %c128] : memref<1x8x256xf32, #tpu.memory_space<vmem>>, vector<1x8x128xf32>
    %232 = vector.shape_cast %231 : vector<1x8x128xf32> to vector<8x128xf32>
    %233 = vector.shape_cast %230 : vector<8x128xf32> to vector<1x8x128xf32>
    tpu.vector_store %arg4[%c0_213, %c0_214, %c128], %233 {strides = array<i32>} : memref<1x8x256xf32, #tpu.memory_space<vmem>>, vector<1x8x128xf32>,
    return
  }
  func.func @transform_0(%arg0: i32) -> (i32, i32, i32, i32) {
    %c0_i32 = arith.constant 0 : i32
    %c0_i32_0 = arith.constant 0 : i32
    %c0_i32_1 = arith.constant 0 : i32
    %c0_i32_2 = arith.constant 0 : i32
    return %arg0, %c0_i32, %c0_i32_0, %c0_i32_1 : i32, i32, i32, i32
  }
  func.func @transform_1(%arg0: i32) -> (i32, i32, i32, i32) {
    %c0_i32 = arith.constant 0 : i32
    %c0_i32_0 = arith.constant 0 : i32
    %c0_i32_1 = arith.constant 0 : i32
    %c0_i32_2 = arith.constant 0 : i32
    return %arg0, %c0_i32, %c0_i32_0, %c0_i32_1 : i32, i32, i32, i32
  }
  func.func @transform_2(%arg0: i32) -> (i32, i32) {
    %c0_i32 = arith.constant 0 : i32
    %c0_i32_0 = arith.constant 0 : i32
    %c0_i32_1 = arith.constant 0 : i32
    return %c0_i32, %c0_i32_0 : i32, i32
  }
  func.func @transform_3(%arg0: i32) -> (i32, i32, i32) {
    %c0_i32 = arith.constant 0 : i32
    %c0_i32_0 = arith.constant 0 : i32
    %c0_i32_1 = arith.constant 0 : i32
    return %arg0, %c0_i32, %c0_i32_0 : i32, i32, i32
  }
}

</mosaic_0001>

<llo_original>
// kernel: tpu_custom_call.1
$region0: #{tpu_custom_call.1}
  #allocation0 [shape = 'u32[]', space=smem, size = 0x4, offset = 0x4, fixed_abs, tag = 'smem constant byte address 0x4 - core index']
  #allocation1 [shape = 'u32[144,128]{1,0:T(1,128)}', space=vmem, size = 0x12000, scoped, tag = 'internal scratch']
  #allocation2 [shape = 'f32[16,16]{1,0:T(8,128)}', space=vmem, size = 0x2000, scoped, tag = 'scratch operand']
  #allocation3 [shape = 'f32[16,16]{1,0:T(8,128)}', space=vmem, size = 0x2000, scoped, tag = 'scratch operand']
  %s0 = inlined_call_operand.hbm [shape: f32[2,3,16,16], index: 0, kind: input, shape index: {}]
  %s1 = inlined_call_operand.hbm [shape: f32[2,3,16,16], index: 1, kind: input, shape index: {}]
  %s2 = inlined_call_operand.hbm [shape: f32[16,12], index: 2, kind: input, shape index: {}]
  %s3 = inlined_call_operand.hbm [shape: f32[1,8,256], index: 3, kind: output, shape index: {}]
  %s4 = sld [smem:[#allocation0]]
  $region34: #{tpu_custom_call.1} parent=0
    _
  %s6 = ssub.s32 1, %s4
  %s7 = scalar_select 0, %s6, %s4
  $region1: #{tpu_custom_call.1} parent=0
    #allocation4 [shape = 'u8[49152]{0}', space=vmem, size = 0xc000, scoped, tag = 'input window, operand 0, single buffered']
    #allocation5 [shape = 's32[1]{0}', space=sflag, size = 0x4, scoped, tag = 'scoped memory for tpu_custom_call.1']
    #allocation6 [shape = 's32[1]{0}', space=sflag, size = 0x4, scoped, tag = 'scoped memory for tpu_custom_call.1']
    #allocation7 [shape = 'u8[49152]{0}', space=vmem, size = 0xc000, scoped, tag = 'input window, operand 1, single buffered']
    #allocation8 [shape = 's32[1]{0}', space=sflag, size = 0x4, scoped, tag = 'scoped memory for tpu_custom_call.1']
    #allocation9 [shape = 'u8[8192]{0}', space=vmem, size = 0x2000, scoped, tag = 'input window, operand 2, single buffered']
    #allocation10 [shape = 'u8[8192]{0}', space=vmem, size = 0x2000, scoped, tag = 'output window, operand 0, single buffered']
    %8 = vsyncpa [#allocation5], 0
    %9 = vsyncpa [#allocation8], 0
    %10 = vsyncpa [#allocation6], 0
    // Predicated region
    $region2: #{tpu_custom_call.1} parent=1 // pred_check
      _
    $region3: #{tpu_custom_call.1} parent=1 // pred_check_branch
      %12 = sbr.rel (0) target = $region5
    $region4: #{tpu_custom_call.1} parent=1 // pred_region
      %s14 = ssub.s32 1536, 1536
      %15 = vsyncadd [#allocation5], %s14
      %s16 = sshll.u32 [#allocation4], 4
      %s17 = int_to_ptr.vmem [resolvable:$true] %s16
      %22 = dma.hbm_to_vmem [thread:$0]  %s0, 1536, %s17, [#allocation5], 128, 128, 8
    $region5: #{tpu_custom_call.1} parent=1 // pred_fallthru
      _
    // Predicated region
    $region6: #{tpu_custom_call.1} parent=1 // pred_check
      _
    $region7: #{tpu_custom_call.1} parent=1 // pred_check_branch
      %24 = sbr.rel (0) target = $region9
    $region8: #{tpu_custom_call.1} parent=1 // pred_region
      %s26 = ssub.s32 1536, 1536
      %27 = vsyncadd [#allocation8], %s26
      %s28 = sshll.u32 [#allocation7], 4
      %s29 = int_to_ptr.vmem [resolvable:$true] %s28
      %34 = dma.hbm_to_vmem [thread:$0]  %s1, 1536, %s29, [#allocation8], 128, 128, 8
    $region9: #{tpu_custom_call.1} parent=1 // pred_fallthru
      _
    // Predicated region
    $region10: #{tpu_custom_call.1} parent=1 // pred_check
      _
    $region11: #{tpu_custom_call.1} parent=1 // pred_check_branch
      %36 = sbr.rel (0) target = $region13
    $region12: #{tpu_custom_call.1} parent=1 // pred_region
      %s38 = ssub.s32 256, 256
      %39 = vsyncadd [#allocation8], %s38
      %s40 = sshll.u32 [#allocation9], 4
      %s41 = int_to_ptr.vmem [resolvable:$true] %s40
      %46 = dma.hbm_to_vmem [thread:$0]  %s2, 256, %s41, [#allocation8], 128, 128, 8
    $region13: #{tpu_custom_call.1} parent=1 // pred_fallthru
      _
    // Predicated region
    $region14: #{tpu_custom_call.1} parent=1 // pred_check
      _
    $region15: #{tpu_custom_call.1} parent=1 // pred_check_branch
      %48 = sbr.rel (0) target = $region17
    $region16: #{tpu_custom_call.1} parent=1 // pred_region
      %49 = dma.done [#allocation5], 1536
    $region17: #{tpu_custom_call.1} parent=1 // pred_fallthru
      _
    // Predicated region
    $region18: #{tpu_custom_call.1} parent=1 // pred_check
      _
    $region19: #{tpu_custom_call.1} parent=1 // pred_check_branch
      %51 = sbr.rel (0) target = $region21
    $region20: #{tpu_custom_call.1} parent=1 // pred_region
      %52 = dma.done [#allocation8], 1536
    $region21: #{tpu_custom_call.1} parent=1 // pred_fallthru
      _
    // Predicated region
    $region22: #{tpu_custom_call.1} parent=1 // pred_check
      _
    $region23: #{tpu_custom_call.1} parent=1 // pred_check_branch
      %54 = sbr.rel (0) target = $region25
    $region24: #{tpu_custom_call.1} parent=1 // pred_region
      %55 = dma.done [#allocation8], 256
    $region25: #{tpu_custom_call.1} parent=1 // pred_fallthru
      _
    %v56 = vld [vmem:[#allocation9] sm:$0xff]
    %v57 = vld [vmem:[#allocation9 + $0x8] sm:$0xff]
    %v58 = vld [vmem:[#allocation4] sm:$0xff]
    %v59 = vld [vmem:[#allocation4 + $0x8] sm:$0xff]
    %v60 = vmul.f32 %v58, 0.299
    %v61 = vmul.f32 %v59, 0.299
    %s62 = scalar_lea.vmem [#allocation4], 16
    %v63 = vld [vmem:[%s62] sm:$0xff]
    %v64 = vld [vmem:[%s62 + $0x8] sm:$0xff]
    %v65 = vmul.f32 %v63, 0.587
    %v66 = vmul.f32 %v64, 0.587
    %v67 = vadd.f32 %v60, %v65
    %v68 = vadd.f32 %v61, %v66
    %s69 = scalar_lea.vmem [#allocation4], 32
    %v70 = vld [vmem:[%s69] sm:$0xff]
    %v71 = vld [vmem:[%s69 + $0x8] sm:$0xff]
    %v72 = vmul.f32 %v70, 0.114
    %v73 = vmul.f32 %v71, 0.114
    %v74 = vadd.f32 %v67, %v72
    %v75 = vadd.f32 %v68, %v73
    %v76 = vld [vmem:[#allocation7] sm:$0xff]
    %v77 = vld [vmem:[#allocation7 + $0x8] sm:$0xff]
    %v78 = vmul.f32 %v76, 0.299
    %v79 = vmul.f32 %v77, 0.299
    %s80 = scalar_lea.vmem [#allocation7], 16
    %v81 = vld [vmem:[%s80] sm:$0xff]
    %v82 = vld [vmem:[%s80 + $0x8] sm:$0xff]
    %v83 = vmul.f32 %v81, 0.587
    %v84 = vmul.f32 %v82, 0.587
    %v85 = vadd.f32 %v78, %v83
    %v86 = vadd.f32 %v79, %v84
    %s87 = scalar_lea.vmem [#allocation7], 32
    %v88 = vld [vmem:[%s87] sm:$0xff]
    %v89 = vld [vmem:[%s87 + $0x8] sm:$0xff]
    %v90 = vmul.f32 %v88, 0.114
    %v91 = vmul.f32 %v89, 0.114
    %v92 = vadd.f32 %v85, %v90
    %v93 = vadd.f32 %v86, %v91
    %vm94 = vcmask 130048
    %95 = vst.msk [vmem:[#allocation2] sm:$0xff] %vm94, %v74
    %96 = vst.msk [vmem:[#allocation2 + $0x8] sm:$0xff] %vm94, %v75
    %97 = vst.msk [vmem:[#allocation3] sm:$0xff] %vm94, %v92
    %98 = vst.msk [vmem:[#allocation3 + $0x8] sm:$0xff] %vm94, %v93
    %v99 = vld [vmem:[#allocation2 + $0x2] sm:$0xff]
    %v100 = vld [vmem:[#allocation2 + $0xa] sm:$0xf]
    %v101 = vld [vmem:[#allocation2] sm:$0xff]
    %v102 = vld [vmem:[#allocation2 + $0x8] sm:$0xf]
    %v103 = vld [vmem:[#allocation2 + $0x1] sm:$0xff]
    %v104 = vld [vmem:[#allocation2 + $0x9] sm:$0xf]
    %v105 = vadd.f32 %v101, %v103
    %v106 = vadd.f32 %v102, %v104
    %v107 = vadd.f32 %v105, %v99
    %v108 = vadd.f32 %v106, %v100
    %v109 = vld [vmem:[#allocation2 + $0x3] sm:$0xff]
    %v110 = vld [vmem:[#allocation2 + $0xb] sm:$0xf]
    %v111 = vadd.f32 %v107, %v109
    %v112 = vadd.f32 %v108, %v110
    %v113 = vld [vmem:[#allocation2 + $0x4] sm:$0xff]
    %v114 = vld [vmem:[#allocation2 + $0xc] sm:$0xf]
    %v115 = vadd.f32 %v111, %v113
    %v116 = vadd.f32 %v112, %v114
    %v118 = vsel %vm94, %v115, 0
    %v121 = vsel %vm94, %v116, 0
    %123 = vmatprep.subr.mxu0 0.0
    %v124 = vand.u32 %v56, 4294901760
    %125 = vmatpush1.msra.mxu0 %v124
    %126 = vmatprep.subr.mxu0 0.0
    %v127 = vand.u32 %v57, 4294901760
    %128 = vmatpush1.msra.mxu0 %v127
    %129 = vmatprep.subr.mxu0 0.0
    %130 = vmatpush1.msra.mxu0 0.0
    %131 = vmatprep.subr.mxu0 0.0
    %132 = vmatpush1.msra.mxu0 0.0
    %133 = vmatprep.subr.mxu0 0.0
    %134 = vmatpush1.msra.mxu0 0.0
    %135 = vmatprep.subr.mxu0 0.0
    %136 = vmatpush1.msra.mxu0 0.0
    %137 = vmatprep.subr.mxu0 0.0
    %138 = vmatpush1.msra.mxu0 0.0
    %139 = vmatprep.subr.mxu0 0.0
    %140 = vmatpush1.msra.mxu0 0.0
    %141 = vmatprep.subr.mxu0 0.0
    %142 = vmatpush1.msra.mxu0 0.0
    %143 = vmatprep.subr.mxu0 0.0
    %144 = vmatpush1.msra.mxu0 0.0
    %145 = vmatprep.subr.mxu0 0.0
    %146 = vmatpush1.msra.mxu0 0.0
    %147 = vmatprep.subr.mxu0 0.0
    %148 = vmatpush1.msra.mxu0 0.0
    %149 = vmatprep.subr.mxu0 0.0
    %150 = vmatpush1.msra.mxu0 0.0
    %151 = vmatprep.subr.mxu0 0.0
    %152 = vmatpush1.msra.mxu0 0.0
    %153 = vmatprep.subr.mxu0 0.0
    %154 = vmatpush1.msra.mxu0 0.0
    %155 = vmatprep.subr.mxu0 0.0
    %156 = vmatpush1.msra.mxu0 0.0
    %157 = vmatprep.subr.mxu0 0.0
    %158 = vmatpush1.msra.mxu0 0.0
    %159 = vmatprep.subr.mxu0 0.0
    %160 = vmatpush1.msra.mxu0 0.0
    %161 = vmatprep.subr.mxu0 0.0
    %162 = vmatpush1.msra.mxu0 0.0
    %163 = vmatprep.subr.mxu0 0.0
    %164 = vmatpush1.msra.mxu0 0.0
    %165 = vmatprep.subr.mxu0 0.0
    %166 = vmatpush1.msra.mxu0 0.0
    %167 = vmatprep.subr.mxu0 0.0
    %168 = vmatpush1.msra.mxu0 0.0
    %169 = vmatprep.subr.mxu0 0.0
    %170 = vmatpush1.msra.mxu0 0.0
    %171 = vmatprep.subr.mxu0 0.0
    %172 = vmatpush1.msra.mxu0 0.0
    %173 = vmatprep.subr.mxu0 0.0
    %174 = vmatpush1.msra.mxu0 0.0
    %175 = vmatprep.subr.mxu0 0.0
    %176 = vmatpush1.msra.mxu0 0.0
    %177 = vmatprep.subr.mxu0 0.0
    %178 = vmatpush1.msra.mxu0 0.0
    %179 = vmatprep.subr.mxu0 0.0
    %180 = vmatpush1.msra.mxu0 0.0
    %181 = vmatprep.subr.mxu0 0.0
    %182 = vmatpush1.msra.mxu0 0.0
    %183 = vmatprep.subr.mxu0 0.0
    %184 = vmatpush1.msra.mxu0 0.0
    %185 = vmatprep.subr.mxu0 0.0
    %186 = vmatpush1.msra.mxu0 0.0
    %187 = vmatprep.subr.mxu0 0.0
    %188 = vmatpush1.msra.mxu0 0.0
    %189 = vmatprep.mubr.f32.mxu0 0.0
    %v190 = vand.u32 %v118, 4294901760
    %v191 = vsub.f32 %v118, %v190
    %v192 = vand.u32 %v191, 4294901760
    %v193 = vsub.f32 %v191, %v192
    %v194 = vand.u32 %v193, 4294901760
    %195 = vmatmul.mubr.f32.gmra.mrb[0].mxu0 %v194
    %v196 = vpop.f32.mrb[0].mxu0
    %v197 = vadd.f32 0.0, %v196
    %v198 = vpop.f32.mrb[0].mxu0
    %199 = vmatprep.mubr.f32.mxu0 0.0
    %v200 = vand.u32 %v121, 4294901760
    %v201 = vsub.f32 %v121, %v200
    %v202 = vand.u32 %v201, 4294901760
    %v203 = vsub.f32 %v201, %v202
    %v204 = vand.u32 %v203, 4294901760
    %205 = vmatmul.mubr.f32.gmra.mrb[0].mxu0 %v204
    %v206 = vpop.f32.mrb[0].mxu0
    %v207 = vadd.f32 0.0, %v206
    %v208 = vpop.f32.mrb[0].mxu0
    %209 = vdwg.mxu0
    %210 = vmatprep.subr.mxu0 0.0
    %v211 = vand.u32 %v56, 4294901760
    %v212 = vsub.f32 %v56, %v211
    %v213 = vand.u32 %v212, 4294901760
    %v214 = vsub.f32 %v212, %v213
    %v215 = vand.u32 %v214, 4294901760
    %216 = vmatpush1.msra.mxu0 %v215
    %217 = vmatprep.subr.mxu0 0.0
    %v218 = vand.u32 %v57, 4294901760
    %v219 = vsub.f32 %v57, %v218
    %v220 = vand.u32 %v219, 4294901760
    %v221 = vsub.f32 %v219, %v220
    %v222 = vand.u32 %v221, 4294901760
    %223 = vmatpush1.msra.mxu0 %v222
    %224 = vmatprep.subr.mxu0 0.0
    %225 = vmatpush1.msra.mxu0 0.0
    %226 = vmatprep.subr.mxu0 0.0
    %227 = vmatpush1.msra.mxu0 0.0
    %228 = vmatprep.subr.mxu0 0.0
    %229 = vmatpush1.msra.mxu0 0.0
    %230 = vmatprep.subr.mxu0 0.0
    %231 = vmatpush1.msra.mxu0 0.0
    %232 = vmatprep.subr.mxu0 0.0
    %233 = vmatpush1.msra.mxu0 0.0
    %234 = vmatprep.subr.mxu0 0.0
    %235 = vmatpush1.msra.mxu0 0.0
    %236 = vmatprep.subr.mxu0 0.0
    %237 = vmatpush1.msra.mxu0 0.0
    %238 = vmatprep.subr.mxu0 0.0
    %239 = vmatpush1.msra.mxu0 0.0
    %240 = vmatprep.subr.mxu0 0.0
    %241 = vmatpush1.msra.mxu0 0.0
    %242 = vmatprep.subr.mxu0 0.0
    %243 = vmatpush1.msra.mxu0 0.0
    %244 = vmatprep.subr.mxu0 0.0
    %245 = vmatpush1.msra.mxu0 0.0
    %246 = vmatprep.subr.mxu0 0.0
    %247 = vmatpush1.msra.mxu0 0.0
    %248 = vmatprep.subr.mxu0 0.0
    %249 = vmatpush1.msra.mxu0 0.0
    %250 = vmatprep.subr.mxu0 0.0
    %251 = vmatpush1.msra.mxu0 0.0
    %252 = vmatprep.subr.mxu0 0.0
    %253 = vmatpush1.msra.mxu0 0.0
    %254 = vmatprep.subr.mxu0 0.0
    %255 = vmatpush1.msra.mxu0 0.0
    %256 = vmatprep.subr.mxu0 0.0
    %257 = vmatpush1.msra.mxu0 0.0
    %258 = vmatprep.subr.mxu0 0.0
    %259 = vmatpush1.msra.mxu0 0.0
    %260 = vmatprep.subr.mxu0 0.0
    %261 = vmatpush1.msra.mxu0 0.0
    %262 = vmatprep.subr.mxu0 0.0
    %263 = vmatpush1.msra.mxu0 0.0
    %264 = vmatprep.subr.mxu0 0.0
    %265 = vmatpush1.msra.mxu0 0.0
    %266 = vmatprep.subr.mxu0 0.0
    %267 = vmatpush1.msra.mxu0 0.0
    %268 = vmatprep.subr.mxu0 0.0
    %269 = vmatpush1.msra.mxu0 0.0
    %270 = vmatprep.subr.mxu0 0.0
    %271 = vmatpush1.msra.mxu0 0.0
    %272 = vmatprep.subr.mxu0 0.0
    %273 = vmatpush1.msra.mxu0 0.0
    %274 = vmatprep.subr.mxu0 0.0
    %275 = vmatpush1.msra.mxu0 0.0
    %276 = vmatprep.subr.mxu0 0.0
    %277 = vmatpush1.msra.mxu0 0.0
    %278 = vmatprep.subr.mxu0 0.0
    %279 = vmatpush1.msra.mxu0 0.0
    %280 = vmatprep.subr.mxu0 0.0
    %281 = vmatpush1.msra.mxu0 0.0
    %282 = vmatprep.subr.mxu0 0.0
    %283 = vmatpush1.msra.mxu0 0.0
    %284 = vmatprep.mubr.f32.mxu0 0.0
    %v285 = vand.u32 %v118, 4294901760
    %286 = vmatmul.mubr.f32.gmra.mrb[0].mxu0 %v285
    %v287 = vpop.f32.mrb[0].mxu0
    %v288 = vadd.f32 %v197, %v287
    %v289 = vpop.f32.mrb[0].mxu0
    %290 = vmatprep.mubr.f32.mxu0 0.0
    %v291 = vand.u32 %v121, 4294901760
    %292 = vmatmul.mubr.f32.gmra.mrb[0].mxu0 %v291
    %v293 = vpop.f32.mrb[0].mxu0
    %v294 = vadd.f32 %v207, %v293
    %v295 = vpop.f32.mrb[0].mxu0
    %296 = vdwg.mxu0
    %297 = vmatprep.subr.mxu0 0.0
    %v298 = vand.u32 %v56, 4294901760
    %v299 = vsub.f32 %v56, %v298
    %300 = vmatpush1.msra.mxu0 %v299
    %301 = vmatprep.subr.mxu0 0.0
    %v302 = vand.u32 %v57, 4294901760
    %v303 = vsub.f32 %v57, %v302
    %304 = vmatpush1.msra.mxu0 %v303
    %305 = vmatprep.subr.mxu0 0.0
    %306 = vmatpush1.msra.mxu0 0.0
    %307 = vmatprep.subr.mxu0 0.0
    %308 = vmatpush1.msra.mxu0 0.0
    %309 = vmatprep.subr.mxu0 0.0
    %310 = vmatpush1.msra.mxu0 0.0
    %311 = vmatprep.subr.mxu0 0.0
    %312 = vmatpush1.msra.mxu0 0.0
    %313 = vmatprep.subr.mxu0 0.0
    %314 = vmatpush1.msra.mxu0 0.0
    %315 = vmatprep.subr.mxu0 0.0
    %316 = vmatpush1.msra.mxu0 0.0
    %317 = vmatprep.subr.mxu0 0.0
    %318 = vmatpush1.msra.mxu0 0.0
    %319 = vmatprep.subr.mxu0 0.0
    %320 = vmatpush1.msra.mxu0 0.0
    %321 = vmatprep.subr.mxu0 0.0
    %322 = vmatpush1.msra.mxu0 0.0
    %323 = vmatprep.subr.mxu0 0.0
    %324 = vmatpush1.msra.mxu0 0.0
    %325 = vmatprep.subr.mxu0 0.0
    %326 = vmatpush1.msra.mxu0 0.0
    %327 = vmatprep.subr.mxu0 0.0
    %328 = vmatpush1.msra.mxu0 0.0
    %329 = vmatprep.subr.mxu0 0.0
    %330 = vmatpush1.msra.mxu0 0.0
    %331 = vmatprep.subr.mxu0 0.0
    %332 = vmatpush1.msra.mxu0 0.0
    %333 = vmatprep.subr.mxu0 0.0
    %334 = vmatpush1.msra.mxu0 0.0
    %335 = vmatprep.subr.mxu0 0.0
    %336 = vmatpush1.msra.mxu0 0.0
    %337 = vmatprep.subr.mxu0 0.0
    %338 = vmatpush1.msra.mxu0 0.0
    %339 = vmatprep.subr.mxu0 0.0
    %340 = vmatpush1.msra.mxu0 0.0
    %341 = vmatprep.subr.mxu0 0.0
    %342 = vmatpush1.msra.mxu0 0.0
    %343 = vmatprep.subr.mxu0 0.0
    %344 = vmatpush1.msra.mxu0 0.0
    %345 = vmatprep.subr.mxu0 0.0
    %346 = vmatpush1.msra.mxu0 0.0
    %347 = vmatprep.subr.mxu0 0.0
    %348 = vmatpush1.msra.mxu0 0.0
    %349 = vmatprep.subr.mxu0 0.0
    %350 = vmatpush1.msra.mxu0 0.0
    %351 = vmatprep.subr.mxu0 0.0
    %352 = vmatpush1.msra.mxu0 0.0
    %353 = vmatprep.subr.mxu0 0.0
    %354 = vmatpush1.msra.mxu0 0.0
    %355 = vmatprep.subr.mxu0 0.0
    %356 = vmatpush1.msra.mxu0 0.0
    %357 = vmatprep.subr.mxu0 0.0
    %358 = vmatpush1.msra.mxu0 0.0
    %359 = vmatprep.subr.mxu0 0.0
    %360 = vmatpush1.msra.mxu0 0.0
    %361 = vmatprep.subr.mxu0 0.0
    %362 = vmatpush1.msra.mxu0 0.0
    %363 = vmatprep.subr.mxu0 0.0
    %364 = vmatpush1.msra.mxu0 0.0
    %365 = vmatprep.mubr.f32.mxu0 0.0
    %v366 = vand.u32 %v118, 4294901760
    %v367 = vsub.f32 %v118, %v366
    %368 = vmatmul.mubr.f32.gmra.mrb[0].mxu0 %v367
    %v369 = vpop.f32.mrb[0].mxu0
    %v370 = vadd.f32 %v288, %v369
    %v371 = vpop.f32.mrb[0].mxu0
    %372 = vmatprep.mubr.f32.mxu0 0.0
    %v373 = vand.u32 %v121, 4294901760
    %v374 = vsub.f32 %v121, %v373
    %375 = vmatmul.mubr.f32.gmra.mrb[0].mxu0 %v374
    %v376 = vpop.f32.mrb[0].mxu0
    %v377 = vadd.f32 %v294, %v376
    %v378 = vpop.f32.mrb[0].mxu0
    %379 = vdwg.mxu0
    %380 = vmatprep.subr.mxu0 0.0
    %v381 = vand.u32 %v56, 4294901760
    %382 = vmatpush1.msra.mxu0 %v381
    %383 = vmatprep.subr.mxu0 0.0
    %v384 = vand.u32 %v57, 4294901760
    %385 = vmatpush1.msra.mxu0 %v384
    %386 = vmatprep.subr.mxu0 0.0
    %387 = vmatpush1.msra.mxu0 0.0
    %388 = vmatprep.subr.mxu0 0.0
    %389 = vmatpush1.msra.mxu0 0.0
    %390 = vmatprep.subr.mxu0 0.0
    %391 = vmatpush1.msra.mxu0 0.0
    %392 = vmatprep.subr.mxu0 0.0
    %393 = vmatpush1.msra.mxu0 0.0
    %394 = vmatprep.subr.mxu0 0.0
    %395 = vmatpush1.msra.mxu0 0.0
    %396 = vmatprep.subr.mxu0 0.0
    %397 = vmatpush1.msra.mxu0 0.0
    %398 = vmatprep.subr.mxu0 0.0
    %399 = vmatpush1.msra.mxu0 0.0
    %400 = vmatprep.subr.mxu0 0.0
    %401 = vmatpush1.msra.mxu0 0.0
    %402 = vmatprep.subr.mxu0 0.0
    %403 = vmatpush1.msra.mxu0 0.0
    %404 = vmatprep.subr.mxu0 0.0
    %405 = vmatpush1.msra.mxu0 0.0
    %406 = vmatprep.subr.mxu0 0.0
    %407 = vmatpush1.msra.mxu0 0.0
    %408 = vmatprep.subr.mxu0 0.0
    %409 = vmatpush1.msra.mxu0 0.0
    %410 = vmatprep.subr.mxu0 0.0
    %411 = vmatpush1.msra.mxu0 0.0
    %412 = vmatprep.subr.mxu0 0.0
    %413 = vmatpush1.msra.mxu0 0.0
    %414 = vmatprep.subr.mxu0 0.0
    %415 = vmatpush1.msra.mxu0 0.0
    %416 = vmatprep.subr.mxu0 0.0
    %417 = vmatpush1.msra.mxu0 0.0
    %418 = vmatprep.subr.mxu0 0.0
    %419 = vmatpush1.msra.mxu0 0.0
    %420 = vmatprep.subr.mxu0 0.0
    %421 = vmatpush1.msra.mxu0 0.0
    %422 = vmatprep.subr.mxu0 0.0
    %423 = vmatpush1.msra.mxu0 0.0
    %424 = vmatprep.subr.mxu0 0.0
    %425 = vmatpush1.msra.mxu0 0.0
    %426 = vmatprep.subr.mxu0 0.0
    %427 = vmatpush1.msra.mxu0 0.0
    %428 = vmatprep.subr.mxu0 0.0
    %429 = vmatpush1.msra.mxu0 0.0
    %430 = vmatprep.subr.mxu0 0.0
    %431 = vmatpush1.msra.mxu0 0.0
    %432 = vmatprep.subr.mxu0 0.0
    %433 = vmatpush1.msra.mxu0 0.0
    %434 = vmatprep.subr.mxu0 0.0
    %435 = vmatpush1.msra.mxu0 0.0
    %436 = vmatprep.subr.mxu0 0.0
    %437 = vmatpush1.msra.mxu0 0.0
    %438 = vmatprep.subr.mxu0 0.0
    %439 = vmatpush1.msra.mxu0 0.0
    %440 = vmatprep.subr.mxu0 0.0
    %441 = vmatpush1.msra.mxu0 0.0
    %442 = vmatprep.subr.mxu0 0.0
    %443 = vmatpush1.msra.mxu0 0.0
    %444 = vmatprep.subr.mxu0 0.0
    %445 = vmatpush1.msra.mxu0 0.0
    %446 = vmatprep.mubr.f32.mxu0 0.0
    %v447 = vand.u32 %v118, 4294901760
    %v448 = vsub.f32 %v118, %v447
    %v449 = vand.u32 %v448, 4294901760
    %450 = vmatmul.mubr.f32.gmra.mrb[0].mxu0 %v449
    %v451 = vpop.f32.mrb[0].mxu0
    %v452 = vadd.f32 %v370, %v451
    %v453 = vpop.f32.mrb[0].mxu0
    %454 = vmatprep.mubr.f32.mxu0 0.0
    %v455 = vand.u32 %v121, 4294901760
    %v456 = vsub.f32 %v121, %v455
    %v457 = vand.u32 %v456, 4294901760
    %458 = vmatmul.mubr.f32.gmra.mrb[0].mxu0 %v457
    %v459 = vpop.f32.mrb[0].mxu0
    %v460 = vadd.f32 %v377, %v459
    %v461 = vpop.f32.mrb[0].mxu0
    %462 = vdwg.mxu0
    %463 = vmatprep.subr.mxu0 0.0
    %v464 = vand.u32 %v56, 4294901760
    %v465 = vsub.f32 %v56, %v464
    %v466 = vand.u32 %v465, 4294901760
    %467 = vmatpush1.msra.mxu0 %v466
    %468 = vmatprep.subr.mxu0 0.0
    %v469 = vand.u32 %v57, 4294901760
    %v470 = vsub.f32 %v57, %v469
    %v471 = vand.u32 %v470, 4294901760
    %472 = vmatpush1.msra.mxu0 %v471
    %473 = vmatprep.subr.mxu0 0.0
    %474 = vmatpush1.msra.mxu0 0.0
    %475 = vmatprep.subr.mxu0 0.0
    %476 = vmatpush1.msra.mxu0 0.0
    %477 = vmatprep.subr.mxu0 0.0
    %478 = vmatpush1.msra.mxu0 0.0
    %479 = vmatprep.subr.mxu0 0.0
    %480 = vmatpush1.msra.mxu0 0.0
    %481 = vmatprep.subr.mxu0 0.0
    %482 = vmatpush1.msra.mxu0 0.0
    %483 = vmatprep.subr.mxu0 0.0
    %484 = vmatpush1.msra.mxu0 0.0
    %485 = vmatprep.subr.mxu0 0.0
    %486 = vmatpush1.msra.mxu0 0.0
    %487 = vmatprep.subr.mxu0 0.0
    %488 = vmatpush1.msra.mxu0 0.0
    %489 = vmatprep.subr.mxu0 0.0
    %490 = vmatpush1.msra.mxu0 0.0
    %491 = vmatprep.subr.mxu0 0.0
    %492 = vmatpush1.msra.mxu0 0.0
    %493 = vmatprep.subr.mxu0 0.0
    %494 = vmatpush1.msra.mxu0 0.0
    %495 = vmatprep.subr.mxu0 0.0
    %496 = vmatpush1.msra.mxu0 0.0
    %497 = vmatprep.subr.mxu0 0.0
    %498 = vmatpush1.msra.mxu0 0.0
    %499 = vmatprep.subr.mxu0 0.0
    %500 = vmatpush1.msra.mxu0 0.0
    %501 = vmatprep.subr.mxu0 0.0
    %502 = vmatpush1.msra.mxu0 0.0
    %503 = vmatprep.subr.mxu0 0.0
    %504 = vmatpush1.msra.mxu0 0.0
    %505 = vmatprep.subr.mxu0 0.0
    %506 = vmatpush1.msra.mxu0 0.0
    %507 = vmatprep.subr.mxu0 0.0
    %508 = vmatpush1.msra.mxu0 0.0
    %509 = vmatprep.subr.mxu0 0.0
    %510 = vmatpush1.msra.mxu0 0.0
    %511 = vmatprep.subr.mxu0 0.0
    %512 = vmatpush1.msra.mxu0 0.0
    %513 = vmatprep.subr.mxu0 0.0
    %514 = vmatpush1.msra.mxu0 0.0
    %515 = vmatprep.subr.mxu0 0.0
    %516 = vmatpush1.msra.mxu0 0.0
    %517 = vmatprep.subr.mxu0 0.0
    %518 = vmatpush1.msra.mxu0 0.0
    %519 = vmatprep.subr.mxu0 0.0
    %520 = vmatpush1.msra.mxu0 0.0
    %521 = vmatprep.subr.mxu0 0.0
    %522 = vmatpush1.msra.mxu0 0.0
    %523 = vmatprep.subr.mxu0 0.0
    %524 = vmatpush1.msra.mxu0 0.0
    %525 = vmatprep.subr.mxu0 0.0
    %526 = vmatpush1.msra.mxu0 0.0
    %527 = vmatprep.subr.mxu0 0.0
    %528 = vmatpush1.msra.mxu0 0.0
    %529 = vmatprep.subr.mxu0 0.0
    %530 = vmatpush1.msra.mxu0 0.0
    %531 = vmatprep.subr.mxu0 0.0
    %532 = vmatpush1.msra.mxu0 0.0
    %533 = vmatprep.mubr.f32.mxu0 0.0
    %v534 = vand.u32 %v118, 4294901760
    %535 = vmatmul.mubr.f32.gmra.mrb[0].mxu0 %v534
    %v536 = vpop.f32.mrb[0].mxu0
    %v537 = vadd.f32 %v452, %v536
    %v538 = vpop.f32.mrb[0].mxu0
    %539 = vmatprep.mubr.f32.mxu0 0.0
    %v540 = vand.u32 %v121, 4294901760
    %541 = vmatmul.mubr.f32.gmra.mrb[0].mxu0 %v540
    %v542 = vpop.f32.mrb[0].mxu0
    %v543 = vadd.f32 %v460, %v542
    %v544 = vpop.f32.mrb[0].mxu0
    %545 = vdwg.mxu0
    %546 = vmatprep.subr.mxu0 0.0
    %v547 = vand.u32 %v56, 4294901760
    %548 = vmatpush1.msra.mxu0 %v547
    %549 = vmatprep.subr.mxu0 0.0
    %v550 = vand.u32 %v57, 4294901760
    %551 = vmatpush1.msra.mxu0 %v550
    %552 = vmatprep.subr.mxu0 0.0
    %553 = vmatpush1.msra.mxu0 0.0
    %554 = vmatprep.subr.mxu0 0.0
    %555 = vmatpush1.msra.mxu0 0.0
    %556 = vmatprep.subr.mxu0 0.0
    %557 = vmatpush1.msra.mxu0 0.0
    %558 = vmatprep.subr.mxu0 0.0
    %559 = vmatpush1.msra.mxu0 0.0
    %560 = vmatprep.subr.mxu0 0.0
    %561 = vmatpush1.msra.mxu0 0.0
    %562 = vmatprep.subr.mxu0 0.0
    %563 = vmatpush1.msra.mxu0 0.0
    %564 = vmatprep.subr.mxu0 0.0
    %565 = vmatpush1.msra.mxu0 0.0
    %566 = vmatprep.subr.mxu0 0.0
    %567 = vmatpush1.msra.mxu0 0.0
    %568 = vmatprep.subr.mxu0 0.0
    %569 = vmatpush1.msra.mxu0 0.0
    %570 = vmatprep.subr.mxu0 0.0
    %571 = vmatpush1.msra.mxu0 0.0
    %572 = vmatprep.subr.mxu0 0.0
    %573 = vmatpush1.msra.mxu0 0.0
    %574 = vmatprep.subr.mxu0 0.0
    %575 = vmatpush1.msra.mxu0 0.0
    %576 = vmatprep.subr.mxu0 0.0
    %577 = vmatpush1.msra.mxu0 0.0
    %578 = vmatprep.subr.mxu0 0.0
    %579 = vmatpush1.msra.mxu0 0.0
    %580 = vmatprep.subr.mxu0 0.0
    %581 = vmatpush1.msra.mxu0 0.0
    %582 = vmatprep.subr.mxu0 0.0
    %583 = vmatpush1.msra.mxu0 0.0
    %584 = vmatprep.subr.mxu0 0.0
    %585 = vmatpush1.msra.mxu0 0.0
    %586 = vmatprep.subr.mxu0 0.0
    %587 = vmatpush1.msra.mxu0 0.0
    %588 = vmatprep.subr.mxu0 0.0
    %589 = vmatpush1.msra.mxu0 0.0
    %590 = vmatprep.subr.mxu0 0.0
    %591 = vmatpush1.msra.mxu0 0.0
    %592 = vmatprep.subr.mxu0 0.0
    %593 = vmatpush1.msra.mxu0 0.0
    %594 = vmatprep.subr.mxu0 0.0
    %595 = vmatpush1.msra.mxu0 0.0
    %596 = vmatprep.subr.mxu0 0.0
    %597 = vmatpush1.msra.mxu0 0.0
    %598 = vmatprep.subr.mxu0 0.0
    %599 = vmatpush1.msra.mxu0 0.0
    %600 = vmatprep.subr.mxu0 0.0
    %601 = vmatpush1.msra.mxu0 0.0
    %602 = vmatprep.subr.mxu0 0.0
    %603 = vmatpush1.msra.mxu0 0.0
    %604 = vmatprep.subr.mxu0 0.0
    %605 = vmatpush1.msra.mxu0 0.0
    %606 = vmatprep.subr.mxu0 0.0
    %607 = vmatpush1.msra.mxu0 0.0
    %608 = vmatprep.subr.mxu0 0.0
    %609 = vmatpush1.msra.mxu0 0.0
    %610 = vmatprep.subr.mxu0 0.0
    %611 = vmatpush1.msra.mxu0 0.0
    %612 = vmatprep.mubr.f32.mxu0 0.0
    %v613 = vand.u32 %v118, 4294901760
    %614 = vmatmul.mubr.f32.gmra.mrb[0].mxu0 %v613
    %v615 = vpop.f32.mrb[0].mxu0
    %v616 = vadd.f32 %v537, %v615
    %v617 = vpop.f32.mrb[0].mxu0
    %618 = vmatprep.mubr.f32.mxu0 0.0
    %v619 = vand.u32 %v121, 4294901760
    %620 = vmatmul.mubr.f32.gmra.mrb[0].mxu0 %v619
    %v621 = vpop.f32.mrb[0].mxu0
    %v622 = vadd.f32 %v543, %v621
    %v623 = vpop.f32.mrb[0].mxu0
    %624 = vdwg.mxu0
    %v625 = vmul.f32 %v616, 0.04
    %v626 = vmul.f32 %v622, 0.04
    %629 = vrot.lane.b32.xlu0 %v625, 2
    %v630 = vpop.permute.xlu0 %629
    %631 = vrot.lane.b32.xlu0 %v626, 2
    %v632 = vpop.permute.xlu0 %631
    %v635 = vsub.f32 %v99, %v630
    %v636 = vsub.f32 %v100, %v632
    %v637 = vld [vmem:[#allocation3 + $0x2] sm:$0xff]
    %v638 = vld [vmem:[#allocation3 + $0xa] sm:$0xf]
    %v639 = vld [vmem:[#allocation3] sm:$0xff]
    %v640 = vld [vmem:[#allocation3 + $0x8] sm:$0xf]
    %v641 = vld [vmem:[#allocation3 + $0x1] sm:$0xff]
    %v642 = vld [vmem:[#allocation3 + $0x9] sm:$0xf]
    %v643 = vadd.f32 %v639, %v641
    %v644 = vadd.f32 %v640, %v642
    %v645 = vadd.f32 %v643, %v637
    %v646 = vadd.f32 %v644, %v638
    %v647 = vld [vmem:[#allocation3 + $0x3] sm:$0xff]
    %v648 = vld [vmem:[#allocation3 + $0xb] sm:$0xf]
    %v649 = vadd.f32 %v645, %v647
    %v650 = vadd.f32 %v646, %v648
    %v651 = vld [vmem:[#allocation3 + $0x4] sm:$0xff]
    %v652 = vld [vmem:[#allocation3 + $0xc] sm:$0xf]
    %v653 = vadd.f32 %v649, %v651
    %v654 = vadd.f32 %v650, %v652
    %v656 = vsel %vm94, %v653, 0
    %v659 = vsel %vm94, %v654, 0
    %661 = vmatprep.subr.mxu0 0.0
    %v662 = vand.u32 %v56, 4294901760
    %663 = vmatpush1.msra.mxu0 %v662
    %664 = vmatprep.subr.mxu0 0.0
    %v665 = vand.u32 %v57, 4294901760
    %666 = vmatpush1.msra.mxu0 %v665
    %667 = vmatprep.subr.mxu0 0.0
    %668 = vmatpush1.msra.mxu0 0.0
    %669 = vmatprep.subr.mxu0 0.0
    %670 = vmatpush1.msra.mxu0 0.0
    %671 = vmatprep.subr.mxu0 0.0
    %672 = vmatpush1.msra.mxu0 0.0
    %673 = vmatprep.subr.mxu0 0.0
    %674 = vmatpush1.msra.mxu0 0.0
    %675 = vmatprep.subr.mxu0 0.0
    %676 = vmatpush1.msra.mxu0 0.0
    %677 = vmatprep.subr.mxu0 0.0
    %678 = vmatpush1.msra.mxu0 0.0
    %679 = vmatprep.subr.mxu0 0.0
    %680 = vmatpush1.msra.mxu0 0.0
    %681 = vmatprep.subr.mxu0 0.0
    %682 = vmatpush1.msra.mxu0 0.0
    %683 = vmatprep.subr.mxu0 0.0
    %684 = vmatpush1.msra.mxu0 0.0
    %685 = vmatprep.subr.mxu0 0.0
    %686 = vmatpush1.msra.mxu0 0.0
    %687 = vmatprep.subr.mxu0 0.0
    %688 = vmatpush1.msra.mxu0 0.0
    %689 = vmatprep.subr.mxu0 0.0
    %690 = vmatpush1.msra.mxu0 0.0
    %691 = vmatprep.subr.mxu0 0.0
    %692 = vmatpush1.msra.mxu0 0.0
    %693 = vmatprep.subr.mxu0 0.0
    %694 = vmatpush1.msra.mxu0 0.0
    %695 = vmatprep.subr.mxu0 0.0
    %696 = vmatpush1.msra.mxu0 0.0
    %697 = vmatprep.subr.mxu0 0.0
    %698 = vmatpush1.msra.mxu0 0.0
    %699 = vmatprep.subr.mxu0 0.0
    %700 = vmatpush1.msra.mxu0 0.0
    %701 = vmatprep.subr.mxu0 0.0
    %702 = vmatpush1.msra.mxu0 0.0
    %703 = vmatprep.subr.mxu0 0.0
    %704 = vmatpush1.msra.mxu0 0.0
    %705 = vmatprep.subr.mxu0 0.0
    %706 = vmatpush1.msra.mxu0 0.0
    %707 = vmatprep.subr.mxu0 0.0
    %708 = vmatpush1.msra.mxu0 0.0
    %709 = vmatprep.subr.mxu0 0.0
    %710 = vmatpush1.msra.mxu0 0.0
    %711 = vmatprep.subr.mxu0 0.0
    %712 = vmatpush1.msra.mxu0 0.0
    %713 = vmatprep.subr.mxu0 0.0
    %714 = vmatpush1.msra.mxu0 0.0
    %715 = vmatprep.subr.mxu0 0.0
    %716 = vmatpush1.msra.mxu0 0.0
    %717 = vmatprep.subr.mxu0 0.0
    %718 = vmatpush1.msra.mxu0 0.0
    %719 = vmatprep.subr.mxu0 0.0
    %720 = vmatpush1.msra.mxu0 0.0
    %721 = vmatprep.subr.mxu0 0.0
    %722 = vmatpush1.msra.mxu0 0.0
    %723 = vmatprep.subr.mxu0 0.0
    %724 = vmatpush1.msra.mxu0 0.0
    %725 = vmatprep.subr.mxu0 0.0
    %726 = vmatpush1.msra.mxu0 0.0
    %727 = vmatprep.mubr.f32.mxu0 0.0
    %v728 = vand.u32 %v656, 4294901760
    %v729 = vsub.f32 %v656, %v728
    %v730 = vand.u32 %v729, 4294901760
    %v731 = vsub.f32 %v729, %v730
    %v732 = vand.u32 %v731, 4294901760
    %733 = vmatmul.mubr.f32.gmra.mrb[0].mxu0 %v732
    %v734 = vpop.f32.mrb[0].mxu0
    %v735 = vadd.f32 0.0, %v734
    %v736 = vpop.f32.mrb[0].mxu0
    %737 = vmatprep.mubr.f32.mxu0 0.0
    %v738 = vand.u32 %v659, 4294901760
    %v739 = vsub.f32 %v659, %v738
    %v740 = vand.u32 %v739, 4294901760
    %v741 = vsub.f32 %v739, %v740
    %v742 = vand.u32 %v741, 4294901760
    %743 = vmatmul.mubr.f32.gmra.mrb[0].mxu0 %v742
    %v744 = vpop.f32.mrb[0].mxu0
    %v745 = vadd.f32 0.0, %v744
    %v746 = vpop.f32.mrb[0].mxu0
    %747 = vdwg.mxu0
    %748 = vmatprep.subr.mxu0 0.0
    %v749 = vand.u32 %v56, 4294901760
    %v750 = vsub.f32 %v56, %v749
    %v751 = vand.u32 %v750, 4294901760
    %v752 = vsub.f32 %v750, %v751
    %v753 = vand.u32 %v752, 4294901760
    %754 = vmatpush1.msra.mxu0 %v753
    %755 = vmatprep.subr.mxu0 0.0
    %v756 = vand.u32 %v57, 4294901760
    %v757 = vsub.f32 %v57, %v756
    %v758 = vand.u32 %v757, 4294901760
    %v759 = vsub.f32 %v757, %v758
    %v760 = vand.u32 %v759, 4294901760
    %761 = vmatpush1.msra.mxu0 %v760
    %762 = vmatprep.subr.mxu0 0.0
    %763 = vmatpush1.msra.mxu0 0.0
    %764 = vmatprep.subr.mxu0 0.0
    %765 = vmatpush1.msra.mxu0 0.0
    %766 = vmatprep.subr.mxu0 0.0
    %767 = vmatpush1.msra.mxu0 0.0
    %768 = vmatprep.subr.mxu0 0.0
    %769 = vmatpush1.msra.mxu0 0.0
    %770 = vmatprep.subr.mxu0 0.0
    %771 = vmatpush1.msra.mxu0 0.0
    %772 = vmatprep.subr.mxu0 0.0
    %773 = vmatpush1.msra.mxu0 0.0
    %774 = vmatprep.subr.mxu0 0.0
    %775 = vmatpush1.msra.mxu0 0.0
    %776 = vmatprep.subr.mxu0 0.0
    %777 = vmatpush1.msra.mxu0 0.0
    %778 = vmatprep.subr.mxu0 0.0
    %779 = vmatpush1.msra.mxu0 0.0
    %780 = vmatprep.subr.mxu0 0.0
    %781 = vmatpush1.msra.mxu0 0.0
    %782 = vmatprep.subr.mxu0 0.0
    %783 = vmatpush1.msra.mxu0 0.0
    %784 = vmatprep.subr.mxu0 0.0
    %785 = vmatpush1.msra.mxu0 0.0
    %786 = vmatprep.subr.mxu0 0.0
    %787 = vmatpush1.msra.mxu0 0.0
    %788 = vmatprep.subr.mxu0 0.0
    %789 = vmatpush1.msra.mxu0 0.0
    %790 = vmatprep.subr.mxu0 0.0
    %791 = vmatpush1.msra.mxu0 0.0
    %792 = vmatprep.subr.mxu0 0.0
    %793 = vmatpush1.msra.mxu0 0.0
    %794 = vmatprep.subr.mxu0 0.0
    %795 = vmatpush1.msra.mxu0 0.0
    %796 = vmatprep.subr.mxu0 0.0
    %797 = vmatpush1.msra.mxu0 0.0
    %798 = vmatprep.subr.mxu0 0.0
    %799 = vmatpush1.msra.mxu0 0.0
    %800 = vmatprep.subr.mxu0 0.0
    %801 = vmatpush1.msra.mxu0 0.0
    %802 = vmatprep.subr.mxu0 0.0
    %803 = vmatpush1.msra.mxu0 0.0
    %804 = vmatprep.subr.mxu0 0.0
    %805 = vmatpush1.msra.mxu0 0.0
    %806 = vmatprep.subr.mxu0 0.0
    %807 = vmatpush1.msra.mxu0 0.0
    %808 = vmatprep.subr.mxu0 0.0
    %809 = vmatpush1.msra.mxu0 0.0
    %810 = vmatprep.subr.mxu0 0.0
    %811 = vmatpush1.msra.mxu0 0.0
    %812 = vmatprep.subr.mxu0 0.0
    %813 = vmatpush1.msra.mxu0 0.0
    %814 = vmatprep.subr.mxu0 0.0
    %815 = vmatpush1.msra.mxu0 0.0
    %816 = vmatprep.subr.mxu0 0.0
    %817 = vmatpush1.msra.mxu0 0.0
    %818 = vmatprep.subr.mxu0 0.0
    %819 = vmatpush1.msra.mxu0 0.0
    %820 = vmatprep.subr.mxu0 0.0
    %821 = vmatpush1.msra.mxu0 0.0
    %822 = vmatprep.mubr.f32.mxu0 0.0
    %v823 = vand.u32 %v656, 4294901760
    %824 = vmatmul.mubr.f32.gmra.mrb[0].mxu0 %v823
    %v825 = vpop.f32.mrb[0].mxu0
    %v826 = vadd.f32 %v735, %v825
    %v827 = vpop.f32.mrb[0].mxu0
    %828 = vmatprep.mubr.f32.mxu0 0.0
    %v829 = vand.u32 %v659, 4294901760
    %830 = vmatmul.mubr.f32.gmra.mrb[0].mxu0 %v829
    %v831 = vpop.f32.mrb[0].mxu0
    %v832 = vadd.f32 %v745, %v831
    %v833 = vpop.f32.mrb[0].mxu0
    %834 = vdwg.mxu0
    %835 = vmatprep.subr.mxu0 0.0
    %v836 = vand.u32 %v56, 4294901760
    %v837 = vsub.f32 %v56, %v836
    %838 = vmatpush1.msra.mxu0 %v837
    %839 = vmatprep.subr.mxu0 0.0
    %v840 = vand.u32 %v57, 4294901760
    %v841 = vsub.f32 %v57, %v840
    %842 = vmatpush1.msra.mxu0 %v841
    %843 = vmatprep.subr.mxu0 0.0
    %844 = vmatpush1.msra.mxu0 0.0
    %845 = vmatprep.subr.mxu0 0.0
    %846 = vmatpush1.msra.mxu0 0.0
    %847 = vmatprep.subr.mxu0 0.0
    %848 = vmatpush1.msra.mxu0 0.0
    %849 = vmatprep.subr.mxu0 0.0
    %850 = vmatpush1.msra.mxu0 0.0
    %851 = vmatprep.subr.mxu0 0.0
    %852 = vmatpush1.msra.mxu0 0.0
    %853 = vmatprep.subr.mxu0 0.0
    %854 = vmatpush1.msra.mxu0 0.0
    %855 = vmatprep.subr.mxu0 0.0
    %856 = vmatpush1.msra.mxu0 0.0
    %857 = vmatprep.subr.mxu0 0.0
    %858 = vmatpush1.msra.mxu0 0.0
    %859 = vmatprep.subr.mxu0 0.0
    %860 = vmatpush1.msra.mxu0 0.0
    %861 = vmatprep.subr.mxu0 0.0
    %862 = vmatpush1.msra.mxu0 0.0
    %863 = vmatprep.subr.mxu0 0.0
    %864 = vmatpush1.msra.mxu0 0.0
    %865 = vmatprep.subr.mxu0 0.0
    %866 = vmatpush1.msra.mxu0 0.0
    %867 = vmatprep.subr.mxu0 0.0
    %868 = vmatpush1.msra.mxu0 0.0
    %869 = vmatprep.subr.mxu0 0.0
    %870 = vmatpush1.msra.mxu0 0.0
    %871 = vmatprep.subr.mxu0 0.0
    %872 = vmatpush1.msra.mxu0 0.0
    %873 = vmatprep.subr.mxu0 0.0
    %874 = vmatpush1.msra.mxu0 0.0
    %875 = vmatprep.subr.mxu0 0.0
    %876 = vmatpush1.msra.mxu0 0.0
    %877 = vmatprep.subr.mxu0 0.0
    %878 = vmatpush1.msra.mxu0 0.0
    %879 = vmatprep.subr.mxu0 0.0
    %880 = vmatpush1.msra.mxu0 0.0
    %881 = vmatprep.subr.mxu0 0.0
    %882 = vmatpush1.msra.mxu0 0.0
    %883 = vmatprep.subr.mxu0 0.0
    %884 = vmatpush1.msra.mxu0 0.0
    %885 = vmatprep.subr.mxu0 0.0
    %886 = vmatpush1.msra.mxu0 0.0
    %887 = vmatprep.subr.mxu0 0.0
    %888 = vmatpush1.msra.mxu0 0.0
    %889 = vmatprep.subr.mxu0 0.0
    %890 = vmatpush1.msra.mxu0 0.0
    %891 = vmatprep.subr.mxu0 0.0
    %892 = vmatpush1.msra.mxu0 0.0
    %893 = vmatprep.subr.mxu0 0.0
    %894 = vmatpush1.msra.mxu0 0.0
    %895 = vmatprep.subr.mxu0 0.0
    %896 = vmatpush1.msra.mxu0 0.0
    %897 = vmatprep.subr.mxu0 0.0
    %898 = vmatpush1.msra.mxu0 0.0
    %899 = vmatprep.subr.mxu0 0.0
    %900 = vmatpush1.msra.mxu0 0.0
    %901 = vmatprep.subr.mxu0 0.0
    %902 = vmatpush1.msra.mxu0 0.0
    %903 = vmatprep.mubr.f32.mxu0 0.0
    %v904 = vand.u32 %v656, 4294901760
    %v905 = vsub.f32 %v656, %v904
    %906 = vmatmul.mubr.f32.gmra.mrb[0].mxu0 %v905
    %v907 = vpop.f32.mrb[0].mxu0
    %v908 = vadd.f32 %v826, %v907
    %v909 = vpop.f32.mrb[0].mxu0
    %910 = vmatprep.mubr.f32.mxu0 0.0
    %v911 = vand.u32 %v659, 4294901760
    %v912 = vsub.f32 %v659, %v911
    %913 = vmatmul.mubr.f32.gmra.mrb[0].mxu0 %v912
    %v914 = vpop.f32.mrb[0].mxu0
    %v915 = vadd.f32 %v832, %v914
    %v916 = vpop.f32.mrb[0].mxu0
    %917 = vdwg.mxu0
    %918 = vmatprep.subr.mxu0 0.0
    %v919 = vand.u32 %v56, 4294901760
    %920 = vmatpush1.msra.mxu0 %v919
    %921 = vmatprep.subr.mxu0 0.0
    %v922 = vand.u32 %v57, 4294901760
    %923 = vmatpush1.msra.mxu0 %v922
    %924 = vmatprep.subr.mxu0 0.0
    %925 = vmatpush1.msra.mxu0 0.0
    %926 = vmatprep.subr.mxu0 0.0
    %927 = vmatpush1.msra.mxu0 0.0
    %928 = vmatprep.subr.mxu0 0.0
    %929 = vmatpush1.msra.mxu0 0.0
    %930 = vmatprep.subr.mxu0 0.0
    %931 = vmatpush1.msra.mxu0 0.0
    %932 = vmatprep.subr.mxu0 0.0
    %933 = vmatpush1.msra.mxu0 0.0
    %934 = vmatprep.subr.mxu0 0.0
    %935 = vmatpush1.msra.mxu0 0.0
    %936 = vmatprep.subr.mxu0 0.0
    %937 = vmatpush1.msra.mxu0 0.0
    %938 = vmatprep.subr.mxu0 0.0
    %939 = vmatpush1.msra.mxu0 0.0
    %940 = vmatprep.subr.mxu0 0.0
    %941 = vmatpush1.msra.mxu0 0.0
    %942 = vmatprep.subr.mxu0 0.0
    %943 = vmatpush1.msra.mxu0 0.0
    %944 = vmatprep.subr.mxu0 0.0
    %945 = vmatpush1.msra.mxu0 0.0
    %946 = vmatprep.subr.mxu0 0.0
    %947 = vmatpush1.msra.mxu0 0.0
    %948 = vmatprep.subr.mxu0 0.0
    %949 = vmatpush1.msra.mxu0 0.0
    %950 = vmatprep.subr.mxu0 0.0
    %951 = vmatpush1.msra.mxu0 0.0
    %952 = vmatprep.subr.mxu0 0.0
    %953 = vmatpush1.msra.mxu0 0.0
    %954 = vmatprep.subr.mxu0 0.0
    %955 = vmatpush1.msra.mxu0 0.0
    %956 = vmatprep.subr.mxu0 0.0
    %957 = vmatpush1.msra.mxu0 0.0
    %958 = vmatprep.subr.mxu0 0.0
    %959 = vmatpush1.msra.mxu0 0.0
    %960 = vmatprep.subr.mxu0 0.0
    %961 = vmatpush1.msra.mxu0 0.0
    %962 = vmatprep.subr.mxu0 0.0
    %963 = vmatpush1.msra.mxu0 0.0
    %964 = vmatprep.subr.mxu0 0.0
    %965 = vmatpush1.msra.mxu0 0.0
    %966 = vmatprep.subr.mxu0 0.0
    %967 = vmatpush1.msra.mxu0 0.0
    %968 = vmatprep.subr.mxu0 0.0
    %969 = vmatpush1.msra.mxu0 0.0
    %970 = vmatprep.subr.mxu0 0.0
    %971 = vmatpush1.msra.mxu0 0.0
    %972 = vmatprep.subr.mxu0 0.0
    %973 = vmatpush1.msra.mxu0 0.0
    %974 = vmatprep.subr.mxu0 0.0
    %975 = vmatpush1.msra.mxu0 0.0
    %976 = vmatprep.subr.mxu0 0.0
    %977 = vmatpush1.msra.mxu0 0.0
    %978 = vmatprep.subr.mxu0 0.0
    %979 = vmatpush1.msra.mxu0 0.0
    %980 = vmatprep.subr.mxu0 0.0
    %981 = vmatpush1.msra.mxu0 0.0
    %982 = vmatprep.subr.mxu0 0.0
    %983 = vmatpush1.msra.mxu0 0.0
    %984 = vmatprep.mubr.f32.mxu0 0.0
    %v985 = vand.u32 %v656, 4294901760
    %v986 = vsub.f32 %v656, %v985
    %v987 = vand.u32 %v986, 4294901760
    %988 = vmatmul.mubr.f32.gmra.mrb[0].mxu0 %v987
    %v989 = vpop.f32.mrb[0].mxu0
    %v990 = vadd.f32 %v908, %v989
    %v991 = vpop.f32.mrb[0].mxu0
    %992 = vmatprep.mubr.f32.mxu0 0.0
    %v993 = vand.u32 %v659, 4294901760
    %v994 = vsub.f32 %v659, %v993
    %v995 = vand.u32 %v994, 4294901760
    %996 = vmatmul.mubr.f32.gmra.mrb[0].mxu0 %v995
    %v997 = vpop.f32.mrb[0].mxu0
    %v998 = vadd.f32 %v915, %v997
    %v999 = vpop.f32.mrb[0].mxu0
    %1000 = vdwg.mxu0
    %1001 = vmatprep.subr.mxu0 0.0
    %v1002 = vand.u32 %v56, 4294901760
    %v1003 = vsub.f32 %v56, %v1002
    %v1004 = vand.u32 %v1003, 4294901760
    %1005 = vmatpush1.msra.mxu0 %v1004
    %1006 = vmatprep.subr.mxu0 0.0
    %v1007 = vand.u32 %v57, 4294901760
    %v1008 = vsub.f32 %v57, %v1007
    %v1009 = vand.u32 %v1008, 4294901760
    %1010 = vmatpush1.msra.mxu0 %v1009
    %1011 = vmatprep.subr.mxu0 0.0
    %1012 = vmatpush1.msra.mxu0 0.0
    %1013 = vmatprep.subr.mxu0 0.0
    %1014 = vmatpush1.msra.mxu0 0.0
    %1015 = vmatprep.subr.mxu0 0.0
    %1016 = vmatpush1.msra.mxu0 0.0
    %1017 = vmatprep.subr.mxu0 0.0
    %1018 = vmatpush1.msra.mxu0 0.0
    %1019 = vmatprep.subr.mxu0 0.0
    %1020 = vmatpush1.msra.mxu0 0.0
    %1021 = vmatprep.subr.mxu0 0.0
    %1022 = vmatpush1.msra.mxu0 0.0
    %1023 = vmatprep.subr.mxu0 0.0
    %1024 = vmatpush1.msra.mxu0 0.0
    %1025 = vmatprep.subr.mxu0 0.0
    %1026 = vmatpush1.msra.mxu0 0.0
    %1027 = vmatprep.subr.mxu0 0.0
    %1028 = vmatpush1.msra.mxu0 0.0
    %1029 = vmatprep.subr.mxu0 0.0
    %1030 = vmatpush1.msra.mxu0 0.0
    %1031 = vmatprep.subr.mxu0 0.0
    %1032 = vmatpush1.msra.mxu0 0.0
    %1033 = vmatprep.subr.mxu0 0.0
    %1034 = vmatpush1.msra.mxu0 0.0
    %1035 = vmatprep.subr.mxu0 0.0
    %1036 = vmatpush1.msra.mxu0 0.0
    %1037 = vmatprep.subr.mxu0 0.0
    %1038 = vmatpush1.msra.mxu0 0.0
    %1039 = vmatprep.subr.mxu0 0.0
    %1040 = vmatpush1.msra.mxu0 0.0
    %1041 = vmatprep.subr.mxu0 0.0
    %1042 = vmatpush1.msra.mxu0 0.0
    %1043 = vmatprep.subr.mxu0 0.0
    %1044 = vmatpush1.msra.mxu0 0.0
    %1045 = vmatprep.subr.mxu0 0.0
    %1046 = vmatpush1.msra.mxu0 0.0
    %1047 = vmatprep.subr.mxu0 0.0
    %1048 = vmatpush1.msra.mxu0 0.0
    %1049 = vmatprep.subr.mxu0 0.0
    %1050 = vmatpush1.msra.mxu0 0.0
    %1051 = vmatprep.subr.mxu0 0.0
    %1052 = vmatpush1.msra.mxu0 0.0
    %1053 = vmatprep.subr.mxu0 0.0
    %1054 = vmatpush1.msra.mxu0 0.0
    %1055 = vmatprep.subr.mxu0 0.0
    %1056 = vmatpush1.msra.mxu0 0.0
    %1057 = vmatprep.subr.mxu0 0.0
    %1058 = vmatpush1.msra.mxu0 0.0
    %1059 = vmatprep.subr.mxu0 0.0
    %1060 = vmatpush1.msra.mxu0 0.0
    %1061 = vmatprep.subr.mxu0 0.0
    %1062 = vmatpush1.msra.mxu0 0.0
    %1063 = vmatprep.subr.mxu0 0.0
    %1064 = vmatpush1.msra.mxu0 0.0
    %1065 = vmatprep.subr.mxu0 0.0
    %1066 = vmatpush1.msra.mxu0 0.0
    %1067 = vmatprep.subr.mxu0 0.0
    %1068 = vmatpush1.msra.mxu0 0.0
    %1069 = vmatprep.subr.mxu0 0.0
    %1070 = vmatpush1.msra.mxu0 0.0
    %1071 = vmatprep.mubr.f32.mxu0 0.0
    %v1072 = vand.u32 %v656, 4294901760
    %1073 = vmatmul.mubr.f32.gmra.mrb[0].mxu0 %v1072
    %v1074 = vpop.f32.mrb[0].mxu0
    %v1075 = vadd.f32 %v990, %v1074
    %v1076 = vpop.f32.mrb[0].mxu0
    %1077 = vmatprep.mubr.f32.mxu0 0.0
    %v1078 = vand.u32 %v659, 4294901760
    %1079 = vmatmul.mubr.f32.gmra.mrb[0].mxu0 %v1078
    %v1080 = vpop.f32.mrb[0].mxu0
    %v1081 = vadd.f32 %v998, %v1080
    %v1082 = vpop.f32.mrb[0].mxu0
    %1083 = vdwg.mxu0
    %1084 = vmatprep.subr.mxu0 0.0
    %v1085 = vand.u32 %v56, 4294901760
    %1086 = vmatpush1.msra.mxu0 %v1085
    %1087 = vmatprep.subr.mxu0 0.0
    %v1088 = vand.u32 %v57, 4294901760
    %1089 = vmatpush1.msra.mxu0 %v1088
    %1090 = vmatprep.subr.mxu0 0.0
    %1091 = vmatpush1.msra.mxu0 0.0
    %1092 = vmatprep.subr.mxu0 0.0
    %1093 = vmatpush1.msra.mxu0 0.0
    %1094 = vmatprep.subr.mxu0 0.0
    %1095 = vmatpush1.msra.mxu0 0.0
    %1096 = vmatprep.subr.mxu0 0.0
    %1097 = vmatpush1.msra.mxu0 0.0
    %1098 = vmatprep.subr.mxu0 0.0
    %1099 = vmatpush1.msra.mxu0 0.0
    %1100 = vmatprep.subr.mxu0 0.0
    %1101 = vmatpush1.msra.mxu0 0.0
    %1102 = vmatprep.subr.mxu0 0.0
    %1103 = vmatpush1.msra.mxu0 0.0
    %1104 = vmatprep.subr.mxu0 0.0
    %1105 = vmatpush1.msra.mxu0 0.0
    %1106 = vmatprep.subr.mxu0 0.0
    %1107 = vmatpush1.msra.mxu0 0.0
    %1108 = vmatprep.subr.mxu0 0.0
    %1109 = vmatpush1.msra.mxu0 0.0
    %1110 = vmatprep.subr.mxu0 0.0
    %1111 = vmatpush1.msra.mxu0 0.0
    %1112 = vmatprep.subr.mxu0 0.0
    %1113 = vmatpush1.msra.mxu0 0.0
    %1114 = vmatprep.subr.mxu0 0.0
    %1115 = vmatpush1.msra.mxu0 0.0
    %1116 = vmatprep.subr.mxu0 0.0
    %1117 = vmatpush1.msra.mxu0 0.0
    %1118 = vmatprep.subr.mxu0 0.0
    %1119 = vmatpush1.msra.mxu0 0.0
    %1120 = vmatprep.subr.mxu0 0.0
    %1121 = vmatpush1.msra.mxu0 0.0
    %1122 = vmatprep.subr.mxu0 0.0
    %1123 = vmatpush1.msra.mxu0 0.0
    %1124 = vmatprep.subr.mxu0 0.0
    %1125 = vmatpush1.msra.mxu0 0.0
    %1126 = vmatprep.subr.mxu0 0.0
    %1127 = vmatpush1.msra.mxu0 0.0
    %1128 = vmatprep.subr.mxu0 0.0
    %1129 = vmatpush1.msra.mxu0 0.0
    %1130 = vmatprep.subr.mxu0 0.0
    %1131 = vmatpush1.msra.mxu0 0.0
    %1132 = vmatprep.subr.mxu0 0.0
    %1133 = vmatpush1.msra.mxu0 0.0
    %1134 = vmatprep.subr.mxu0 0.0
    %1135 = vmatpush1.msra.mxu0 0.0
    %1136 = vmatprep.subr.mxu0 0.0
    %1137 = vmatpush1.msra.mxu0 0.0
    %1138 = vmatprep.subr.mxu0 0.0
    %1139 = vmatpush1.msra.mxu0 0.0
    %1140 = vmatprep.subr.mxu0 0.0
    %1141 = vmatpush1.msra.mxu0 0.0
    %1142 = vmatprep.subr.mxu0 0.0
    %1143 = vmatpush1.msra.mxu0 0.0
    %1144 = vmatprep.subr.mxu0 0.0
    %1145 = vmatpush1.msra.mxu0 0.0
    %1146 = vmatprep.subr.mxu0 0.0
    %1147 = vmatpush1.msra.mxu0 0.0
    %1148 = vmatprep.subr.mxu0 0.0
    %1149 = vmatpush1.msra.mxu0 0.0
    %1150 = vmatprep.mubr.f32.mxu0 0.0
    %v1151 = vand.u32 %v656, 4294901760
    %1152 = vmatmul.mubr.f32.gmra.mrb[0].mxu0 %v1151
    %v1153 = vpop.f32.mrb[0].mxu0
    %v1154 = vadd.f32 %v1075, %v1153
    %v1155 = vpop.f32.mrb[0].mxu0
    %1156 = vmatprep.mubr.f32.mxu0 0.0
    %v1157 = vand.u32 %v659, 4294901760
    %1158 = vmatmul.mubr.f32.gmra.mrb[0].mxu0 %v1157
    %v1159 = vpop.f32.mrb[0].mxu0
    %v1160 = vadd.f32 %v1081, %v1159
    %v1161 = vpop.f32.mrb[0].mxu0
    %1162 = vdwg.mxu0
    %v1163 = vmul.f32 %v1154, 0.04
    %v1164 = vmul.f32 %v1160, 0.04
    %1167 = vrot.lane.b32.xlu0 %v1163, 2
    %v1168 = vpop.permute.xlu0 %1167
    %1169 = vrot.lane.b32.xlu0 %v1164, 2
    %v1170 = vpop.permute.xlu0 %1169
    %v1173 = vsub.f32 %v637, %v1168
    %v1174 = vsub.f32 %v638, %v1170
    %v1175 = vmul.f32 %v635, %v1173
    %v1176 = vmul.f32 %v636, %v1174
    %1179 = vrot.lane.b32.xlu0 %v1175, 126
    %v1180 = vpop.permute.xlu0 %1179
    %1181 = vrot.lane.b32.xlu0 %v1176, 126
    %v1182 = vpop.permute.xlu0 %1181
    %vm1185 = vcmask 97280
    %1186 = vst.msk [vmem:[#allocation2] sm:$0xff] %vm1185, %v1180
    %vm1187 = vcmask 93184
    %1188 = vst.msk [vmem:[#allocation2 + $0x8] sm:$0xf] %vm1187, %v1182
    %v1189 = vld [vmem:[#allocation2] sm:$0xff]
    %v1190 = vld [vmem:[#allocation2 + $0x1] sm:$0xff]
    %v1191 = vadd.f32 %v1189, %v1190
    %v1192 = vld [vmem:[#allocation2 + $0x2] sm:$0xff]
    %v1193 = vadd.f32 %v1191, %v1192
    %v1194 = vld [vmem:[#allocation2 + $0x3] sm:$0xff]
    %v1195 = vadd.f32 %v1193, %v1194
    %v1196 = vld [vmem:[#allocation2 + $0x4] sm:$0xff]
    %v1197 = vadd.f32 %v1195, %v1196
    %v1199 = vsel %vm1185, %v1197, 0
    %vm1201 = vcmask 1043456
    %v1203 = vsel %vm1201, %v57, 0
    %1205 = vmatprep.subr.mxu0 0.0
    %v1206 = vand.u32 %v56, 4294901760
    %1207 = vmatpush1.msra.mxu0 %v1206
    %1208 = vmatprep.subr.mxu0 0.0
    %v1209 = vand.u32 %v1203, 4294901760
    %1210 = vmatpush1.msra.mxu0 %v1209
    %1211 = vmatprep.subr.mxu0 0.0
    %1212 = vmatpush1.msra.mxu0 0.0
    %1213 = vmatprep.subr.mxu0 0.0
    %1214 = vmatpush1.msra.mxu0 0.0
    %1215 = vmatprep.subr.mxu0 0.0
    %1216 = vmatpush1.msra.mxu0 0.0
    %1217 = vmatprep.subr.mxu0 0.0
    %1218 = vmatpush1.msra.mxu0 0.0
    %1219 = vmatprep.subr.mxu0 0.0
    %1220 = vmatpush1.msra.mxu0 0.0
    %1221 = vmatprep.subr.mxu0 0.0
    %1222 = vmatpush1.msra.mxu0 0.0
    %1223 = vmatprep.subr.mxu0 0.0
    %1224 = vmatpush1.msra.mxu0 0.0
    %1225 = vmatprep.subr.mxu0 0.0
    %1226 = vmatpush1.msra.mxu0 0.0
    %1227 = vmatprep.subr.mxu0 0.0
    %1228 = vmatpush1.msra.mxu0 0.0
    %1229 = vmatprep.subr.mxu0 0.0
    %1230 = vmatpush1.msra.mxu0 0.0
    %1231 = vmatprep.subr.mxu0 0.0
    %1232 = vmatpush1.msra.mxu0 0.0
    %1233 = vmatprep.subr.mxu0 0.0
    %1234 = vmatpush1.msra.mxu0 0.0
    %1235 = vmatprep.subr.mxu0 0.0
    %1236 = vmatpush1.msra.mxu0 0.0
    %1237 = vmatprep.subr.mxu0 0.0
    %1238 = vmatpush1.msra.mxu0 0.0
    %1239 = vmatprep.subr.mxu0 0.0
    %1240 = vmatpush1.msra.mxu0 0.0
    %1241 = vmatprep.subr.mxu0 0.0
    %1242 = vmatpush1.msra.mxu0 0.0
    %1243 = vmatprep.subr.mxu0 0.0
    %1244 = vmatpush1.msra.mxu0 0.0
    %1245 = vmatprep.subr.mxu0 0.0
    %1246 = vmatpush1.msra.mxu0 0.0
    %1247 = vmatprep.subr.mxu0 0.0
    %1248 = vmatpush1.msra.mxu0 0.0
    %1249 = vmatprep.subr.mxu0 0.0
    %1250 = vmatpush1.msra.mxu0 0.0
    %1251 = vmatprep.subr.mxu0 0.0
    %1252 = vmatpush1.msra.mxu0 0.0
    %1253 = vmatprep.subr.mxu0 0.0
    %1254 = vmatpush1.msra.mxu0 0.0
    %1255 = vmatprep.subr.mxu0 0.0
    %1256 = vmatpush1.msra.mxu0 0.0
    %1257 = vmatprep.subr.mxu0 0.0
    %1258 = vmatpush1.msra.mxu0 0.0
    %1259 = vmatprep.subr.mxu0 0.0
    %1260 = vmatpush1.msra.mxu0 0.0
    %1261 = vmatprep.subr.mxu0 0.0
    %1262 = vmatpush1.msra.mxu0 0.0
    %1263 = vmatprep.subr.mxu0 0.0
    %1264 = vmatpush1.msra.mxu0 0.0
    %1265 = vmatprep.subr.mxu0 0.0
    %1266 = vmatpush1.msra.mxu0 0.0
    %1267 = vmatprep.subr.mxu0 0.0
    %1268 = vmatpush1.msra.mxu0 0.0
    %1269 = vmatprep.subr.mxu0 0.0
    %1270 = vmatpush1.msra.mxu0 0.0
    %1271 = vmatprep.mubr.f32.mxu0 0.0
    %v1272 = vand.u32 %v1199, 4294901760
    %v1273 = vsub.f32 %v1199, %v1272
    %v1274 = vand.u32 %v1273, 4294901760
    %v1275 = vsub.f32 %v1273, %v1274
    %v1276 = vand.u32 %v1275, 4294901760
    %1277 = vmatmul.mubr.f32.gmra.mrb[0].mxu0 %v1276
    %v1278 = vpop.f32.mrb[0].mxu0
    %v1279 = vadd.f32 0.0, %v1278
    %v1280 = vpop.f32.mrb[0].mxu0
    %1281 = vdwg.mxu0
    %1282 = vmatprep.subr.mxu0 0.0
    %v1283 = vand.u32 %v56, 4294901760
    %v1284 = vsub.f32 %v56, %v1283
    %v1285 = vand.u32 %v1284, 4294901760
    %v1286 = vsub.f32 %v1284, %v1285
    %v1287 = vand.u32 %v1286, 4294901760
    %1288 = vmatpush1.msra.mxu0 %v1287
    %1289 = vmatprep.subr.mxu0 0.0
    %v1290 = vand.u32 %v1203, 4294901760
    %v1291 = vsub.f32 %v1203, %v1290
    %v1292 = vand.u32 %v1291, 4294901760
    %v1293 = vsub.f32 %v1291, %v1292
    %v1294 = vand.u32 %v1293, 4294901760
    %1295 = vmatpush1.msra.mxu0 %v1294
    %1296 = vmatprep.subr.mxu0 0.0
    %1297 = vmatpush1.msra.mxu0 0.0
    %1298 = vmatprep.subr.mxu0 0.0
    %1299 = vmatpush1.msra.mxu0 0.0
    %1300 = vmatprep.subr.mxu0 0.0
    %1301 = vmatpush1.msra.mxu0 0.0
    %1302 = vmatprep.subr.mxu0 0.0
    %1303 = vmatpush1.msra.mxu0 0.0
    %1304 = vmatprep.subr.mxu0 0.0
    %1305 = vmatpush1.msra.mxu0 0.0
    %1306 = vmatprep.subr.mxu0 0.0
    %1307 = vmatpush1.msra.mxu0 0.0
    %1308 = vmatprep.subr.mxu0 0.0
    %1309 = vmatpush1.msra.mxu0 0.0
    %1310 = vmatprep.subr.mxu0 0.0
    %1311 = vmatpush1.msra.mxu0 0.0
    %1312 = vmatprep.subr.mxu0 0.0
    %1313 = vmatpush1.msra.mxu0 0.0
    %1314 = vmatprep.subr.mxu0 0.0
    %1315 = vmatpush1.msra.mxu0 0.0
    %1316 = vmatprep.subr.mxu0 0.0
    %1317 = vmatpush1.msra.mxu0 0.0
    %1318 = vmatprep.subr.mxu0 0.0
    %1319 = vmatpush1.msra.mxu0 0.0
    %1320 = vmatprep.subr.mxu0 0.0
    %1321 = vmatpush1.msra.mxu0 0.0
    %1322 = vmatprep.subr.mxu0 0.0
    %1323 = vmatpush1.msra.mxu0 0.0
    %1324 = vmatprep.subr.mxu0 0.0
    %1325 = vmatpush1.msra.mxu0 0.0
    %1326 = vmatprep.subr.mxu0 0.0
    %1327 = vmatpush1.msra.mxu0 0.0
    %1328 = vmatprep.subr.mxu0 0.0
    %1329 = vmatpush1.msra.mxu0 0.0
    %1330 = vmatprep.subr.mxu0 0.0
    %1331 = vmatpush1.msra.mxu0 0.0
    %1332 = vmatprep.subr.mxu0 0.0
    %1333 = vmatpush1.msra.mxu0 0.0
    %1334 = vmatprep.subr.mxu0 0.0
    %1335 = vmatpush1.msra.mxu0 0.0
    %1336 = vmatprep.subr.mxu0 0.0
    %1337 = vmatpush1.msra.mxu0 0.0
    %1338 = vmatprep.subr.mxu0 0.0
    %1339 = vmatpush1.msra.mxu0 0.0
    %1340 = vmatprep.subr.mxu0 0.0
    %1341 = vmatpush1.msra.mxu0 0.0
    %1342 = vmatprep.subr.mxu0 0.0
    %1343 = vmatpush1.msra.mxu0 0.0
    %1344 = vmatprep.subr.mxu0 0.0
    %1345 = vmatpush1.msra.mxu0 0.0
    %1346 = vmatprep.subr.mxu0 0.0
    %1347 = vmatpush1.msra.mxu0 0.0
    %1348 = vmatprep.subr.mxu0 0.0
    %1349 = vmatpush1.msra.mxu0 0.0
    %1350 = vmatprep.subr.mxu0 0.0
    %1351 = vmatpush1.msra.mxu0 0.0
    %1352 = vmatprep.subr.mxu0 0.0
    %1353 = vmatpush1.msra.mxu0 0.0
    %1354 = vmatprep.subr.mxu0 0.0
    %1355 = vmatpush1.msra.mxu0 0.0
    %1356 = vmatprep.mubr.f32.mxu0 0.0
    %v1357 = vand.u32 %v1199, 4294901760
    %1358 = vmatmul.mubr.f32.gmra.mrb[0].mxu0 %v1357
    %v1359 = vpop.f32.mrb[0].mxu0
    %v1360 = vadd.f32 %v1279, %v1359
    %v1361 = vpop.f32.mrb[0].mxu0
    %1362 = vdwg.mxu0
    %1363 = vmatprep.subr.mxu0 0.0
    %v1364 = vand.u32 %v56, 4294901760
    %v1365 = vsub.f32 %v56, %v1364
    %1366 = vmatpush1.msra.mxu0 %v1365
    %1367 = vmatprep.subr.mxu0 0.0
    %v1368 = vand.u32 %v1203, 4294901760
    %v1369 = vsub.f32 %v1203, %v1368
    %1370 = vmatpush1.msra.mxu0 %v1369
    %1371 = vmatprep.subr.mxu0 0.0
    %1372 = vmatpush1.msra.mxu0 0.0
    %1373 = vmatprep.subr.mxu0 0.0
    %1374 = vmatpush1.msra.mxu0 0.0
    %1375 = vmatprep.subr.mxu0 0.0
    %1376 = vmatpush1.msra.mxu0 0.0
    %1377 = vmatprep.subr.mxu0 0.0
    %1378 = vmatpush1.msra.mxu0 0.0
    %1379 = vmatprep.subr.mxu0 0.0
    %1380 = vmatpush1.msra.mxu0 0.0
    %1381 = vmatprep.subr.mxu0 0.0
    %1382 = vmatpush1.msra.mxu0 0.0
    %1383 = vmatprep.subr.mxu0 0.0
    %1384 = vmatpush1.msra.mxu0 0.0
    %1385 = vmatprep.subr.mxu0 0.0
    %1386 = vmatpush1.msra.mxu0 0.0
    %1387 = vmatprep.subr.mxu0 0.0
    %1388 = vmatpush1.msra.mxu0 0.0
    %1389 = vmatprep.subr.mxu0 0.0
    %1390 = vmatpush1.msra.mxu0 0.0
    %1391 = vmatprep.subr.mxu0 0.0
    %1392 = vmatpush1.msra.mxu0 0.0
    %1393 = vmatprep.subr.mxu0 0.0
    %1394 = vmatpush1.msra.mxu0 0.0
    %1395 = vmatprep.subr.mxu0 0.0
    %1396 = vmatpush1.msra.mxu0 0.0
    %1397 = vmatprep.subr.mxu0 0.0
    %1398 = vmatpush1.msra.mxu0 0.0
    %1399 = vmatprep.subr.mxu0 0.0
    %1400 = vmatpush1.msra.mxu0 0.0
    %1401 = vmatprep.subr.mxu0 0.0
    %1402 = vmatpush1.msra.mxu0 0.0
    %1403 = vmatprep.subr.mxu0 0.0
    %1404 = vmatpush1.msra.mxu0 0.0
    %1405 = vmatprep.subr.mxu0 0.0
    %1406 = vmatpush1.msra.mxu0 0.0
    %1407 = vmatprep.subr.mxu0 0.0
    %1408 = vmatpush1.msra.mxu0 0.0
    %1409 = vmatprep.subr.mxu0 0.0
    %1410 = vmatpush1.msra.mxu0 0.0
    %1411 = vmatprep.subr.mxu0 0.0
    %1412 = vmatpush1.msra.mxu0 0.0
    %1413 = vmatprep.subr.mxu0 0.0
    %1414 = vmatpush1.msra.mxu0 0.0
    %1415 = vmatprep.subr.mxu0 0.0
    %1416 = vmatpush1.msra.mxu0 0.0
    %1417 = vmatprep.subr.mxu0 0.0
    %1418 = vmatpush1.msra.mxu0 0.0
    %1419 = vmatprep.subr.mxu0 0.0
    %1420 = vmatpush1.msra.mxu0 0.0
    %1421 = vmatprep.subr.mxu0 0.0
    %1422 = vmatpush1.msra.mxu0 0.0
    %1423 = vmatprep.subr.mxu0 0.0
    %1424 = vmatpush1.msra.mxu0 0.0
    %1425 = vmatprep.subr.mxu0 0.0
    %1426 = vmatpush1.msra.mxu0 0.0
    %1427 = vmatprep.subr.mxu0 0.0
    %1428 = vmatpush1.msra.mxu0 0.0
    %1429 = vmatprep.subr.mxu0 0.0
    %1430 = vmatpush1.msra.mxu0 0.0
    %1431 = vmatprep.mubr.f32.mxu0 0.0
    %v1432 = vand.u32 %v1199, 4294901760
    %v1433 = vsub.f32 %v1199, %v1432
    %1434 = vmatmul.mubr.f32.gmra.mrb[0].mxu0 %v1433
    %v1435 = vpop.f32.mrb[0].mxu0
    %v1436 = vadd.f32 %v1360, %v1435
    %v1437 = vpop.f32.mrb[0].mxu0
    %1438 = vdwg.mxu0
    %1439 = vmatprep.subr.mxu0 0.0
    %v1440 = vand.u32 %v56, 4294901760
    %1441 = vmatpush1.msra.mxu0 %v1440
    %1442 = vmatprep.subr.mxu0 0.0
    %v1443 = vand.u32 %v1203, 4294901760
    %1444 = vmatpush1.msra.mxu0 %v1443
    %1445 = vmatprep.subr.mxu0 0.0
    %1446 = vmatpush1.msra.mxu0 0.0
    %1447 = vmatprep.subr.mxu0 0.0
    %1448 = vmatpush1.msra.mxu0 0.0
    %1449 = vmatprep.subr.mxu0 0.0
    %1450 = vmatpush1.msra.mxu0 0.0
    %1451 = vmatprep.subr.mxu0 0.0
    %1452 = vmatpush1.msra.mxu0 0.0
    %1453 = vmatprep.subr.mxu0 0.0
    %1454 = vmatpush1.msra.mxu0 0.0
    %1455 = vmatprep.subr.mxu0 0.0
    %1456 = vmatpush1.msra.mxu0 0.0
    %1457 = vmatprep.subr.mxu0 0.0
    %1458 = vmatpush1.msra.mxu0 0.0
    %1459 = vmatprep.subr.mxu0 0.0
    %1460 = vmatpush1.msra.mxu0 0.0
    %1461 = vmatprep.subr.mxu0 0.0
    %1462 = vmatpush1.msra.mxu0 0.0
    %1463 = vmatprep.subr.mxu0 0.0
    %1464 = vmatpush1.msra.mxu0 0.0
    %1465 = vmatprep.subr.mxu0 0.0
    %1466 = vmatpush1.msra.mxu0 0.0
    %1467 = vmatprep.subr.mxu0 0.0
    %1468 = vmatpush1.msra.mxu0 0.0
    %1469 = vmatprep.subr.mxu0 0.0
    %1470 = vmatpush1.msra.mxu0 0.0
    %1471 = vmatprep.subr.mxu0 0.0
    %1472 = vmatpush1.msra.mxu0 0.0
    %1473 = vmatprep.subr.mxu0 0.0
    %1474 = vmatpush1.msra.mxu0 0.0
    %1475 = vmatprep.subr.mxu0 0.0
    %1476 = vmatpush1.msra.mxu0 0.0
    %1477 = vmatprep.subr.mxu0 0.0
    %1478 = vmatpush1.msra.mxu0 0.0
    %1479 = vmatprep.subr.mxu0 0.0
    %1480 = vmatpush1.msra.mxu0 0.0
    %1481 = vmatprep.subr.mxu0 0.0
    %1482 = vmatpush1.msra.mxu0 0.0
    %1483 = vmatprep.subr.mxu0 0.0
    %1484 = vmatpush1.msra.mxu0 0.0
    %1485 = vmatprep.subr.mxu0 0.0
    %1486 = vmatpush1.msra.mxu0 0.0
    %1487 = vmatprep.subr.mxu0 0.0
    %1488 = vmatpush1.msra.mxu0 0.0
    %1489 = vmatprep.subr.mxu0 0.0
    %1490 = vmatpush1.msra.mxu0 0.0
    %1491 = vmatprep.subr.mxu0 0.0
    %1492 = vmatpush1.msra.mxu0 0.0
    %1493 = vmatprep.subr.mxu0 0.0
    %1494 = vmatpush1.msra.mxu0 0.0
    %1495 = vmatprep.subr.mxu0 0.0
    %1496 = vmatpush1.msra.mxu0 0.0
    %1497 = vmatprep.subr.mxu0 0.0
    %1498 = vmatpush1.msra.mxu0 0.0
    %1499 = vmatprep.subr.mxu0 0.0
    %1500 = vmatpush1.msra.mxu0 0.0
    %1501 = vmatprep.subr.mxu0 0.0
    %1502 = vmatpush1.msra.mxu0 0.0
    %1503 = vmatprep.subr.mxu0 0.0
    %1504 = vmatpush1.msra.mxu0 0.0
    %1505 = vmatprep.mubr.f32.mxu0 0.0
    %v1506 = vand.u32 %v1199, 4294901760
    %v1507 = vsub.f32 %v1199, %v1506
    %v1508 = vand.u32 %v1507, 4294901760
    %1509 = vmatmul.mubr.f32.gmra.mrb[0].mxu0 %v1508
    %v1510 = vpop.f32.mrb[0].mxu0
    %v1511 = vadd.f32 %v1436, %v1510
    %v1512 = vpop.f32.mrb[0].mxu0
    %1513 = vdwg.mxu0
    %1514 = vmatprep.subr.mxu0 0.0
    %v1515 = vand.u32 %v56, 4294901760
    %v1516 = vsub.f32 %v56, %v1515
    %v1517 = vand.u32 %v1516, 4294901760
    %1518 = vmatpush1.msra.mxu0 %v1517
    %1519 = vmatprep.subr.mxu0 0.0
    %v1520 = vand.u32 %v1203, 4294901760
    %v1521 = vsub.f32 %v1203, %v1520
    %v1522 = vand.u32 %v1521, 4294901760
    %1523 = vmatpush1.msra.mxu0 %v1522
    %1524 = vmatprep.subr.mxu0 0.0
    %1525 = vmatpush1.msra.mxu0 0.0
    %1526 = vmatprep.subr.mxu0 0.0
    %1527 = vmatpush1.msra.mxu0 0.0
    %1528 = vmatprep.subr.mxu0 0.0
    %1529 = vmatpush1.msra.mxu0 0.0
    %1530 = vmatprep.subr.mxu0 0.0
    %1531 = vmatpush1.msra.mxu0 0.0
    %1532 = vmatprep.subr.mxu0 0.0
    %1533 = vmatpush1.msra.mxu0 0.0
    %1534 = vmatprep.subr.mxu0 0.0
    %1535 = vmatpush1.msra.mxu0 0.0
    %1536 = vmatprep.subr.mxu0 0.0
    %1537 = vmatpush1.msra.mxu0 0.0
    %1538 = vmatprep.subr.mxu0 0.0
    %1539 = vmatpush1.msra.mxu0 0.0
    %1540 = vmatprep.subr.mxu0 0.0
    %1541 = vmatpush1.msra.mxu0 0.0
    %1542 = vmatprep.subr.mxu0 0.0
    %1543 = vmatpush1.msra.mxu0 0.0
    %1544 = vmatprep.subr.mxu0 0.0
    %1545 = vmatpush1.msra.mxu0 0.0
    %1546 = vmatprep.subr.mxu0 0.0
    %1547 = vmatpush1.msra.mxu0 0.0
    %1548 = vmatprep.subr.mxu0 0.0
    %1549 = vmatpush1.msra.mxu0 0.0
    %1550 = vmatprep.subr.mxu0 0.0
    %1551 = vmatpush1.msra.mxu0 0.0
    %1552 = vmatprep.subr.mxu0 0.0
    %1553 = vmatpush1.msra.mxu0 0.0
    %1554 = vmatprep.subr.mxu0 0.0
    %1555 = vmatpush1.msra.mxu0 0.0
    %1556 = vmatprep.subr.mxu0 0.0
    %1557 = vmatpush1.msra.mxu0 0.0
    %1558 = vmatprep.subr.mxu0 0.0
    %1559 = vmatpush1.msra.mxu0 0.0
    %1560 = vmatprep.subr.mxu0 0.0
    %1561 = vmatpush1.msra.mxu0 0.0
    %1562 = vmatprep.subr.mxu0 0.0
    %1563 = vmatpush1.msra.mxu0 0.0
    %1564 = vmatprep.subr.mxu0 0.0
    %1565 = vmatpush1.msra.mxu0 0.0
    %1566 = vmatprep.subr.mxu0 0.0
    %1567 = vmatpush1.msra.mxu0 0.0
    %1568 = vmatprep.subr.mxu0 0.0
    %1569 = vmatpush1.msra.mxu0 0.0
    %1570 = vmatprep.subr.mxu0 0.0
    %1571 = vmatpush1.msra.mxu0 0.0
    %1572 = vmatprep.subr.mxu0 0.0
    %1573 = vmatpush1.msra.mxu0 0.0
    %1574 = vmatprep.subr.mxu0 0.0
    %1575 = vmatpush1.msra.mxu0 0.0
    %1576 = vmatprep.subr.mxu0 0.0
    %1577 = vmatpush1.msra.mxu0 0.0
    %1578 = vmatprep.subr.mxu0 0.0
    %1579 = vmatpush1.msra.mxu0 0.0
    %1580 = vmatprep.subr.mxu0 0.0
    %1581 = vmatpush1.msra.mxu0 0.0
    %1582 = vmatprep.subr.mxu0 0.0
    %1583 = vmatpush1.msra.mxu0 0.0
    %1584 = vmatprep.mubr.f32.mxu0 0.0
    %v1585 = vand.u32 %v1199, 4294901760
    %1586 = vmatmul.mubr.f32.gmra.mrb[0].mxu0 %v1585
    %v1587 = vpop.f32.mrb[0].mxu0
    %v1588 = vadd.f32 %v1511, %v1587
    %v1589 = vpop.f32.mrb[0].mxu0
    %1590 = vdwg.mxu0
    %1591 = vmatprep.subr.mxu0 0.0
    %v1592 = vand.u32 %v56, 4294901760
    %1593 = vmatpush1.msra.mxu0 %v1592
    %1594 = vmatprep.subr.mxu0 0.0
    %v1595 = vand.u32 %v1203, 4294901760
    %1596 = vmatpush1.msra.mxu0 %v1595
    %1597 = vmatprep.subr.mxu0 0.0
    %1598 = vmatpush1.msra.mxu0 0.0
    %1599 = vmatprep.subr.mxu0 0.0
    %1600 = vmatpush1.msra.mxu0 0.0
    %1601 = vmatprep.subr.mxu0 0.0
    %1602 = vmatpush1.msra.mxu0 0.0
    %1603 = vmatprep.subr.mxu0 0.0
    %1604 = vmatpush1.msra.mxu0 0.0
    %1605 = vmatprep.subr.mxu0 0.0
    %1606 = vmatpush1.msra.mxu0 0.0
    %1607 = vmatprep.subr.mxu0 0.0
    %1608 = vmatpush1.msra.mxu0 0.0
    %1609 = vmatprep.subr.mxu0 0.0
    %1610 = vmatpush1.msra.mxu0 0.0
    %1611 = vmatprep.subr.mxu0 0.0
    %1612 = vmatpush1.msra.mxu0 0.0
    %1613 = vmatprep.subr.mxu0 0.0
    %1614 = vmatpush1.msra.mxu0 0.0
    %1615 = vmatprep.subr.mxu0 0.0
    %1616 = vmatpush1.msra.mxu0 0.0
    %1617 = vmatprep.subr.mxu0 0.0
    %1618 = vmatpush1.msra.mxu0 0.0
    %1619 = vmatprep.subr.mxu0 0.0
    %1620 = vmatpush1.msra.mxu0 0.0
    %1621 = vmatprep.subr.mxu0 0.0
    %1622 = vmatpush1.msra.mxu0 0.0
    %1623 = vmatprep.subr.mxu0 0.0
    %1624 = vmatpush1.msra.mxu0 0.0
    %1625 = vmatprep.subr.mxu0 0.0
    %1626 = vmatpush1.msra.mxu0 0.0
    %1627 = vmatprep.subr.mxu0 0.0
    %1628 = vmatpush1.msra.mxu0 0.0
    %1629 = vmatprep.subr.mxu0 0.0
    %1630 = vmatpush1.msra.mxu0 0.0
    %1631 = vmatprep.subr.mxu0 0.0
    %1632 = vmatpush1.msra.mxu0 0.0
    %1633 = vmatprep.subr.mxu0 0.0
    %1634 = vmatpush1.msra.mxu0 0.0
    %1635 = vmatprep.subr.mxu0 0.0
    %1636 = vmatpush1.msra.mxu0 0.0
    %1637 = vmatprep.subr.mxu0 0.0
    %1638 = vmatpush1.msra.mxu0 0.0
    %1639 = vmatprep.subr.mxu0 0.0
    %1640 = vmatpush1.msra.mxu0 0.0
    %1641 = vmatprep.subr.mxu0 0.0
    %1642 = vmatpush1.msra.mxu0 0.0
    %1643 = vmatprep.subr.mxu0 0.0
    %1644 = vmatpush1.msra.mxu0 0.0
    %1645 = vmatprep.subr.mxu0 0.0
    %1646 = vmatpush1.msra.mxu0 0.0
    %1647 = vmatprep.subr.mxu0 0.0
    %1648 = vmatpush1.msra.mxu0 0.0
    %1649 = vmatprep.subr.mxu0 0.0
    %1650 = vmatpush1.msra.mxu0 0.0
    %1651 = vmatprep.subr.mxu0 0.0
    %1652 = vmatpush1.msra.mxu0 0.0
    %1653 = vmatprep.subr.mxu0 0.0
    %1654 = vmatpush1.msra.mxu0 0.0
    %1655 = vmatprep.subr.mxu0 0.0
    %1656 = vmatpush1.msra.mxu0 0.0
    %1657 = vmatprep.mubr.f32.mxu0 0.0
    %v1658 = vand.u32 %v1199, 4294901760
    %1659 = vmatmul.mubr.f32.gmra.mrb[0].mxu0 %v1658
    %v1660 = vpop.f32.mrb[0].mxu0
    %v1661 = vadd.f32 %v1588, %v1660
    %v1662 = vpop.f32.mrb[0].mxu0
    %1663 = vdwg.mxu0
    %v1664 = vmul.f32 %v1661, 0.04
    %v1665 = vmul.f32 %v1664, %v1664
    %vm1666 = vcmask 64512
    %v1667 = vsel %vm1666, %v1665, 0.0
    %1668 = vadd.xlane.f32.xlu0 %v1667
    %v1669 = vpop.xlane.xlu0 %1668
    %v1670 = vrot.slane %v1669, 4
    %v1671 = vadd.f32 %v1669, %v1670
    %v1672 = vrot.slane %v1671, 2
    %v1673 = vadd.f32 %v1671, %v1672
    %v1674 = vrot.slane %v1673, 1
    %v1675 = vadd.f32 %v1673, %v1674
    %s1676 = vtos %v1675
    %s1677 = sadd.f32 %s1676, 0.0
    %v1678 = vmul.f32 %v635, %v635
    %v1679 = vmul.f32 %v636, %v636
    %1682 = vrot.lane.b32.xlu0 %v1678, 126
    %v1683 = vpop.permute.xlu0 %1682
    %1684 = vrot.lane.b32.xlu0 %v1679, 126
    %v1685 = vpop.permute.xlu0 %1684
    %1688 = vst.msk [vmem:[#allocation2] sm:$0xff] %vm1185, %v1683
    %1689 = vst.msk [vmem:[#allocation2 + $0x8] sm:$0xf] %vm1187, %v1685
    %v1690 = vld [vmem:[#allocation2] sm:$0xff]
    %v1691 = vld [vmem:[#allocation2 + $0x1] sm:$0xff]
    %v1692 = vadd.f32 %v1690, %v1691
    %v1693 = vld [vmem:[#allocation2 + $0x2] sm:$0xff]
    %v1694 = vadd.f32 %v1692, %v1693
    %v1695 = vld [vmem:[#allocation2 + $0x3] sm:$0xff]
    %v1696 = vadd.f32 %v1694, %v1695
    %v1697 = vld [vmem:[#allocation2 + $0x4] sm:$0xff]
    %v1698 = vadd.f32 %v1696, %v1697
    %v1700 = vsel %vm1185, %v1698, 0
    %1702 = vmatprep.subr.mxu0 0.0
    %v1703 = vand.u32 %v56, 4294901760
    %1704 = vmatpush1.msra.mxu0 %v1703
    %1705 = vmatprep.subr.mxu0 0.0
    %v1706 = vand.u32 %v1203, 4294901760
    %1707 = vmatpush1.msra.mxu0 %v1706
    %1708 = vmatprep.subr.mxu0 0.0
    %1709 = vmatpush1.msra.mxu0 0.0
    %1710 = vmatprep.subr.mxu0 0.0
    %1711 = vmatpush1.msra.mxu0 0.0
    %1712 = vmatprep.subr.mxu0 0.0
    %1713 = vmatpush1.msra.mxu0 0.0
    %1714 = vmatprep.subr.mxu0 0.0
    %1715 = vmatpush1.msra.mxu0 0.0
    %1716 = vmatprep.subr.mxu0 0.0
    %1717 = vmatpush1.msra.mxu0 0.0
    %1718 = vmatprep.subr.mxu0 0.0
    %1719 = vmatpush1.msra.mxu0 0.0
    %1720 = vmatprep.subr.mxu0 0.0
    %1721 = vmatpush1.msra.mxu0 0.0
    %1722 = vmatprep.subr.mxu0 0.0
    %1723 = vmatpush1.msra.mxu0 0.0
    %1724 = vmatprep.subr.mxu0 0.0
    %1725 = vmatpush1.msra.mxu0 0.0
    %1726 = vmatprep.subr.mxu0 0.0
    %1727 = vmatpush1.msra.mxu0 0.0
    %1728 = vmatprep.subr.mxu0 0.0
    %1729 = vmatpush1.msra.mxu0 0.0
    %1730 = vmatprep.subr.mxu0 0.0
    %1731 = vmatpush1.msra.mxu0 0.0
    %1732 = vmatprep.subr.mxu0 0.0
    %1733 = vmatpush1.msra.mxu0 0.0
    %1734 = vmatprep.subr.mxu0 0.0
    %1735 = vmatpush1.msra.mxu0 0.0
    %1736 = vmatprep.subr.mxu0 0.0
    %1737 = vmatpush1.msra.mxu0 0.0
    %1738 = vmatprep.subr.mxu0 0.0
    %1739 = vmatpush1.msra.mxu0 0.0
    %1740 = vmatprep.subr.mxu0 0.0
    %1741 = vmatpush1.msra.mxu0 0.0
    %1742 = vmatprep.subr.mxu0 0.0
    %1743 = vmatpush1.msra.mxu0 0.0
    %1744 = vmatprep.subr.mxu0 0.0
    %1745 = vmatpush1.msra.mxu0 0.0
    %1746 = vmatprep.subr.mxu0 0.0
    %1747 = vmatpush1.msra.mxu0 0.0
    %1748 = vmatprep.subr.mxu0 0.0
    %1749 = vmatpush1.msra.mxu0 0.0
    %1750 = vmatprep.subr.mxu0 0.0
    %1751 = vmatpush1.msra.mxu0 0.0
    %1752 = vmatprep.subr.mxu0 0.0
    %1753 = vmatpush1.msra.mxu0 0.0
    %1754 = vmatprep.subr.mxu0 0.0
    %1755 = vmatpush1.msra.mxu0 0.0
    %1756 = vmatprep.subr.mxu0 0.0
    %1757 = vmatpush1.msra.mxu0 0.0
    %1758 = vmatprep.subr.mxu0 0.0
    %1759 = vmatpush1.msra.mxu0 0.0
    %1760 = vmatprep.subr.mxu0 0.0
    %1761 = vmatpush1.msra.mxu0 0.0
    %1762 = vmatprep.subr.mxu0 0.0
    %1763 = vmatpush1.msra.mxu0 0.0
    %1764 = vmatprep.subr.mxu0 0.0
    %1765 = vmatpush1.msra.mxu0 0.0
    %1766 = vmatprep.subr.mxu0 0.0
    %1767 = vmatpush1.msra.mxu0 0.0
    %1768 = vmatprep.mubr.f32.mxu0 0.0
    %v1769 = vand.u32 %v1700, 4294901760
    %v1770 = vsub.f32 %v1700, %v1769
    %v1771 = vand.u32 %v1770, 4294901760
    %v1772 = vsub.f32 %v1770, %v1771
    %v1773 = vand.u32 %v1772, 4294901760
    %1774 = vmatmul.mubr.f32.gmra.mrb[0].mxu0 %v1773
    %v1775 = vpop.f32.mrb[0].mxu0
    %v1776 = vadd.f32 0.0, %v1775
    %v1777 = vpop.f32.mrb[0].mxu0
    %1778 = vdwg.mxu0
    %1779 = vmatprep.subr.mxu0 0.0
    %v1780 = vand.u32 %v56, 4294901760
    %v1781 = vsub.f32 %v56, %v1780
    %v1782 = vand.u32 %v1781, 4294901760
    %v1783 = vsub.f32 %v1781, %v1782
    %v1784 = vand.u32 %v1783, 4294901760
    %1785 = vmatpush1.msra.mxu0 %v1784
    %1786 = vmatprep.subr.mxu0 0.0
    %v1787 = vand.u32 %v1203, 4294901760
    %v1788 = vsub.f32 %v1203, %v1787
    %v1789 = vand.u32 %v1788, 4294901760
    %v1790 = vsub.f32 %v1788, %v1789
    %v1791 = vand.u32 %v1790, 4294901760
    %1792 = vmatpush1.msra.mxu0 %v1791
    %1793 = vmatprep.subr.mxu0 0.0
    %1794 = vmatpush1.msra.mxu0 0.0
    %1795 = vmatprep.subr.mxu0 0.0
    %1796 = vmatpush1.msra.mxu0 0.0
    %1797 = vmatprep.subr.mxu0 0.0
    %1798 = vmatpush1.msra.mxu0 0.0
    %1799 = vmatprep.subr.mxu0 0.0
    %1800 = vmatpush1.msra.mxu0 0.0
    %1801 = vmatprep.subr.mxu0 0.0
    %1802 = vmatpush1.msra.mxu0 0.0
    %1803 = vmatprep.subr.mxu0 0.0
    %1804 = vmatpush1.msra.mxu0 0.0
    %1805 = vmatprep.subr.mxu0 0.0
    %1806 = vmatpush1.msra.mxu0 0.0
    %1807 = vmatprep.subr.mxu0 0.0
    %1808 = vmatpush1.msra.mxu0 0.0
    %1809 = vmatprep.subr.mxu0 0.0
    %1810 = vmatpush1.msra.mxu0 0.0
    %1811 = vmatprep.subr.mxu0 0.0
    %1812 = vmatpush1.msra.mxu0 0.0
    %1813 = vmatprep.subr.mxu0 0.0
    %1814 = vmatpush1.msra.mxu0 0.0
    %1815 = vmatprep.subr.mxu0 0.0
    %1816 = vmatpush1.msra.mxu0 0.0
    %1817 = vmatprep.subr.mxu0 0.0
    %1818 = vmatpush1.msra.mxu0 0.0
    %1819 = vmatprep.subr.mxu0 0.0
    %1820 = vmatpush1.msra.mxu0 0.0
    %1821 = vmatprep.subr.mxu0 0.0
    %1822 = vmatpush1.msra.mxu0 0.0
    %1823 = vmatprep.subr.mxu0 0.0
    %1824 = vmatpush1.msra.mxu0 0.0
    %1825 = vmatprep.subr.mxu0 0.0
    %1826 = vmatpush1.msra.mxu0 0.0
    %1827 = vmatprep.subr.mxu0 0.0
    %1828 = vmatpush1.msra.mxu0 0.0
    %1829 = vmatprep.subr.mxu0 0.0
    %1830 = vmatpush1.msra.mxu0 0.0
    %1831 = vmatprep.subr.mxu0 0.0
    %1832 = vmatpush1.msra.mxu0 0.0
    %1833 = vmatprep.subr.mxu0 0.0
    %1834 = vmatpush1.msra.mxu0 0.0
    %1835 = vmatprep.subr.mxu0 0.0
    %1836 = vmatpush1.msra.mxu0 0.0
    %1837 = vmatprep.subr.mxu0 0.0
    %1838 = vmatpush1.msra.mxu0 0.0
    %1839 = vmatprep.subr.mxu0 0.0
    %1840 = vmatpush1.msra.mxu0 0.0
    %1841 = vmatprep.subr.mxu0 0.0
    %1842 = vmatpush1.msra.mxu0 0.0
    %1843 = vmatprep.subr.mxu0 0.0
    %1844 = vmatpush1.msra.mxu0 0.0
    %1845 = vmatprep.subr.mxu0 0.0
    %1846 = vmatpush1.msra.mxu0 0.0
    %1847 = vmatprep.subr.mxu0 0.0
    %1848 = vmatpush1.msra.mxu0 0.0
    %1849 = vmatprep.subr.mxu0 0.0
    %1850 = vmatpush1.msra.mxu0 0.0
    %1851 = vmatprep.subr.mxu0 0.0
    %1852 = vmatpush1.msra.mxu0 0.0
    %1853 = vmatprep.mubr.f32.mxu0 0.0
    %v1854 = vand.u32 %v1700, 4294901760
    %1855 = vmatmul.mubr.f32.gmra.mrb[0].mxu0 %v1854
    %v1856 = vpop.f32.mrb[0].mxu0
    %v1857 = vadd.f32 %v1776, %v1856
    %v1858 = vpop.f32.mrb[0].mxu0
    %1859 = vdwg.mxu0
    %1860 = vmatprep.subr.mxu0 0.0
    %v1861 = vand.u32 %v56, 4294901760
    %v1862 = vsub.f32 %v56, %v1861
    %1863 = vmatpush1.msra.mxu0 %v1862
    %1864 = vmatprep.subr.mxu0 0.0
    %v1865 = vand.u32 %v1203, 4294901760
    %v1866 = vsub.f32 %v1203, %v1865
    %1867 = vmatpush1.msra.mxu0 %v1866
    %1868 = vmatprep.subr.mxu0 0.0
    %1869 = vmatpush1.msra.mxu0 0.0
    %1870 = vmatprep.subr.mxu0 0.0
    %1871 = vmatpush1.msra.mxu0 0.0
    %1872 = vmatprep.subr.mxu0 0.0
    %1873 = vmatpush1.msra.mxu0 0.0
    %1874 = vmatprep.subr.mxu0 0.0
    %1875 = vmatpush1.msra.mxu0 0.0
    %1876 = vmatprep.subr.mxu0 0.0
    %1877 = vmatpush1.msra.mxu0 0.0
    %1878 = vmatprep.subr.mxu0 0.0
    %1879 = vmatpush1.msra.mxu0 0.0
    %1880 = vmatprep.subr.mxu0 0.0
    %1881 = vmatpush1.msra.mxu0 0.0
    %1882 = vmatprep.subr.mxu0 0.0
    %1883 = vmatpush1.msra.mxu0 0.0
    %1884 = vmatprep.subr.mxu0 0.0
    %1885 = vmatpush1.msra.mxu0 0.0
    %1886 = vmatprep.subr.mxu0 0.0
    %1887 = vmatpush1.msra.mxu0 0.0
    %1888 = vmatprep.subr.mxu0 0.0
    %1889 = vmatpush1.msra.mxu0 0.0
    %1890 = vmatprep.subr.mxu0 0.0
    %1891 = vmatpush1.msra.mxu0 0.0
    %1892 = vmatprep.subr.mxu0 0.0
    %1893 = vmatpush1.msra.mxu0 0.0
    %1894 = vmatprep.subr.mxu0 0.0
    %1895 = vmatpush1.msra.mxu0 0.0
    %1896 = vmatprep.subr.mxu0 0.0
    %1897 = vmatpush1.msra.mxu0 0.0
    %1898 = vmatprep.subr.mxu0 0.0
    %1899 = vmatpush1.msra.mxu0 0.0
    %1900 = vmatprep.subr.mxu0 0.0
    %1901 = vmatpush1.msra.mxu0 0.0
    %1902 = vmatprep.subr.mxu0 0.0
    %1903 = vmatpush1.msra.mxu0 0.0
    %1904 = vmatprep.subr.mxu0 0.0
    %1905 = vmatpush1.msra.mxu0 0.0
    %1906 = vmatprep.subr.mxu0 0.0
    %1907 = vmatpush1.msra.mxu0 0.0
    %1908 = vmatprep.subr.mxu0 0.0
    %1909 = vmatpush1.msra.mxu0 0.0
    %1910 = vmatprep.subr.mxu0 0.0
    %1911 = vmatpush1.msra.mxu0 0.0
    %1912 = vmatprep.subr.mxu0 0.0
    %1913 = vmatpush1.msra.mxu0 0.0
    %1914 = vmatprep.subr.mxu0 0.0
    %1915 = vmatpush1.msra.mxu0 0.0
    %1916 = vmatprep.subr.mxu0 0.0
    %1917 = vmatpush1.msra.mxu0 0.0
    %1918 = vmatprep.subr.mxu0 0.0
    %1919 = vmatpush1.msra.mxu0 0.0
    %1920 = vmatprep.subr.mxu0 0.0
    %1921 = vmatpush1.msra.mxu0 0.0
    %1922 = vmatprep.subr.mxu0 0.0
    %1923 = vmatpush1.msra.mxu0 0.0
    %1924 = vmatprep.subr.mxu0 0.0
    %1925 = vmatpush1.msra.mxu0 0.0
    %1926 = vmatprep.subr.mxu0 0.0
    %1927 = vmatpush1.msra.mxu0 0.0
    %1928 = vmatprep.mubr.f32.mxu0 0.0
    %v1929 = vand.u32 %v1700, 4294901760
    %v1930 = vsub.f32 %v1700, %v1929
    %1931 = vmatmul.mubr.f32.gmra.mrb[0].mxu0 %v1930
    %v1932 = vpop.f32.mrb[0].mxu0
    %v1933 = vadd.f32 %v1857, %v1932
    %v1934 = vpop.f32.mrb[0].mxu0
    %1935 = vdwg.mxu0
    %1936 = vmatprep.subr.mxu0 0.0
    %v1937 = vand.u32 %v56, 4294901760
    %1938 = vmatpush1.msra.mxu0 %v1937
    %1939 = vmatprep.subr.mxu0 0.0
    %v1940 = vand.u32 %v1203, 4294901760
    %1941 = vmatpush1.msra.mxu0 %v1940
    %1942 = vmatprep.subr.mxu0 0.0
    %1943 = vmatpush1.msra.mxu0 0.0
    %1944 = vmatprep.subr.mxu0 0.0
    %1945 = vmatpush1.msra.mxu0 0.0
    %1946 = vmatprep.subr.mxu0 0.0
    %1947 = vmatpush1.msra.mxu0 0.0
    %1948 = vmatprep.subr.mxu0 0.0
    %1949 = vmatpush1.msra.mxu0 0.0
    %1950 = vmatprep.subr.mxu0 0.0
    %1951 = vmatpush1.msra.mxu0 0.0
    %1952 = vmatprep.subr.mxu0 0.0
    %1953 = vmatpush1.msra.mxu0 0.0
    %1954 = vmatprep.subr.mxu0 0.0
    %1955 = vmatpush1.msra.mxu0 0.0
    %1956 = vmatprep.subr.mxu0 0.0
    %1957 = vmatpush1.msra.mxu0 0.0
    %1958 = vmatprep.subr.mxu0 0.0
    %1959 = vmatpush1.msra.mxu0 0.0
    %1960 = vmatprep.subr.mxu0 0.0
    %1961 = vmatpush1.msra.mxu0 0.0
    %1962 = vmatprep.subr.mxu0 0.0
    %1963 = vmatpush1.msra.mxu0 0.0
    %1964 = vmatprep.subr.mxu0 0.0
    %1965 = vmatpush1.msra.mxu0 0.0
    %1966 = vmatprep.subr.mxu0 0.0
    %1967 = vmatpush1.msra.mxu0 0.0
    %1968 = vmatprep.subr.mxu0 0.0
    %1969 = vmatpush1.msra.mxu0 0.0
    %1970 = vmatprep.subr.mxu0 0.0
    %1971 = vmatpush1.msra.mxu0 0.0
    %1972 = vmatprep.subr.mxu0 0.0
    %1973 = vmatpush1.msra.mxu0 0.0
    %1974 = vmatprep.subr.mxu0 0.0
    %1975 = vmatpush1.msra.mxu0 0.0
    %1976 = vmatprep.subr.mxu0 0.0
    %1977 = vmatpush1.msra.mxu0 0.0
    %1978 = vmatprep.subr.mxu0 0.0
    %1979 = vmatpush1.msra.mxu0 0.0
    %1980 = vmatprep.subr.mxu0 0.0
    %1981 = vmatpush1.msra.mxu0 0.0
    %1982 = vmatprep.subr.mxu0 0.0
    %1983 = vmatpush1.msra.mxu0 0.0
    %1984 = vmatprep.subr.mxu0 0.0
    %1985 = vmatpush1.msra.mxu0 0.0
    %1986 = vmatprep.subr.mxu0 0.0
    %1987 = vmatpush1.msra.mxu0 0.0
    %1988 = vmatprep.subr.mxu0 0.0
    %1989 = vmatpush1.msra.mxu0 0.0
    %1990 = vmatprep.subr.mxu0 0.0
    %1991 = vmatpush1.msra.mxu0 0.0
    %1992 = vmatprep.subr.mxu0 0.0
    %1993 = vmatpush1.msra.mxu0 0.0
    %1994 = vmatprep.subr.mxu0 0.0
    %1995 = vmatpush1.msra.mxu0 0.0
    %1996 = vmatprep.subr.mxu0 0.0
    %1997 = vmatpush1.msra.mxu0 0.0
    %1998 = vmatprep.subr.mxu0 0.0
    %1999 = vmatpush1.msra.mxu0 0.0
    %2000 = vmatprep.subr.mxu0 0.0
    %2001 = vmatpush1.msra.mxu0 0.0
    %2002 = vmatprep.mubr.f32.mxu0 0.0
    %v2003 = vand.u32 %v1700, 4294901760
    %v2004 = vsub.f32 %v1700, %v2003
    %v2005 = vand.u32 %v2004, 4294901760
    %2006 = vmatmul.mubr.f32.gmra.mrb[0].mxu0 %v2005
    %v2007 = vpop.f32.mrb[0].mxu0
    %v2008 = vadd.f32 %v1933, %v2007
    %v2009 = vpop.f32.mrb[0].mxu0
    %2010 = vdwg.mxu0
    %2011 = vmatprep.subr.mxu0 0.0
    %v2012 = vand.u32 %v56, 4294901760
    %v2013 = vsub.f32 %v56, %v2012
    %v2014 = vand.u32 %v2013, 4294901760
    %2015 = vmatpush1.msra.mxu0 %v2014
    %2016 = vmatprep.subr.mxu0 0.0
    %v2017 = vand.u32 %v1203, 4294901760
    %v2018 = vsub.f32 %v1203, %v2017
    %v2019 = vand.u32 %v2018, 4294901760
    %2020 = vmatpush1.msra.mxu0 %v2019
    %2021 = vmatprep.subr.mxu0 0.0
    %2022 = vmatpush1.msra.mxu0 0.0
    %2023 = vmatprep.subr.mxu0 0.0
    %2024 = vmatpush1.msra.mxu0 0.0
    %2025 = vmatprep.subr.mxu0 0.0
    %2026 = vmatpush1.msra.mxu0 0.0
    %2027 = vmatprep.subr.mxu0 0.0
    %2028 = vmatpush1.msra.mxu0 0.0
    %2029 = vmatprep.subr.mxu0 0.0
    %2030 = vmatpush1.msra.mxu0 0.0
    %2031 = vmatprep.subr.mxu0 0.0
    %2032 = vmatpush1.msra.mxu0 0.0
    %2033 = vmatprep.subr.mxu0 0.0
    %2034 = vmatpush1.msra.mxu0 0.0
    %2035 = vmatprep.subr.mxu0 0.0
    %2036 = vmatpush1.msra.mxu0 0.0
    %2037 = vmatprep.subr.mxu0 0.0
    %2038 = vmatpush1.msra.mxu0 0.0
    %2039 = vmatprep.subr.mxu0 0.0
    %2040 = vmatpush1.msra.mxu0 0.0
    %2041 = vmatprep.subr.mxu0 0.0
    %2042 = vmatpush1.msra.mxu0 0.0
    %2043 = vmatprep.subr.mxu0 0.0
    %2044 = vmatpush1.msra.mxu0 0.0
    %2045 = vmatprep.subr.mxu0 0.0
    %2046 = vmatpush1.msra.mxu0 0.0
    %2047 = vmatprep.subr.mxu0 0.0
    %2048 = vmatpush1.msra.mxu0 0.0
    %2049 = vmatprep.subr.mxu0 0.0
    %2050 = vmatpush1.msra.mxu0 0.0
    %2051 = vmatprep.subr.mxu0 0.0
    %2052 = vmatpush1.msra.mxu0 0.0
    %2053 = vmatprep.subr.mxu0 0.0
    %2054 = vmatpush1.msra.mxu0 0.0
    %2055 = vmatprep.subr.mxu0 0.0
    %2056 = vmatpush1.msra.mxu0 0.0
    %2057 = vmatprep.subr.mxu0 0.0
    %2058 = vmatpush1.msra.mxu0 0.0
    %2059 = vmatprep.subr.mxu0 0.0
    %2060 = vmatpush1.msra.mxu0 0.0
    %2061 = vmatprep.subr.mxu0 0.0
    %2062 = vmatpush1.msra.mxu0 0.0
    %2063 = vmatprep.subr.mxu0 0.0
    %2064 = vmatpush1.msra.mxu0 0.0
    %2065 = vmatprep.subr.mxu0 0.0
    %2066 = vmatpush1.msra.mxu0 0.0
    %2067 = vmatprep.subr.mxu0 0.0
    %2068 = vmatpush1.msra.mxu0 0.0
    %2069 = vmatprep.subr.mxu0 0.0
    %2070 = vmatpush1.msra.mxu0 0.0
    %2071 = vmatprep.subr.mxu0 0.0
    %2072 = vmatpush1.msra.mxu0 0.0
    %2073 = vmatprep.subr.mxu0 0.0
    %2074 = vmatpush1.msra.mxu0 0.0
    %2075 = vmatprep.subr.mxu0 0.0
    %2076 = vmatpush1.msra.mxu0 0.0
    %2077 = vmatprep.subr.mxu0 0.0
    %2078 = vmatpush1.msra.mxu0 0.0
    %2079 = vmatprep.subr.mxu0 0.0
    %2080 = vmatpush1.msra.mxu0 0.0
    %2081 = vmatprep.mubr.f32.mxu0 0.0
    %v2082 = vand.u32 %v1700, 4294901760
    %2083 = vmatmul.mubr.f32.gmra.mrb[0].mxu0 %v2082
    %v2084 = vpop.f32.mrb[0].mxu0
    %v2085 = vadd.f32 %v2008, %v2084
    %v2086 = vpop.f32.mrb[0].mxu0
    %2087 = vdwg.mxu0
    %2088 = vmatprep.subr.mxu0 0.0
    %v2089 = vand.u32 %v56, 4294901760
    %2090 = vmatpush1.msra.mxu0 %v2089
    %2091 = vmatprep.subr.mxu0 0.0
    %v2092 = vand.u32 %v1203, 4294901760
    %2093 = vmatpush1.msra.mxu0 %v2092
    %2094 = vmatprep.subr.mxu0 0.0
    %2095 = vmatpush1.msra.mxu0 0.0
    %2096 = vmatprep.subr.mxu0 0.0
    %2097 = vmatpush1.msra.mxu0 0.0
    %2098 = vmatprep.subr.mxu0 0.0
    %2099 = vmatpush1.msra.mxu0 0.0
    %2100 = vmatprep.subr.mxu0 0.0
    %2101 = vmatpush1.msra.mxu0 0.0
    %2102 = vmatprep.subr.mxu0 0.0
    %2103 = vmatpush1.msra.mxu0 0.0
    %2104 = vmatprep.subr.mxu0 0.0
    %2105 = vmatpush1.msra.mxu0 0.0
    %2106 = vmatprep.subr.mxu0 0.0
    %2107 = vmatpush1.msra.mxu0 0.0
    %2108 = vmatprep.subr.mxu0 0.0
    %2109 = vmatpush1.msra.mxu0 0.0
    %2110 = vmatprep.subr.mxu0 0.0
    %2111 = vmatpush1.msra.mxu0 0.0
    %2112 = vmatprep.subr.mxu0 0.0
    %2113 = vmatpush1.msra.mxu0 0.0
    %2114 = vmatprep.subr.mxu0 0.0
    %2115 = vmatpush1.msra.mxu0 0.0
    %2116 = vmatprep.subr.mxu0 0.0
    %2117 = vmatpush1.msra.mxu0 0.0
    %2118 = vmatprep.subr.mxu0 0.0
    %2119 = vmatpush1.msra.mxu0 0.0
    %2120 = vmatprep.subr.mxu0 0.0
    %2121 = vmatpush1.msra.mxu0 0.0
    %2122 = vmatprep.subr.mxu0 0.0
    %2123 = vmatpush1.msra.mxu0 0.0
    %2124 = vmatprep.subr.mxu0 0.0
    %2125 = vmatpush1.msra.mxu0 0.0
    %2126 = vmatprep.subr.mxu0 0.0
    %2127 = vmatpush1.msra.mxu0 0.0
    %2128 = vmatprep.subr.mxu0 0.0
    %2129 = vmatpush1.msra.mxu0 0.0
    %2130 = vmatprep.subr.mxu0 0.0
    %2131 = vmatpush1.msra.mxu0 0.0
    %2132 = vmatprep.subr.mxu0 0.0
    %2133 = vmatpush1.msra.mxu0 0.0
    %2134 = vmatprep.subr.mxu0 0.0
    %2135 = vmatpush1.msra.mxu0 0.0
    %2136 = vmatprep.subr.mxu0 0.0
    %2137 = vmatpush1.msra.mxu0 0.0
    %2138 = vmatprep.subr.mxu0 0.0
    %2139 = vmatpush1.msra.mxu0 0.0
    %2140 = vmatprep.subr.mxu0 0.0
    %2141 = vmatpush1.msra.mxu0 0.0
    %2142 = vmatprep.subr.mxu0 0.0
    %2143 = vmatpush1.msra.mxu0 0.0
    %2144 = vmatprep.subr.mxu0 0.0
    %2145 = vmatpush1.msra.mxu0 0.0
    %2146 = vmatprep.subr.mxu0 0.0
    %2147 = vmatpush1.msra.mxu0 0.0
    %2148 = vmatprep.subr.mxu0 0.0
    %2149 = vmatpush1.msra.mxu0 0.0
    %2150 = vmatprep.subr.mxu0 0.0
    %2151 = vmatpush1.msra.mxu0 0.0
    %2152 = vmatprep.subr.mxu0 0.0
    %2153 = vmatpush1.msra.mxu0 0.0
    %2154 = vmatprep.mubr.f32.mxu0 0.0
    %v2155 = vand.u32 %v1700, 4294901760
    %2156 = vmatmul.mubr.f32.gmra.mrb[0].mxu0 %v2155
    %v2157 = vpop.f32.mrb[0].mxu0
    %v2158 = vadd.f32 %v2085, %v2157
    %v2159 = vpop.f32.mrb[0].mxu0
    %2160 = vdwg.mxu0
    %v2161 = vmul.f32 %v2158, 0.04
    %v2162 = vmul.f32 %v1173, %v1173
    %v2163 = vmul.f32 %v1174, %v1174
    %2166 = vrot.lane.b32.xlu0 %v2162, 126
    %v2167 = vpop.permute.xlu0 %2166
    %2168 = vrot.lane.b32.xlu0 %v2163, 126
    %v2169 = vpop.permute.xlu0 %2168
    %2172 = vst.msk [vmem:[#allocation3] sm:$0xff] %vm1185, %v2167
    %2173 = vst.msk [vmem:[#allocation3 + $0x8] sm:$0xf] %vm1187, %v2169
    %v2174 = vld [vmem:[#allocation3] sm:$0xff]
    %v2175 = vld [vmem:[#allocation3 + $0x1] sm:$0xff]
    %v2176 = vadd.f32 %v2174, %v2175
    %v2177 = vld [vmem:[#allocation3 + $0x2] sm:$0xff]
    %v2178 = vadd.f32 %v2176, %v2177
    %v2179 = vld [vmem:[#allocation3 + $0x3] sm:$0xff]
    %v2180 = vadd.f32 %v2178, %v2179
    %v2181 = vld [vmem:[#allocation3 + $0x4] sm:$0xff]
    %v2182 = vadd.f32 %v2180, %v2181
    %v2184 = vsel %vm1185, %v2182, 0
    %2186 = vmatprep.subr.mxu0 0.0
    %v2187 = vand.u32 %v56, 4294901760
    %2188 = vmatpush1.msra.mxu0 %v2187
    %2189 = vmatprep.subr.mxu0 0.0
    %v2190 = vand.u32 %v1203, 4294901760
    %2191 = vmatpush1.msra.mxu0 %v2190
    %2192 = vmatprep.subr.mxu0 0.0
    %2193 = vmatpush1.msra.mxu0 0.0
    %2194 = vmatprep.subr.mxu0 0.0
    %2195 = vmatpush1.msra.mxu0 0.0
    %2196 = vmatprep.subr.mxu0 0.0
    %2197 = vmatpush1.msra.mxu0 0.0
    %2198 = vmatprep.subr.mxu0 0.0
    %2199 = vmatpush1.msra.mxu0 0.0
    %2200 = vmatprep.subr.mxu0 0.0
    %2201 = vmatpush1.msra.mxu0 0.0
    %2202 = vmatprep.subr.mxu0 0.0
    %2203 = vmatpush1.msra.mxu0 0.0
    %2204 = vmatprep.subr.mxu0 0.0
    %2205 = vmatpush1.msra.mxu0 0.0
    %2206 = vmatprep.subr.mxu0 0.0
    %2207 = vmatpush1.msra.mxu0 0.0
    %2208 = vmatprep.subr.mxu0 0.0
    %2209 = vmatpush1.msra.mxu0 0.0
    %2210 = vmatprep.subr.mxu0 0.0
    %2211 = vmatpush1.msra.mxu0 0.0
    %2212 = vmatprep.subr.mxu0 0.0
    %2213 = vmatpush1.msra.mxu0 0.0
    %2214 = vmatprep.subr.mxu0 0.0
    %2215 = vmatpush1.msra.mxu0 0.0
    %2216 = vmatprep.subr.mxu0 0.0
    %2217 = vmatpush1.msra.mxu0 0.0
    %2218 = vmatprep.subr.mxu0 0.0
    %2219 = vmatpush1.msra.mxu0 0.0
    %2220 = vmatprep.subr.mxu0 0.0
    %2221 = vmatpush1.msra.mxu0 0.0
    %2222 = vmatprep.subr.mxu0 0.0
    %2223 = vmatpush1.msra.mxu0 0.0
    %2224 = vmatprep.subr.mxu0 0.0
    %2225 = vmatpush1.msra.mxu0 0.0
    %2226 = vmatprep.subr.mxu0 0.0
    %2227 = vmatpush1.msra.mxu0 0.0
    %2228 = vmatprep.subr.mxu0 0.0
    %2229 = vmatpush1.msra.mxu0 0.0
    %2230 = vmatprep.subr.mxu0 0.0
    %2231 = vmatpush1.msra.mxu0 0.0
    %2232 = vmatprep.subr.mxu0 0.0
    %2233 = vmatpush1.msra.mxu0 0.0
    %2234 = vmatprep.subr.mxu0 0.0
    %2235 = vmatpush1.msra.mxu0 0.0
    %2236 = vmatprep.subr.mxu0 0.0
    %2237 = vmatpush1.msra.mxu0 0.0
    %2238 = vmatprep.subr.mxu0 0.0
    %2239 = vmatpush1.msra.mxu0 0.0
    %2240 = vmatprep.subr.mxu0 0.0
    %2241 = vmatpush1.msra.mxu0 0.0
    %2242 = vmatprep.subr.mxu0 0.0
    %2243 = vmatpush1.msra.mxu0 0.0
    %2244 = vmatprep.subr.mxu0 0.0
    %2245 = vmatpush1.msra.mxu0 0.0
    %2246 = vmatprep.subr.mxu0 0.0
    %2247 = vmatpush1.msra.mxu0 0.0
    %2248 = vmatprep.subr.mxu0 0.0
    %2249 = vmatpush1.msra.mxu0 0.0
    %2250 = vmatprep.subr.mxu0 0.0
    %2251 = vmatpush1.msra.mxu0 0.0
    %2252 = vmatprep.mubr.f32.mxu0 0.0
    %v2253 = vand.u32 %v2184, 4294901760
    %v2254 = vsub.f32 %v2184, %v2253
    %v2255 = vand.u32 %v2254, 4294901760
    %v2256 = vsub.f32 %v2254, %v2255
    %v2257 = vand.u32 %v2256, 4294901760
    %2258 = vmatmul.mubr.f32.gmra.mrb[0].mxu0 %v2257
    %v2259 = vpop.f32.mrb[0].mxu0
    %v2260 = vadd.f32 0.0, %v2259
    %v2261 = vpop.f32.mrb[0].mxu0
    %2262 = vdwg.mxu0
    %2263 = vmatprep.subr.mxu0 0.0
    %v2264 = vand.u32 %v56, 4294901760
    %v2265 = vsub.f32 %v56, %v2264
    %v2266 = vand.u32 %v2265, 4294901760
    %v2267 = vsub.f32 %v2265, %v2266
    %v2268 = vand.u32 %v2267, 4294901760
    %2269 = vmatpush1.msra.mxu0 %v2268
    %2270 = vmatprep.subr.mxu0 0.0
    %v2271 = vand.u32 %v1203, 4294901760
    %v2272 = vsub.f32 %v1203, %v2271
    %v2273 = vand.u32 %v2272, 4294901760
    %v2274 = vsub.f32 %v2272, %v2273
    %v2275 = vand.u32 %v2274, 4294901760
    %2276 = vmatpush1.msra.mxu0 %v2275
    %2277 = vmatprep.subr.mxu0 0.0
    %2278 = vmatpush1.msra.mxu0 0.0
    %2279 = vmatprep.subr.mxu0 0.0
    %2280 = vmatpush1.msra.mxu0 0.0
    %2281 = vmatprep.subr.mxu0 0.0
    %2282 = vmatpush1.msra.mxu0 0.0
    %2283 = vmatprep.subr.mxu0 0.0
    %2284 = vmatpush1.msra.mxu0 0.0
    %2285 = vmatprep.subr.mxu0 0.0
    %2286 = vmatpush1.msra.mxu0 0.0
    %2287 = vmatprep.subr.mxu0 0.0
    %2288 = vmatpush1.msra.mxu0 0.0
    %2289 = vmatprep.subr.mxu0 0.0
    %2290 = vmatpush1.msra.mxu0 0.0
    %2291 = vmatprep.subr.mxu0 0.0
    %2292 = vmatpush1.msra.mxu0 0.0
    %2293 = vmatprep.subr.mxu0 0.0
    %2294 = vmatpush1.msra.mxu0 0.0
    %2295 = vmatprep.subr.mxu0 0.0
    %2296 = vmatpush1.msra.mxu0 0.0
    %2297 = vmatprep.subr.mxu0 0.0
    %2298 = vmatpush1.msra.mxu0 0.0
    %2299 = vmatprep.subr.mxu0 0.0
    %2300 = vmatpush1.msra.mxu0 0.0
    %2301 = vmatprep.subr.mxu0 0.0
    %2302 = vmatpush1.msra.mxu0 0.0
    %2303 = vmatprep.subr.mxu0 0.0
    %2304 = vmatpush1.msra.mxu0 0.0
    %2305 = vmatprep.subr.mxu0 0.0
    %2306 = vmatpush1.msra.mxu0 0.0
    %2307 = vmatprep.subr.mxu0 0.0
    %2308 = vmatpush1.msra.mxu0 0.0
    %2309 = vmatprep.subr.mxu0 0.0
    %2310 = vmatpush1.msra.mxu0 0.0
    %2311 = vmatprep.subr.mxu0 0.0
    %2312 = vmatpush1.msra.mxu0 0.0
    %2313 = vmatprep.subr.mxu0 0.0
    %2314 = vmatpush1.msra.mxu0 0.0
    %2315 = vmatprep.subr.mxu0 0.0
    %2316 = vmatpush1.msra.mxu0 0.0
    %2317 = vmatprep.subr.mxu0 0.0
    %2318 = vmatpush1.msra.mxu0 0.0
    %2319 = vmatprep.subr.mxu0 0.0
    %2320 = vmatpush1.msra.mxu0 0.0
    %2321 = vmatprep.subr.mxu0 0.0
    %2322 = vmatpush1.msra.mxu0 0.0
    %2323 = vmatprep.subr.mxu0 0.0
    %2324 = vmatpush1.msra.mxu0 0.0
    %2325 = vmatprep.subr.mxu0 0.0
    %2326 = vmatpush1.msra.mxu0 0.0
    %2327 = vmatprep.subr.mxu0 0.0
    %2328 = vmatpush1.msra.mxu0 0.0
    %2329 = vmatprep.subr.mxu0 0.0
    %2330 = vmatpush1.msra.mxu0 0.0
    %2331 = vmatprep.subr.mxu0 0.0
    %2332 = vmatpush1.msra.mxu0 0.0
    %2333 = vmatprep.subr.mxu0 0.0
    %2334 = vmatpush1.msra.mxu0 0.0
    %2335 = vmatprep.subr.mxu0 0.0
    %2336 = vmatpush1.msra.mxu0 0.0
    %2337 = vmatprep.mubr.f32.mxu0 0.0
    %v2338 = vand.u32 %v2184, 4294901760
    %2339 = vmatmul.mubr.f32.gmra.mrb[0].mxu0 %v2338
    %v2340 = vpop.f32.mrb[0].mxu0
    %v2341 = vadd.f32 %v2260, %v2340
    %v2342 = vpop.f32.mrb[0].mxu0
    %2343 = vdwg.mxu0
    %2344 = vmatprep.subr.mxu0 0.0
    %v2345 = vand.u32 %v56, 4294901760
    %v2346 = vsub.f32 %v56, %v2345
    %2347 = vmatpush1.msra.mxu0 %v2346
    %2348 = vmatprep.subr.mxu0 0.0
    %v2349 = vand.u32 %v1203, 4294901760
    %v2350 = vsub.f32 %v1203, %v2349
    %2351 = vmatpush1.msra.mxu0 %v2350
    %2352 = vmatprep.subr.mxu0 0.0
    %2353 = vmatpush1.msra.mxu0 0.0
    %2354 = vmatprep.subr.mxu0 0.0
    %2355 = vmatpush1.msra.mxu0 0.0
    %2356 = vmatprep.subr.mxu0 0.0
    %2357 = vmatpush1.msra.mxu0 0.0
    %2358 = vmatprep.subr.mxu0 0.0
    %2359 = vmatpush1.msra.mxu0 0.0
    %2360 = vmatprep.subr.mxu0 0.0
    %2361 = vmatpush1.msra.mxu0 0.0
    %2362 = vmatprep.subr.mxu0 0.0
    %2363 = vmatpush1.msra.mxu0 0.0
    %2364 = vmatprep.subr.mxu0 0.0
    %2365 = vmatpush1.msra.mxu0 0.0
    %2366 = vmatprep.subr.mxu0 0.0
    %2367 = vmatpush1.msra.mxu0 0.0
    %2368 = vmatprep.subr.mxu0 0.0
    %2369 = vmatpush1.msra.mxu0 0.0
    %2370 = vmatprep.subr.mxu0 0.0
    %2371 = vmatpush1.msra.mxu0 0.0
    %2372 = vmatprep.subr.mxu0 0.0
    %2373 = vmatpush1.msra.mxu0 0.0
    %2374 = vmatprep.subr.mxu0 0.0
    %2375 = vmatpush1.msra.mxu0 0.0
    %2376 = vmatprep.subr.mxu0 0.0
    %2377 = vmatpush1.msra.mxu0 0.0
    %2378 = vmatprep.subr.mxu0 0.0
    %2379 = vmatpush1.msra.mxu0 0.0
    %2380 = vmatprep.subr.mxu0 0.0
    %2381 = vmatpush1.msra.mxu0 0.0
    %2382 = vmatprep.subr.mxu0 0.0
    %2383 = vmatpush1.msra.mxu0 0.0
    %2384 = vmatprep.subr.mxu0 0.0
    %2385 = vmatpush1.msra.mxu0 0.0
    %2386 = vmatprep.subr.mxu0 0.0
    %2387 = vmatpush1.msra.mxu0 0.0
    %2388 = vmatprep.subr.mxu0 0.0
    %2389 = vmatpush1.msra.mxu0 0.0
    %2390 = vmatprep.subr.mxu0 0.0
    %2391 = vmatpush1.msra.mxu0 0.0
    %2392 = vmatprep.subr.mxu0 0.0
    %2393 = vmatpush1.msra.mxu0 0.0
    %2394 = vmatprep.subr.mxu0 0.0
    %2395 = vmatpush1.msra.mxu0 0.0
    %2396 = vmatprep.subr.mxu0 0.0
    %2397 = vmatpush1.msra.mxu0 0.0
    %2398 = vmatprep.subr.mxu0 0.0
    %2399 = vmatpush1.msra.mxu0 0.0
    %2400 = vmatprep.subr.mxu0 0.0
    %2401 = vmatpush1.msra.mxu0 0.0
    %2402 = vmatprep.subr.mxu0 0.0
    %2403 = vmatpush1.msra.mxu0 0.0
    %2404 = vmatprep.subr.mxu0 0.0
    %2405 = vmatpush1.msra.mxu0 0.0
    %2406 = vmatprep.subr.mxu0 0.0
    %2407 = vmatpush1.msra.mxu0 0.0
    %2408 = vmatprep.subr.mxu0 0.0
    %2409 = vmatpush1.msra.mxu0 0.0
    %2410 = vmatprep.subr.mxu0 0.0
    %2411 = vmatpush1.msra.mxu0 0.0
    %2412 = vmatprep.mubr.f32.mxu0 0.0
    %v2413 = vand.u32 %v2184, 4294901760
    %v2414 = vsub.f32 %v2184, %v2413
    %2415 = vmatmul.mubr.f32.gmra.mrb[0].mxu0 %v2414
    %v2416 = vpop.f32.mrb[0].mxu0
    %v2417 = vadd.f32 %v2341, %v2416
    %v2418 = vpop.f32.mrb[0].mxu0
    %2419 = vdwg.mxu0
    %2420 = vmatprep.subr.mxu0 0.0
    %v2421 = vand.u32 %v56, 4294901760
    %2422 = vmatpush1.msra.mxu0 %v2421
    %2423 = vmatprep.subr.mxu0 0.0
    %v2424 = vand.u32 %v1203, 4294901760
    %2425 = vmatpush1.msra.mxu0 %v2424
    %2426 = vmatprep.subr.mxu0 0.0
    %2427 = vmatpush1.msra.mxu0 0.0
    %2428 = vmatprep.subr.mxu0 0.0
    %2429 = vmatpush1.msra.mxu0 0.0
    %2430 = vmatprep.subr.mxu0 0.0
    %2431 = vmatpush1.msra.mxu0 0.0
    %2432 = vmatprep.subr.mxu0 0.0
    %2433 = vmatpush1.msra.mxu0 0.0
    %2434 = vmatprep.subr.mxu0 0.0
    %2435 = vmatpush1.msra.mxu0 0.0
    %2436 = vmatprep.subr.mxu0 0.0
    %2437 = vmatpush1.msra.mxu0 0.0
    %2438 = vmatprep.subr.mxu0 0.0
    %2439 = vmatpush1.msra.mxu0 0.0
    %2440 = vmatprep.subr.mxu0 0.0
    %2441 = vmatpush1.msra.mxu0 0.0
    %2442 = vmatprep.subr.mxu0 0.0
    %2443 = vmatpush1.msra.mxu0 0.0
    %2444 = vmatprep.subr.mxu0 0.0
    %2445 = vmatpush1.msra.mxu0 0.0
    %2446 = vmatprep.subr.mxu0 0.0
    %2447 = vmatpush1.msra.mxu0 0.0
    %2448 = vmatprep.subr.mxu0 0.0
    %2449 = vmatpush1.msra.mxu0 0.0
    %2450 = vmatprep.subr.mxu0 0.0
    %2451 = vmatpush1.msra.mxu0 0.0
    %2452 = vmatprep.subr.mxu0 0.0
    %2453 = vmatpush1.msra.mxu0 0.0
    %2454 = vmatprep.subr.mxu0 0.0
    %2455 = vmatpush1.msra.mxu0 0.0
    %2456 = vmatprep.subr.mxu0 0.0
    %2457 = vmatpush1.msra.mxu0 0.0
    %2458 = vmatprep.subr.mxu0 0.0
    %2459 = vmatpush1.msra.mxu0 0.0
    %2460 = vmatprep.subr.mxu0 0.0
    %2461 = vmatpush1.msra.mxu0 0.0
    %2462 = vmatprep.subr.mxu0 0.0
    %2463 = vmatpush1.msra.mxu0 0.0
    %2464 = vmatprep.subr.mxu0 0.0
    %2465 = vmatpush1.msra.mxu0 0.0
    %2466 = vmatprep.subr.mxu0 0.0
    %2467 = vmatpush1.msra.mxu0 0.0
    %2468 = vmatprep.subr.mxu0 0.0
    %2469 = vmatpush1.msra.mxu0 0.0
    %2470 = vmatprep.subr.mxu0 0.0
    %2471 = vmatpush1.msra.mxu0 0.0
    %2472 = vmatprep.subr.mxu0 0.0
    %2473 = vmatpush1.msra.mxu0 0.0
    %2474 = vmatprep.subr.mxu0 0.0
    %2475 = vmatpush1.msra.mxu0 0.0
    %2476 = vmatprep.subr.mxu0 0.0
    %2477 = vmatpush1.msra.mxu0 0.0
    %2478 = vmatprep.subr.mxu0 0.0
    %2479 = vmatpush1.msra.mxu0 0.0
    %2480 = vmatprep.subr.mxu0 0.0
    %2481 = vmatpush1.msra.mxu0 0.0
    %2482 = vmatprep.subr.mxu0 0.0
    %2483 = vmatpush1.msra.mxu0 0.0
    %2484 = vmatprep.subr.mxu0 0.0
    %2485 = vmatpush1.msra.mxu0 0.0
    %2486 = vmatprep.mubr.f32.mxu0 0.0
    %v2487 = vand.u32 %v2184, 4294901760
    %v2488 = vsub.f32 %v2184, %v2487
    %v2489 = vand.u32 %v2488, 4294901760
    %2490 = vmatmul.mubr.f32.gmra.mrb[0].mxu0 %v2489
    %v2491 = vpop.f32.mrb[0].mxu0
    %v2492 = vadd.f32 %v2417, %v2491
    %v2493 = vpop.f32.mrb[0].mxu0
    %2494 = vdwg.mxu0
    %2495 = vmatprep.subr.mxu0 0.0
    %v2496 = vand.u32 %v56, 4294901760
    %v2497 = vsub.f32 %v56, %v2496
    %v2498 = vand.u32 %v2497, 4294901760
    %2499 = vmatpush1.msra.mxu0 %v2498
    %2500 = vmatprep.subr.mxu0 0.0
    %v2501 = vand.u32 %v1203, 4294901760
    %v2502 = vsub.f32 %v1203, %v2501
    %v2503 = vand.u32 %v2502, 4294901760
    %2504 = vmatpush1.msra.mxu0 %v2503
    %2505 = vmatprep.subr.mxu0 0.0
    %2506 = vmatpush1.msra.mxu0 0.0
    %2507 = vmatprep.subr.mxu0 0.0
    %2508 = vmatpush1.msra.mxu0 0.0
    %2509 = vmatprep.subr.mxu0 0.0
    %2510 = vmatpush1.msra.mxu0 0.0
    %2511 = vmatprep.subr.mxu0 0.0
    %2512 = vmatpush1.msra.mxu0 0.0
    %2513 = vmatprep.subr.mxu0 0.0
    %2514 = vmatpush1.msra.mxu0 0.0
    %2515 = vmatprep.subr.mxu0 0.0
    %2516 = vmatpush1.msra.mxu0 0.0
    %2517 = vmatprep.subr.mxu0 0.0
    %2518 = vmatpush1.msra.mxu0 0.0
    %2519 = vmatprep.subr.mxu0 0.0
    %2520 = vmatpush1.msra.mxu0 0.0
    %2521 = vmatprep.subr.mxu0 0.0
    %2522 = vmatpush1.msra.mxu0 0.0
    %2523 = vmatprep.subr.mxu0 0.0
    %2524 = vmatpush1.msra.mxu0 0.0
    %2525 = vmatprep.subr.mxu0 0.0
    %2526 = vmatpush1.msra.mxu0 0.0
    %2527 = vmatprep.subr.mxu0 0.0
    %2528 = vmatpush1.msra.mxu0 0.0
    %2529 = vmatprep.subr.mxu0 0.0
    %2530 = vmatpush1.msra.mxu0 0.0
    %2531 = vmatprep.subr.mxu0 0.0
    %2532 = vmatpush1.msra.mxu0 0.0
    %2533 = vmatprep.subr.mxu0 0.0
    %2534 = vmatpush1.msra.mxu0 0.0
    %2535 = vmatprep.subr.mxu0 0.0
    %2536 = vmatpush1.msra.mxu0 0.0
    %2537 = vmatprep.subr.mxu0 0.0
    %2538 = vmatpush1.msra.mxu0 0.0
    %2539 = vmatprep.subr.mxu0 0.0
    %2540 = vmatpush1.msra.mxu0 0.0
    %2541 = vmatprep.subr.mxu0 0.0
    %2542 = vmatpush1.msra.mxu0 0.0
    %2543 = vmatprep.subr.mxu0 0.0
    %2544 = vmatpush1.msra.mxu0 0.0
    %2545 = vmatprep.subr.mxu0 0.0
    %2546 = vmatpush1.msra.mxu0 0.0
    %2547 = vmatprep.subr.mxu0 0.0
    %2548 = vmatpush1.msra.mxu0 0.0
    %2549 = vmatprep.subr.mxu0 0.0
    %2550 = vmatpush1.msra.mxu0 0.0
    %2551 = vmatprep.subr.mxu0 0.0
    %2552 = vmatpush1.msra.mxu0 0.0
    %2553 = vmatprep.subr.mxu0 0.0
    %2554 = vmatpush1.msra.mxu0 0.0
    %2555 = vmatprep.subr.mxu0 0.0
    %2556 = vmatpush1.msra.mxu0 0.0
    %2557 = vmatprep.subr.mxu0 0.0
    %2558 = vmatpush1.msra.mxu0 0.0
    %2559 = vmatprep.subr.mxu0 0.0
    %2560 = vmatpush1.msra.mxu0 0.0
    %2561 = vmatprep.subr.mxu0 0.0
    %2562 = vmatpush1.msra.mxu0 0.0
    %2563 = vmatprep.subr.mxu0 0.0
    %2564 = vmatpush1.msra.mxu0 0.0
    %2565 = vmatprep.mubr.f32.mxu0 0.0
    %v2566 = vand.u32 %v2184, 4294901760
    %2567 = vmatmul.mubr.f32.gmra.mrb[0].mxu0 %v2566
    %v2568 = vpop.f32.mrb[0].mxu0
    %v2569 = vadd.f32 %v2492, %v2568
    %v2570 = vpop.f32.mrb[0].mxu0
    %2571 = vdwg.mxu0
    %2572 = vmatprep.subr.mxu0 0.0
    %v2573 = vand.u32 %v56, 4294901760
    %2574 = vmatpush1.msra.mxu0 %v2573
    %2575 = vmatprep.subr.mxu0 0.0
    %v2576 = vand.u32 %v1203, 4294901760
    %2577 = vmatpush1.msra.mxu0 %v2576
    %2578 = vmatprep.subr.mxu0 0.0
    %2579 = vmatpush1.msra.mxu0 0.0
    %2580 = vmatprep.subr.mxu0 0.0
    %2581 = vmatpush1.msra.mxu0 0.0
    %2582 = vmatprep.subr.mxu0 0.0
    %2583 = vmatpush1.msra.mxu0 0.0
    %2584 = vmatprep.subr.mxu0 0.0
    %2585 = vmatpush1.msra.mxu0 0.0
    %2586 = vmatprep.subr.mxu0 0.0
    %2587 = vmatpush1.msra.mxu0 0.0
    %2588 = vmatprep.subr.mxu0 0.0
    %2589 = vmatpush1.msra.mxu0 0.0
    %2590 = vmatprep.subr.mxu0 0.0
    %2591 = vmatpush1.msra.mxu0 0.0
    %2592 = vmatprep.subr.mxu0 0.0
    %2593 = vmatpush1.msra.mxu0 0.0
    %2594 = vmatprep.subr.mxu0 0.0
    %2595 = vmatpush1.msra.mxu0 0.0
    %2596 = vmatprep.subr.mxu0 0.0
    %2597 = vmatpush1.msra.mxu0 0.0
    %2598 = vmatprep.subr.mxu0 0.0
    %2599 = vmatpush1.msra.mxu0 0.0
    %2600 = vmatprep.subr.mxu0 0.0
    %2601 = vmatpush1.msra.mxu0 0.0
    %2602 = vmatprep.subr.mxu0 0.0
    %2603 = vmatpush1.msra.mxu0 0.0
    %2604 = vmatprep.subr.mxu0 0.0
    %2605 = vmatpush1.msra.mxu0 0.0
    %2606 = vmatprep.subr.mxu0 0.0
    %2607 = vmatpush1.msra.mxu0 0.0
    %2608 = vmatprep.subr.mxu0 0.0
    %2609 = vmatpush1.msra.mxu0 0.0
    %2610 = vmatprep.subr.mxu0 0.0
    %2611 = vmatpush1.msra.mxu0 0.0
    %2612 = vmatprep.subr.mxu0 0.0
    %2613 = vmatpush1.msra.mxu0 0.0
    %2614 = vmatprep.subr.mxu0 0.0
    %2615 = vmatpush1.msra.mxu0 0.0
    %2616 = vmatprep.subr.mxu0 0.0
    %2617 = vmatpush1.msra.mxu0 0.0
    %2618 = vmatprep.subr.mxu0 0.0
    %2619 = vmatpush1.msra.mxu0 0.0
    %2620 = vmatprep.subr.mxu0 0.0
    %2621 = vmatpush1.msra.mxu0 0.0
    %2622 = vmatprep.subr.mxu0 0.0
    %2623 = vmatpush1.msra.mxu0 0.0
    %2624 = vmatprep.subr.mxu0 0.0
    %2625 = vmatpush1.msra.mxu0 0.0
    %2626 = vmatprep.subr.mxu0 0.0
    %2627 = vmatpush1.msra.mxu0 0.0
    %2628 = vmatprep.subr.mxu0 0.0
    %2629 = vmatpush1.msra.mxu0 0.0
    %2630 = vmatprep.subr.mxu0 0.0
    %2631 = vmatpush1.msra.mxu0 0.0
    %2632 = vmatprep.subr.mxu0 0.0
    %2633 = vmatpush1.msra.mxu0 0.0
    %2634 = vmatprep.subr.mxu0 0.0
    %2635 = vmatpush1.msra.mxu0 0.0
    %2636 = vmatprep.subr.mxu0 0.0
    %2637 = vmatpush1.msra.mxu0 0.0
    %2638 = vmatprep.mubr.f32.mxu0 0.0
    %v2639 = vand.u32 %v2184, 4294901760
    %2640 = vmatmul.mubr.f32.gmra.mrb[0].mxu0 %v2639
    %v2641 = vpop.f32.mrb[0].mxu0
    %v2642 = vadd.f32 %v2569, %v2641
    %v2643 = vpop.f32.mrb[0].mxu0
    %2644 = vdwg.mxu0
    %v2645 = vmul.f32 %v2642, 0.04
    %v2646 = vmul.f32 %v2161, %v2645
    %v2647 = vsel %vm1666, %v2646, 0.0
    %2648 = vadd.xlane.f32.xlu0 %v2647
    %v2649 = vpop.xlane.xlu0 %2648
    %v2650 = vrot.slane %v2649, 4
    %v2651 = vadd.f32 %v2649, %v2650
    %v2652 = vrot.slane %v2651, 2
    %v2653 = vadd.f32 %v2651, %v2652
    %v2654 = vrot.slane %v2653, 1
    %v2655 = vadd.f32 %v2653, %v2654
    %s2656 = vtos %v2655
    %s2657 = sadd.f32 %s2656, 0.0
    %s2658 = scalar_lea.vmem [#allocation4], 48
    %v2659 = vld [vmem:[%s2658] sm:$0xff]
    %v2660 = vld [vmem:[%s2658 + $0x8] sm:$0xff]
    %v2661 = vmul.f32 %v2659, 0.299
    %v2662 = vmul.f32 %v2660, 0.299
    %s2663 = scalar_lea.vmem [#allocation4], 64
    %v2664 = vld [vmem:[%s2663] sm:$0xff]
    %v2665 = vld [vmem:[%s2663 + $0x8] sm:$0xff]
    %v2666 = vmul.f32 %v2664, 0.587
    %v2667 = vmul.f32 %v2665, 0.587
    %v2668 = vadd.f32 %v2661, %v2666
    %v2669 = vadd.f32 %v2662, %v2667
    %s2670 = scalar_lea.vmem [#allocation4], 80
    %v2671 = vld [vmem:[%s2670] sm:$0xff]
    %v2672 = vld [vmem:[%s2670 + $0x8] sm:$0xff]
    %v2673 = vmul.f32 %v2671, 0.114
    %v2674 = vmul.f32 %v2672, 0.114
    %v2675 = vadd.f32 %v2668, %v2673
    %v2676 = vadd.f32 %v2669, %v2674
    %s2677 = scalar_lea.vmem [#allocation7], 48
    %v2678 = vld [vmem:[%s2677] sm:$0xff]
    %v2679 = vld [vmem:[%s2677 + $0x8] sm:$0xff]
    %v2680 = vmul.f32 %v2678, 0.299
    %v2681 = vmul.f32 %v2679, 0.299
    %s2682 = scalar_lea.vmem [#allocation7], 64
    %v2683 = vld [vmem:[%s2682] sm:$0xff]
    %v2684 = vld [vmem:[%s2682 + $0x8] sm:$0xff]
    %v2685 = vmul.f32 %v2683, 0.587
    %v2686 = vmul.f32 %v2684, 0.587
    %v2687 = vadd.f32 %v2680, %v2685
    %v2688 = vadd.f32 %v2681, %v2686
    %s2689 = scalar_lea.vmem [#allocation7], 80
    %v2690 = vld [vmem:[%s2689] sm:$0xff]
    %v2691 = vld [vmem:[%s2689 + $0x8] sm:$0xff]
    %v2692 = vmul.f32 %v2690, 0.114
    %v2693 = vmul.f32 %v2691, 0.114
    %v2694 = vadd.f32 %v2687, %v2692
    %v2695 = vadd.f32 %v2688, %v2693
    %2696 = vst.msk [vmem:[#allocation2] sm:$0xff] %vm94, %v2675
    %2697 = vst.msk [vmem:[#allocation2 + $0x8] sm:$0xff] %vm94, %v2676
    %2698 = vst.msk [vmem:[#allocation3] sm:$0xff] %vm94, %v2694
    %2699 = vst.msk [vmem:[#allocation3 + $0x8] sm:$0xff] %vm94, %v2695
    %v2700 = vld [vmem:[#allocation2 + $0x2] sm:$0xff]
    %v2701 = vld [vmem:[#allocation2 + $0xa] sm:$0xf]
    %v2702 = vld [vmem:[#allocation2] sm:$0xff]
    %v2703 = vld [vmem:[#allocation2 + $0x8] sm:$0xf]
    %v2704 = vld [vmem:[#allocation2 + $0x1] sm:$0xff]
    %v2705 = vld [vmem:[#allocation2 + $0x9] sm:$0xf]
    %v2706 = vadd.f32 %v2702, %v2704
    %v2707 = vadd.f32 %v2703, %v2705
    %v2708 = vadd.f32 %v2706, %v2700
    %v2709 = vadd.f32 %v2707, %v2701
    %v2710 = vld [vmem:[#allocation2 + $0x3] sm:$0xff]
    %v2711 = vld [vmem:[#allocation2 + $0xb] sm:$0xf]
    %v2712 = vadd.f32 %v2708, %v2710
    %v2713 = vadd.f32 %v2709, %v2711
    %v2714 = vld [vmem:[#allocation2 + $0x4] sm:$0xff]
    %v2715 = vld [vmem:[#allocation2 + $0xc] sm:$0xf]
    %v2716 = vadd.f32 %v2712, %v2714
    %v2717 = vadd.f32 %v2713, %v2715
    %v2719 = vsel %vm94, %v2716, 0
    %v2722 = vsel %vm94, %v2717, 0
    %2724 = vmatprep.subr.mxu0 0.0
    %v2725 = vand.u32 %v56, 4294901760
    %2726 = vmatpush1.msra.mxu0 %v2725
    %2727 = vmatprep.subr.mxu0 0.0
    %v2728 = vand.u32 %v57, 4294901760
    %2729 = vmatpush1.msra.mxu0 %v2728
    %2730 = vmatprep.subr.mxu0 0.0
    %2731 = vmatpush1.msra.mxu0 0.0
    %2732 = vmatprep.subr.mxu0 0.0
    %2733 = vmatpush1.msra.mxu0 0.0
    %2734 = vmatprep.subr.mxu0 0.0
    %2735 = vmatpush1.msra.mxu0 0.0
    %2736 = vmatprep.subr.mxu0 0.0
    %2737 = vmatpush1.msra.mxu0 0.0
    %2738 = vmatprep.subr.mxu0 0.0
    %2739 = vmatpush1.msra.mxu0 0.0
    %2740 = vmatprep.subr.mxu0 0.0
    %2741 = vmatpush1.msra.mxu0 0.0
    %2742 = vmatprep.subr.mxu0 0.0
    %2743 = vmatpush1.msra.mxu0 0.0
    %2744 = vmatprep.subr.mxu0 0.0
    %2745 = vmatpush1.msra.mxu0 0.0
    %2746 = vmatprep.subr.mxu0 0.0
    %2747 = vmatpush1.msra.mxu0 0.0
    %2748 = vmatprep.subr.mxu0 0.0
    %2749 = vmatpush1.msra.mxu0 0.0
    %2750 = vmatprep.subr.mxu0 0.0
    %2751 = vmatpush1.msra.mxu0 0.0
    %2752 = vmatprep.subr.mxu0 0.0
    %2753 = vmatpush1.msra.mxu0 0.0
    %2754 = vmatprep.subr.mxu0 0.0
    %2755 = vmatpush1.msra.mxu0 0.0
    %2756 = vmatprep.subr.mxu0 0.0
    %2757 = vmatpush1.msra.mxu0 0.0
    %2758 = vmatprep.subr.mxu0 0.0
    %2759 = vmatpush1.msra.mxu0 0.0
    %2760 = vmatprep.subr.mxu0 0.0
    %2761 = vmatpush1.msra.mxu0 0.0
    %2762 = vmatprep.subr.mxu0 0.0
    %2763 = vmatpush1.msra.mxu0 0.0
    %2764 = vmatprep.subr.mxu0 0.0
    %2765 = vmatpush1.msra.mxu0 0.0
    %2766 = vmatprep.subr.mxu0 0.0
    %2767 = vmatpush1.msra.mxu0 0.0
    %2768 = vmatprep.subr.mxu0 0.0
    %2769 = vmatpush1.msra.mxu0 0.0
    %2770 = vmatprep.subr.mxu0 0.0
    %2771 = vmatpush1.msra.mxu0 0.0
    %2772 = vmatprep.subr.mxu0 0.0
    %2773 = vmatpush1.msra.mxu0 0.0
    %2774 = vmatprep.subr.mxu0 0.0
    %2775 = vmatpush1.msra.mxu0 0.0
    %2776 = vmatprep.subr.mxu0 0.0
    %2777 = vmatpush1.msra.mxu0 0.0
    %2778 = vmatprep.subr.mxu0 0.0
    %2779 = vmatpush1.msra.mxu0 0.0
    %2780 = vmatprep.subr.mxu0 0.0
    %2781 = vmatpush1.msra.mxu0 0.0
    %2782 = vmatprep.subr.mxu0 0.0
    %2783 = vmatpush1.msra.mxu0 0.0
    %2784 = vmatprep.subr.mxu0 0.0
    %2785 = vmatpush1.msra.mxu0 0.0
    %2786 = vmatprep.subr.mxu0 0.0
    %2787 = vmatpush1.msra.mxu0 0.0
    %2788 = vmatprep.subr.mxu0 0.0
    %2789 = vmatpush1.msra.mxu0 0.0
    %2790 = vmatprep.mubr.f32.mxu0 0.0
    %v2791 = vand.u32 %v2719, 4294901760
    %v2792 = vsub.f32 %v2719, %v2791
    %v2793 = vand.u32 %v2792, 4294901760
    %v2794 = vsub.f32 %v2792, %v2793
    %v2795 = vand.u32 %v2794, 4294901760
    %2796 = vmatmul.mubr.f32.gmra.mrb[0].mxu0 %v2795
    %v2797 = vpop.f32.mrb[0].mxu0
    %v2798 = vadd.f32 0.0, %v2797
    %v2799 = vpop.f32.mrb[0].mxu0
    %2800 = vmatprep.mubr.f32.mxu0 0.0
    %v2801 = vand.u32 %v2722, 4294901760
    %v2802 = vsub.f32 %v2722, %v2801
    %v2803 = vand.u32 %v2802, 4294901760
    %v2804 = vsub.f32 %v2802, %v2803
    %v2805 = vand.u32 %v2804, 4294901760
    %2806 = vmatmul.mubr.f32.gmra.mrb[0].mxu0 %v2805
    %v2807 = vpop.f32.mrb[0].mxu0
    %v2808 = vadd.f32 0.0, %v2807
    %v2809 = vpop.f32.mrb[0].mxu0
    %2810 = vdwg.mxu0
    %2811 = vmatprep.subr.mxu0 0.0
    %v2812 = vand.u32 %v56, 4294901760
    %v2813 = vsub.f32 %v56, %v2812
    %v2814 = vand.u32 %v2813, 4294901760
    %v2815 = vsub.f32 %v2813, %v2814
    %v2816 = vand.u32 %v2815, 4294901760
    %2817 = vmatpush1.msra.mxu0 %v2816
    %2818 = vmatprep.subr.mxu0 0.0
    %v2819 = vand.u32 %v57, 4294901760
    %v2820 = vsub.f32 %v57, %v2819
    %v2821 = vand.u32 %v2820, 4294901760
    %v2822 = vsub.f32 %v2820, %v2821
    %v2823 = vand.u32 %v2822, 4294901760
    %2824 = vmatpush1.msra.mxu0 %v2823
    %2825 = vmatprep.subr.mxu0 0.0
    %2826 = vmatpush1.msra.mxu0 0.0
    %2827 = vmatprep.subr.mxu0 0.0
    %2828 = vmatpush1.msra.mxu0 0.0
    %2829 = vmatprep.subr.mxu0 0.0
    %2830 = vmatpush1.msra.mxu0 0.0
    %2831 = vmatprep.subr.mxu0 0.0
    %2832 = vmatpush1.msra.mxu0 0.0
    %2833 = vmatprep.subr.mxu0 0.0
    %2834 = vmatpush1.msra.mxu0 0.0
    %2835 = vmatprep.subr.mxu0 0.0
    %2836 = vmatpush1.msra.mxu0 0.0
    %2837 = vmatprep.subr.mxu0 0.0
    %2838 = vmatpush1.msra.mxu0 0.0
    %2839 = vmatprep.subr.mxu0 0.0
    %2840 = vmatpush1.msra.mxu0 0.0
    %2841 = vmatprep.subr.mxu0 0.0
    %2842 = vmatpush1.msra.mxu0 0.0
    %2843 = vmatprep.subr.mxu0 0.0
    %2844 = vmatpush1.msra.mxu0 0.0
    %2845 = vmatprep.subr.mxu0 0.0
    %2846 = vmatpush1.msra.mxu0 0.0
    %2847 = vmatprep.subr.mxu0 0.0
    %2848 = vmatpush1.msra.mxu0 0.0
    %2849 = vmatprep.subr.mxu0 0.0
    %2850 = vmatpush1.msra.mxu0 0.0
    %2851 = vmatprep.subr.mxu0 0.0
    %2852 = vmatpush1.msra.mxu0 0.0
    %2853 = vmatprep.subr.mxu0 0.0
    %2854 = vmatpush1.msra.mxu0 0.0
    %2855 = vmatprep.subr.mxu0 0.0
    %2856 = vmatpush1.msra.mxu0 0.0
    %2857 = vmatprep.subr.mxu0 0.0
    %2858 = vmatpush1.msra.mxu0 0.0
    %2859 = vmatprep.subr.mxu0 0.0
    %2860 = vmatpush1.msra.mxu0 0.0
    %2861 = vmatprep.subr.mxu0 0.0
    %2862 = vmatpush1.msra.mxu0 0.0
    %2863 = vmatprep.subr.mxu0 0.0
    %2864 = vmatpush1.msra.mxu0 0.0
    %2865 = vmatprep.subr.mxu0 0.0
    %2866 = vmatpush1.msra.mxu0 0.0
    %2867 = vmatprep.subr.mxu0 0.0
    %2868 = vmatpush1.msra.mxu0 0.0
    %2869 = vmatprep.subr.mxu0 0.0
    %2870 = vmatpush1.msra.mxu0 0.0
    %2871 = vmatprep.subr.mxu0 0.0
    %2872 = vmatpush1.msra.mxu0 0.0
    %2873 = vmatprep.subr.mxu0 0.0
    %2874 = vmatpush1.msra.mxu0 0.0
    %2875 = vmatprep.subr.mxu0 0.0
    %2876 = vmatpush1.msra.mxu0 0.0
    %2877 = vmatprep.subr.mxu0 0.0
    %2878 = vmatpush1.msra.mxu0 0.0
    %2879 = vmatprep.subr.mxu0 0.0
    %2880 = vmatpush1.msra.mxu0 0.0
    %2881 = vmatprep.subr.mxu0 0.0
    %2882 = vmatpush1.msra.mxu0 0.0
    %2883 = vmatprep.subr.mxu0 0.0
    %2884 = vmatpush1.msra.mxu0 0.0
    %2885 = vmatprep.mubr.f32.mxu0 0.0
    %v2886 = vand.u32 %v2719, 4294901760
    %2887 = vmatmul.mubr.f32.gmra.mrb[0].mxu0 %v2886
    %v2888 = vpop.f32.mrb[0].mxu0
    %v2889 = vadd.f32 %v2798, %v2888
    %v2890 = vpop.f32.mrb[0].mxu0
    %2891 = vmatprep.mubr.f32.mxu0 0.0
    %v2892 = vand.u32 %v2722, 4294901760
    %2893 = vmatmul.mubr.f32.gmra.mrb[0].mxu0 %v2892
    %v2894 = vpop.f32.mrb[0].mxu0
    %v2895 = vadd.f32 %v2808, %v2894
    %v2896 = vpop.f32.mrb[0].mxu0
    %2897 = vdwg.mxu0
    %2898 = vmatprep.subr.mxu0 0.0
    %v2899 = vand.u32 %v56, 4294901760
    %v2900 = vsub.f32 %v56, %v2899
    %2901 = vmatpush1.msra.mxu0 %v2900
    %2902 = vmatprep.subr.mxu0 0.0
    %v2903 = vand.u32 %v57, 4294901760
    %v2904 = vsub.f32 %v57, %v2903
    %2905 = vmatpush1.msra.mxu0 %v2904
    %2906 = vmatprep.subr.mxu0 0.0
    %2907 = vmatpush1.msra.mxu0 0.0
    %2908 = vmatprep.subr.mxu0 0.0
    %2909 = vmatpush1.msra.mxu0 0.0
    %2910 = vmatprep.subr.mxu0 0.0
    %2911 = vmatpush1.msra.mxu0 0.0
    %2912 = vmatprep.subr.mxu0 0.0
    %2913 = vmatpush1.msra.mxu0 0.0
    %2914 = vmatprep.subr.mxu0 0.0
    %2915 = vmatpush1.msra.mxu0 0.0
    %2916 = vmatprep.subr.mxu0 0.0
    %2917 = vmatpush1.msra.mxu0 0.0
    %2918 = vmatprep.subr.mxu0 0.0
    %2919 = vmatpush1.msra.mxu0 0.0
    %2920 = vmatprep.subr.mxu0 0.0
    %2921 = vmatpush1.msra.mxu0 0.0
    %2922 = vmatprep.subr.mxu0 0.0
    %2923 = vmatpush1.msra.mxu0 0.0
    %2924 = vmatprep.subr.mxu0 0.0
    %2925 = vmatpush1.msra.mxu0 0.0
    %2926 = vmatprep.subr.mxu0 0.0
    %2927 = vmatpush1.msra.mxu0 0.0
    %2928 = vmatprep.subr.mxu0 0.0
    %2929 = vmatpush1.msra.mxu0 0.0
    %2930 = vmatprep.subr.mxu0 0.0
    %2931 = vmatpush1.msra.mxu0 0.0
    %2932 = vmatprep.subr.mxu0 0.0
    %2933 = vmatpush1.msra.mxu0 0.0
    %2934 = vmatprep.subr.mxu0 0.0
    %2935 = vmatpush1.msra.mxu0 0.0
    %2936 = vmatprep.subr.mxu0 0.0
    %2937 = vmatpush1.msra.mxu0 0.0
    %2938 = vmatprep.subr.mxu0 0.0
    %2939 = vmatpush1.msra.mxu0 0.0
    %2940 = vmatprep.subr.mxu0 0.0
    %2941 = vmatpush1.msra.mxu0 0.0
    %2942 = vmatprep.subr.mxu0 0.0
    %2943 = vmatpush1.msra.mxu0 0.0
    %2944 = vmatprep.subr.mxu0 0.0
    %2945 = vmatpush1.msra.mxu0 0.0
    %2946 = vmatprep.subr.mxu0 0.0
    %2947 = vmatpush1.msra.mxu0 0.0
    %2948 = vmatprep.subr.mxu0 0.0
    %2949 = vmatpush1.msra.mxu0 0.0
    %2950 = vmatprep.subr.mxu0 0.0
    %2951 = vmatpush1.msra.mxu0 0.0
    %2952 = vmatprep.subr.mxu0 0.0
    %2953 = vmatpush1.msra.mxu0 0.0
    %2954 = vmatprep.subr.mxu0 0.0
    %2955 = vmatpush1.msra.mxu0 0.0
    %2956 = vmatprep.subr.mxu0 0.0
    %2957 = vmatpush1.msra.mxu0 0.0
    %2958 = vmatprep.subr.mxu0 0.0
    %2959 = vmatpush1.msra.mxu0 0.0
    %2960 = vmatprep.subr.mxu0 0.0
    %2961 = vmatpush1.msra.mxu0 0.0
    %2962 = vmatprep.subr.mxu0 0.0
    %2963 = vmatpush1.msra.mxu0 0.0
    %2964 = vmatprep.subr.mxu0 0.0
    %2965 = vmatpush1.msra.mxu0 0.0
    %2966 = vmatprep.mubr.f32.mxu0 0.0
    %v2967 = vand.u32 %v2719, 4294901760
    %v2968 = vsub.f32 %v2719, %v2967
    %2969 = vmatmul.mubr.f32.gmra.mrb[0].mxu0 %v2968
    %v2970 = vpop.f32.mrb[0].mxu0
    %v2971 = vadd.f32 %v2889, %v2970
    %v2972 = vpop.f32.mrb[0].mxu0
    %2973 = vmatprep.mubr.f32.mxu0 0.0
    %v2974 = vand.u32 %v2722, 4294901760
    %v2975 = vsub.f32 %v2722, %v2974
    %2976 = vmatmul.mubr.f32.gmra.mrb[0].mxu0 %v2975
    %v2977 = vpop.f32.mrb[0].mxu0
    %v2978 = vadd.f32 %v2895, %v2977
    %v2979 = vpop.f32.mrb[0].mxu0
    %2980 = vdwg.mxu0
    %2981 = vmatprep.subr.mxu0 0.0
    %v2982 = vand.u32 %v56, 4294901760
    %2983 = vmatpush1.msra.mxu0 %v2982
    %2984 = vmatprep.subr.mxu0 0.0
    %v2985 = vand.u32 %v57, 4294901760
    %2986 = vmatpush1.msra.mxu0 %v2985
    %2987 = vmatprep.subr.mxu0 0.0
    %2988 = vmatpush1.msra.mxu0 0.0
    %2989 = vmatprep.subr.mxu0 0.0
    %2990 = vmatpush1.msra.mxu0 0.0
    %2991 = vmatprep.subr.mxu0 0.0
    %2992 = vmatpush1.msra.mxu0 0.0
    %2993 = vmatprep.subr.mxu0 0.0
    %2994 = vmatpush1.msra.mxu0 0.0
    %2995 = vmatprep.subr.mxu0 0.0
    %2996 = vmatpush1.msra.mxu0 0.0
    %2997 = vmatprep.subr.mxu0 0.0
    %2998 = vmatpush1.msra.mxu0 0.0
    %2999 = vmatprep.subr.mxu0 0.0
    %3000 = vmatpush1.msra.mxu0 0.0
    %3001 = vmatprep.subr.mxu0 0.0
    %3002 = vmatpush1.msra.mxu0 0.0
    %3003 = vmatprep.subr.mxu0 0.0
    %3004 = vmatpush1.msra.mxu0 0.0
    %3005 = vmatprep.subr.mxu0 0.0
    %3006 = vmatpush1.msra.mxu0 0.0
    %3007 = vmatprep.subr.mxu0 0.0
    %3008 = vmatpush1.msra.mxu0 0.0
    %3009 = vmatprep.subr.mxu0 0.0
    %3010 = vmatpush1.msra.mxu0 0.0
    %3011 = vmatprep.subr.mxu0 0.0
    %3012 = vmatpush1.msra.mxu0 0.0
    %3013 = vmatprep.subr.mxu0 0.0
    %3014 = vmatpush1.msra.mxu0 0.0
    %3015 = vmatprep.subr.mxu0 0.0
    %3016 = vmatpush1.msra.mxu0 0.0
    %3017 = vmatprep.subr.mxu0 0.0
    %3018 = vmatpush1.msra.mxu0 0.0
    %3019 = vmatprep.subr.mxu0 0.0
    %3020 = vmatpush1.msra.mxu0 0.0
    %3021 = vmatprep.subr.mxu0 0.0
    %3022 = vmatpush1.msra.mxu0 0.0
    %3023 = vmatprep.subr.mxu0 0.0
    %3024 = vmatpush1.msra.mxu0 0.0
    %3025 = vmatprep.subr.mxu0 0.0
    %3026 = vmatpush1.msra.mxu0 0.0
    %3027 = vmatprep.subr.mxu0 0.0
    %3028 = vmatpush1.msra.mxu0 0.0
    %3029 = vmatprep.subr.mxu0 0.0
    %3030 = vmatpush1.msra.mxu0 0.0
    %3031 = vmatprep.subr.mxu0 0.0
    %3032 = vmatpush1.msra.mxu0 0.0
    %3033 = vmatprep.subr.mxu0 0.0
    %3034 = vmatpush1.msra.mxu0 0.0
    %3035 = vmatprep.subr.mxu0 0.0
    %3036 = vmatpush1.msra.mxu0 0.0
    %3037 = vmatprep.subr.mxu0 0.0
    %3038 = vmatpush1.msra.mxu0 0.0
    %3039 = vmatprep.subr.mxu0 0.0
    %3040 = vmatpush1.msra.mxu0 0.0
    %3041 = vmatprep.subr.mxu0 0.0
    %3042 = vmatpush1.msra.mxu0 0.0
    %3043 = vmatprep.subr.mxu0 0.0
    %3044 = vmatpush1.msra.mxu0 0.0
    %3045 = vmatprep.subr.mxu0 0.0
    %3046 = vmatpush1.msra.mxu0 0.0
    %3047 = vmatprep.mubr.f32.mxu0 0.0
    %v3048 = vand.u32 %v2719, 4294901760
    %v3049 = vsub.f32 %v2719, %v3048
    %v3050 = vand.u32 %v3049, 4294901760
    %3051 = vmatmul.mubr.f32.gmra.mrb[0].mxu0 %v3050
    %v3052 = vpop.f32.mrb[0].mxu0
    %v3053 = vadd.f32 %v2971, %v3052
    %v3054 = vpop.f32.mrb[0].mxu0
    %3055 = vmatprep.mubr.f32.mxu0 0.0
    %v3056 = vand.u32 %v2722, 4294901760
    %v3057 = vsub.f32 %v2722, %v3056
    %v3058 = vand.u32 %v3057, 4294901760
    %3059 = vmatmul.mubr.f32.gmra.mrb[0].mxu0 %v3058
    %v3060 = vpop.f32.mrb[0].mxu0
    %v3061 = vadd.f32 %v2978, %v3060
    %v3062 = vpop.f32.mrb[0].mxu0
    %3063 = vdwg.mxu0
    %3064 = vmatprep.subr.mxu0 0.0
    %v3065 = vand.u32 %v56, 4294901760
    %v3066 = vsub.f32 %v56, %v3065
    %v3067 = vand.u32 %v3066, 4294901760
    %3068 = vmatpush1.msra.mxu0 %v3067
    %3069 = vmatprep.subr.mxu0 0.0
    %v3070 = vand.u32 %v57, 4294901760
    %v3071 = vsub.f32 %v57, %v3070
    %v3072 = vand.u32 %v3071, 4294901760
    %3073 = vmatpush1.msra.mxu0 %v3072
    %3074 = vmatprep.subr.mxu0 0.0
    %3075 = vmatpush1.msra.mxu0 0.0
    %3076 = vmatprep.subr.mxu0 0.0
    %3077 = vmatpush1.msra.mxu0 0.0
    %3078 = vmatprep.subr.mxu0 0.0
    %3079 = vmatpush1.msra.mxu0 0.0
    %3080 = vmatprep.subr.mxu0 0.0
    %3081 = vmatpush1.msra.mxu0 0.0
    %3082 = vmatprep.subr.mxu0 0.0
    %3083 = vmatpush1.msra.mxu0 0.0
    %3084 = vmatprep.subr.mxu0 0.0
    %3085 = vmatpush1.msra.mxu0 0.0
    %3086 = vmatprep.subr.mxu0 0.0
    %3087 = vmatpush1.msra.mxu0 0.0
    %3088 = vmatprep.subr.mxu0 0.0
    %3089 = vmatpush1.msra.mxu0 0.0
    %3090 = vmatprep.subr.mxu0 0.0
    %3091 = vmatpush1.msra.mxu0 0.0
    %3092 = vmatprep.subr.mxu0 0.0
    %3093 = vmatpush1.msra.mxu0 0.0
    %3094 = vmatprep.subr.mxu0 0.0
    %3095 = vmatpush1.msra.mxu0 0.0
    %3096 = vmatprep.subr.mxu0 0.0
    %3097 = vmatpush1.msra.mxu0 0.0
    %3098 = vmatprep.subr.mxu0 0.0
    %3099 = vmatpush1.msra.mxu0 0.0
    %3100 = vmatprep.subr.mxu0 0.0
    %3101 = vmatpush1.msra.mxu0 0.0
    %3102 = vmatprep.subr.mxu0 0.0
    %3103 = vmatpush1.msra.mxu0 0.0
    %3104 = vmatprep.subr.mxu0 0.0
    %3105 = vmatpush1.msra.mxu0 0.0
    %3106 = vmatprep.subr.mxu0 0.0
    %3107 = vmatpush1.msra.mxu0 0.0
    %3108 = vmatprep.subr.mxu0 0.0
    %3109 = vmatpush1.msra.mxu0 0.0
    %3110 = vmatprep.subr.mxu0 0.0
    %3111 = vmatpush1.msra.mxu0 0.0
    %3112 = vmatprep.subr.mxu0 0.0
    %3113 = vmatpush1.msra.mxu0 0.0
    %3114 = vmatprep.subr.mxu0 0.0
    %3115 = vmatpush1.msra.mxu0 0.0
    %3116 = vmatprep.subr.mxu0 0.0
    %3117 = vmatpush1.msra.mxu0 0.0
    %3118 = vmatprep.subr.mxu0 0.0
    %3119 = vmatpush1.msra.mxu0 0.0
    %3120 = vmatprep.subr.mxu0 0.0
    %3121 = vmatpush1.msra.mxu0 0.0
    %3122 = vmatprep.subr.mxu0 0.0
    %3123 = vmatpush1.msra.mxu0 0.0
    %3124 = vmatprep.subr.mxu0 0.0
    %3125 = vmatpush1.msra.mxu0 0.0
    %3126 = vmatprep.subr.mxu0 0.0
    %3127 = vmatpush1.msra.mxu0 0.0
    %3128 = vmatprep.subr.mxu0 0.0
    %3129 = vmatpush1.msra.mxu0 0.0
    %3130 = vmatprep.subr.mxu0 0.0
    %3131 = vmatpush1.msra.mxu0 0.0
    %3132 = vmatprep.subr.mxu0 0.0
    %3133 = vmatpush1.msra.mxu0 0.0
    %3134 = vmatprep.mubr.f32.mxu0 0.0
    %v3135 = vand.u32 %v2719, 4294901760
    %3136 = vmatmul.mubr.f32.gmra.mrb[0].mxu0 %v3135
    %v3137 = vpop.f32.mrb[0].mxu0
    %v3138 = vadd.f32 %v3053, %v3137
    %v3139 = vpop.f32.mrb[0].mxu0
    %3140 = vmatprep.mubr.f32.mxu0 0.0
    %v3141 = vand.u32 %v2722, 4294901760
    %3142 = vmatmul.mubr.f32.gmra.mrb[0].mxu0 %v3141
    %v3143 = vpop.f32.mrb[0].mxu0
    %v3144 = vadd.f32 %v3061, %v3143
    %v3145 = vpop.f32.mrb[0].mxu0
    %3146 = vdwg.mxu0
    %3147 = vmatprep.subr.mxu0 0.0
    %v3148 = vand.u32 %v56, 4294901760
    %3149 = vmatpush1.msra.mxu0 %v3148
    %3150 = vmatprep.subr.mxu0 0.0
    %v3151 = vand.u32 %v57, 4294901760
    %3152 = vmatpush1.msra.mxu0 %v3151
    %3153 = vmatprep.subr.mxu0 0.0
    %3154 = vmatpush1.msra.mxu0 0.0
    %3155 = vmatprep.subr.mxu0 0.0
    %3156 = vmatpush1.msra.mxu0 0.0
    %3157 = vmatprep.subr.mxu0 0.0
    %3158 = vmatpush1.msra.mxu0 0.0
    %3159 = vmatprep.subr.mxu0 0.0
    %3160 = vmatpush1.msra.mxu0 0.0
    %3161 = vmatprep.subr.mxu0 0.0
    %3162 = vmatpush1.msra.mxu0 0.0
    %3163 = vmatprep.subr.mxu0 0.0
    %3164 = vmatpush1.msra.mxu0 0.0
    %3165 = vmatprep.subr.mxu0 0.0
    %3166 = vmatpush1.msra.mxu0 0.0
    %3167 = vmatprep.subr.mxu0 0.0
    %3168 = vmatpush1.msra.mxu0 0.0
    %3169 = vmatprep.subr.mxu0 0.0
    %3170 = vmatpush1.msra.mxu0 0.0
    %3171 = vmatprep.subr.mxu0 0.0
    %3172 = vmatpush1.msra.mxu0 0.0
    %3173 = vmatprep.subr.mxu0 0.0
    %3174 = vmatpush1.msra.mxu0 0.0
    %3175 = vmatprep.subr.mxu0 0.0
    %3176 = vmatpush1.msra.mxu0 0.0
    %3177 = vmatprep.subr.mxu0 0.0
    %3178 = vmatpush1.msra.mxu0 0.0
    %3179 = vmatprep.subr.mxu0 0.0
    %3180 = vmatpush1.msra.mxu0 0.0
    %3181 = vmatprep.subr.mxu0 0.0
    %3182 = vmatpush1.msra.mxu0 0.0
    %3183 = vmatprep.subr.mxu0 0.0
    %3184 = vmatpush1.msra.mxu0 0.0
    %3185 = vmatprep.subr.mxu0 0.0
    %3186 = vmatpush1.msra.mxu0 0.0
    %3187 = vmatprep.subr.mxu0 0.0
    %3188 = vmatpush1.msra.mxu0 0.0
    %3189 = vmatprep.subr.mxu0 0.0
    %3190 = vmatpush1.msra.mxu0 0.0
    %3191 = vmatprep.subr.mxu0 0.0
    %3192 = vmatpush1.msra.mxu0 0.0
    %3193 = vmatprep.subr.mxu0 0.0
    %3194 = vmatpush1.msra.mxu0 0.0
    %3195 = vmatprep.subr.mxu0 0.0
    %3196 = vmatpush1.msra.mxu0 0.0
    %3197 = vmatprep.subr.mxu0 0.0
    %3198 = vmatpush1.msra.mxu0 0.0
    %3199 = vmatprep.subr.mxu0 0.0
    %3200 = vmatpush1.msra.mxu0 0.0
    %3201 = vmatprep.subr.mxu0 0.0
    %3202 = vmatpush1.msra.mxu0 0.0
    %3203 = vmatprep.subr.mxu0 0.0
    %3204 = vmatpush1.msra.mxu0 0.0
    %3205 = vmatprep.subr.mxu0 0.0
    %3206 = vmatpush1.msra.mxu0 0.0
    %3207 = vmatprep.subr.mxu0 0.0
    %3208 = vmatpush1.msra.mxu0 0.0
    %3209 = vmatprep.subr.mxu0 0.0
    %3210 = vmatpush1.msra.mxu0 0.0
    %3211 = vmatprep.subr.mxu0 0.0
    %3212 = vmatpush1.msra.mxu0 0.0
    %3213 = vmatprep.mubr.f32.mxu0 0.0
    %v3214 = vand.u32 %v2719, 4294901760
    %3215 = vmatmul.mubr.f32.gmra.mrb[0].mxu0 %v3214
    %v3216 = vpop.f32.mrb[0].mxu0
    %v3217 = vadd.f32 %v3138, %v3216
    %v3218 = vpop.f32.mrb[0].mxu0
    %3219 = vmatprep.mubr.f32.mxu0 0.0
    %v3220 = vand.u32 %v2722, 4294901760
    %3221 = vmatmul.mubr.f32.gmra.mrb[0].mxu0 %v3220
    %v3222 = vpop.f32.mrb[0].mxu0
    %v3223 = vadd.f32 %v3144, %v3222
    %v3224 = vpop.f32.mrb[0].mxu0
    %3225 = vdwg.mxu0
    %v3226 = vmul.f32 %v3217, 0.04
    %v3227 = vmul.f32 %v3223, 0.04
    %3230 = vrot.lane.b32.xlu0 %v3226, 2
    %v3231 = vpop.permute.xlu0 %3230
    %3232 = vrot.lane.b32.xlu0 %v3227, 2
    %v3233 = vpop.permute.xlu0 %3232
    %v3236 = vsub.f32 %v2700, %v3231
    %v3237 = vsub.f32 %v2701, %v3233
    %v3238 = vld [vmem:[#allocation3 + $0x2] sm:$0xff]
    %v3239 = vld [vmem:[#allocation3 + $0xa] sm:$0xf]
    %v3240 = vld [vmem:[#allocation3] sm:$0xff]
    %v3241 = vld [vmem:[#allocation3 + $0x8] sm:$0xf]
    %v3242 = vld [vmem:[#allocation3 + $0x1] sm:$0xff]
    %v3243 = vld [vmem:[#allocation3 + $0x9] sm:$0xf]
    %v3244 = vadd.f32 %v3240, %v3242
    %v3245 = vadd.f32 %v3241, %v3243
    %v3246 = vadd.f32 %v3244, %v3238
    %v3247 = vadd.f32 %v3245, %v3239
    %v3248 = vld [vmem:[#allocation3 + $0x3] sm:$0xff]
    %v3249 = vld [vmem:[#allocation3 + $0xb] sm:$0xf]
    %v3250 = vadd.f32 %v3246, %v3248
    %v3251 = vadd.f32 %v3247, %v3249
    %v3252 = vld [vmem:[#allocation3 + $0x4] sm:$0xff]
    %v3253 = vld [vmem:[#allocation3 + $0xc] sm:$0xf]
    %v3254 = vadd.f32 %v3250, %v3252
    %v3255 = vadd.f32 %v3251, %v3253
    %v3257 = vsel %vm94, %v3254, 0
    %v3260 = vsel %vm94, %v3255, 0
    %3262 = vmatprep.subr.mxu0 0.0
    %v3263 = vand.u32 %v56, 4294901760
    %3264 = vmatpush1.msra.mxu0 %v3263
    %3265 = vmatprep.subr.mxu0 0.0
    %v3266 = vand.u32 %v57, 4294901760
    %3267 = vmatpush1.msra.mxu0 %v3266
    %3268 = vmatprep.subr.mxu0 0.0
    %3269 = vmatpush1.msra.mxu0 0.0
    %3270 = vmatprep.subr.mxu0 0.0
    %3271 = vmatpush1.msra.mxu0 0.0
    %3272 = vmatprep.subr.mxu0 0.0
    %3273 = vmatpush1.msra.mxu0 0.0
    %3274 = vmatprep.subr.mxu0 0.0
    %3275 = vmatpush1.msra.mxu0 0.0
    %3276 = vmatprep.subr.mxu0 0.0
    %3277 = vmatpush1.msra.mxu0 0.0
    %3278 = vmatprep.subr.mxu0 0.0
    %3279 = vmatpush1.msra.mxu0 0.0
    %3280 = vmatprep.subr.mxu0 0.0
    %3281 = vmatpush1.msra.mxu0 0.0
    %3282 = vmatprep.subr.mxu0 0.0
    %3283 = vmatpush1.msra.mxu0 0.0
    %3284 = vmatprep.subr.mxu0 0.0
    %3285 = vmatpush1.msra.mxu0 0.0
    %3286 = vmatprep.subr.mxu0 0.0
    %3287 = vmatpush1.msra.mxu0 0.0
    %3288 = vmatprep.subr.mxu0 0.0
    %3289 = vmatpush1.msra.mxu0 0.0
    %3290 = vmatprep.subr.mxu0 0.0
    %3291 = vmatpush1.msra.mxu0 0.0
    %3292 = vmatprep.subr.mxu0 0.0
    %3293 = vmatpush1.msra.mxu0 0.0
    %3294 = vmatprep.subr.mxu0 0.0
    %3295 = vmatpush1.msra.mxu0 0.0
    %3296 = vmatprep.subr.mxu0 0.0
    %3297 = vmatpush1.msra.mxu0 0.0
    %3298 = vmatprep.subr.mxu0 0.0
    %3299 = vmatpush1.msra.mxu0 0.0
    %3300 = vmatprep.subr.mxu0 0.0
    %3301 = vmatpush1.msra.mxu0 0.0
    %3302 = vmatprep.subr.mxu0 0.0
    %3303 = vmatpush1.msra.mxu0 0.0
    %3304 = vmatprep.subr.mxu0 0.0
    %3305 = vmatpush1.msra.mxu0 0.0
    %3306 = vmatprep.subr.mxu0 0.0
    %3307 = vmatpush1.msra.mxu0 0.0
    %3308 = vmatprep.subr.mxu0 0.0
    %3309 = vmatpush1.msra.mxu0 0.0
    %3310 = vmatprep.subr.mxu0 0.0
    %3311 = vmatpush1.msra.mxu0 0.0
    %3312 = vmatprep.subr.mxu0 0.0
    %3313 = vmatpush1.msra.mxu0 0.0
    %3314 = vmatprep.subr.mxu0 0.0
    %3315 = vmatpush1.msra.mxu0 0.0
    %3316 = vmatprep.subr.mxu0 0.0
    %3317 = vmatpush1.msra.mxu0 0.0
    %3318 = vmatprep.subr.mxu0 0.0
    %3319 = vmatpush1.msra.mxu0 0.0
    %3320 = vmatprep.subr.mxu0 0.0
    %3321 = vmatpush1.msra.mxu0 0.0
    %3322 = vmatprep.subr.mxu0 0.0
    %3323 = vmatpush1.msra.mxu0 0.0
    %3324 = vmatprep.subr.mxu0 0.0
    %3325 = vmatpush1.msra.mxu0 0.0
    %3326 = vmatprep.subr.mxu0 0.0
    %3327 = vmatpush1.msra.mxu0 0.0
    %3328 = vmatprep.mubr.f32.mxu0 0.0
    %v3329 = vand.u32 %v3257, 4294901760
    %v3330 = vsub.f32 %v3257, %v3329
    %v3331 = vand.u32 %v3330, 4294901760
    %v3332 = vsub.f32 %v3330, %v3331
    %v3333 = vand.u32 %v3332, 4294901760
    %3334 = vmatmul.mubr.f32.gmra.mrb[0].mxu0 %v3333
    %v3335 = vpop.f32.mrb[0].mxu0
    %v3336 = vadd.f32 0.0, %v3335
    %v3337 = vpop.f32.mrb[0].mxu0
    %3338 = vmatprep.mubr.f32.mxu0 0.0
    %v3339 = vand.u32 %v3260, 4294901760
    %v3340 = vsub.f32 %v3260, %v3339
    %v3341 = vand.u32 %v3340, 4294901760
    %v3342 = vsub.f32 %v3340, %v3341
    %v3343 = vand.u32 %v3342, 4294901760
    %3344 = vmatmul.mubr.f32.gmra.mrb[0].mxu0 %v3343
    %v3345 = vpop.f32.mrb[0].mxu0
    %v3346 = vadd.f32 0.0, %v3345
    %v3347 = vpop.f32.mrb[0].mxu0
    %3348 = vdwg.mxu0
    %3349 = vmatprep.subr.mxu0 0.0
    %v3350 = vand.u32 %v56, 4294901760
    %v3351 = vsub.f32 %v56, %v3350
    %v3352 = vand.u32 %v3351, 4294901760
    %v3353 = vsub.f32 %v3351, %v3352
    %v3354 = vand.u32 %v3353, 4294901760
    %3355 = vmatpush1.msra.mxu0 %v3354
    %3356 = vmatprep.subr.mxu0 0.0
    %v3357 = vand.u32 %v57, 4294901760
    %v3358 = vsub.f32 %v57, %v3357
    %v3359 = vand.u32 %v3358, 4294901760
    %v3360 = vsub.f32 %v3358, %v3359
    %v3361 = vand.u32 %v3360, 4294901760
    %3362 = vmatpush1.msra.mxu0 %v3361
    %3363 = vmatprep.subr.mxu0 0.0
    %3364 = vmatpush1.msra.mxu0 0.0
    %3365 = vmatprep.subr.mxu0 0.0
    %3366 = vmatpush1.msra.mxu0 0.0
    %3367 = vmatprep.subr.mxu0 0.0
    %3368 = vmatpush1.msra.mxu0 0.0
    %3369 = vmatprep.subr.mxu0 0.0
    %3370 = vmatpush1.msra.mxu0 0.0
    %3371 = vmatprep.subr.mxu0 0.0
    %3372 = vmatpush1.msra.mxu0 0.0
    %3373 = vmatprep.subr.mxu0 0.0
    %3374 = vmatpush1.msra.mxu0 0.0
    %3375 = vmatprep.subr.mxu0 0.0
    %3376 = vmatpush1.msra.mxu0 0.0
    %3377 = vmatprep.subr.mxu0 0.0
    %3378 = vmatpush1.msra.mxu0 0.0
    %3379 = vmatprep.subr.mxu0 0.0
    %3380 = vmatpush1.msra.mxu0 0.0
    %3381 = vmatprep.subr.mxu0 0.0
    %3382 = vmatpush1.msra.mxu0 0.0
    %3383 = vmatprep.subr.mxu0 0.0
    %3384 = vmatpush1.msra.mxu0 0.0
    %3385 = vmatprep.subr.mxu0 0.0
    %3386 = vmatpush1.msra.mxu0 0.0
    %3387 = vmatprep.subr.mxu0 0.0
    %3388 = vmatpush1.msra.mxu0 0.0
    %3389 = vmatprep.subr.mxu0 0.0
    %3390 = vmatpush1.msra.mxu0 0.0
    %3391 = vmatprep.subr.mxu0 0.0
    %3392 = vmatpush1.msra.mxu0 0.0
    %3393 = vmatprep.subr.mxu0 0.0
    %3394 = vmatpush1.msra.mxu0 0.0
    %3395 = vmatprep.subr.mxu0 0.0
    %3396 = vmatpush1.msra.mxu0 0.0
    %3397 = vmatprep.subr.mxu0 0.0
    %3398 = vmatpush1.msra.mxu0 0.0
    %3399 = vmatprep.subr.mxu0 0.0
    %3400 = vmatpush1.msra.mxu0 0.0
    %3401 = vmatprep.subr.mxu0 0.0
    %3402 = vmatpush1.msra.mxu0 0.0
    %3403 = vmatprep.subr.mxu0 0.0
    %3404 = vmatpush1.msra.mxu0 0.0
    %3405 = vmatprep.subr.mxu0 0.0
    %3406 = vmatpush1.msra.mxu0 0.0
    %3407 = vmatprep.subr.mxu0 0.0
    %3408 = vmatpush1.msra.mxu0 0.0
    %3409 = vmatprep.subr.mxu0 0.0
    %3410 = vmatpush1.msra.mxu0 0.0
    %3411 = vmatprep.subr.mxu0 0.0
    %3412 = vmatpush1.msra.mxu0 0.0
    %3413 = vmatprep.subr.mxu0 0.0
    %3414 = vmatpush1.msra.mxu0 0.0
    %3415 = vmatprep.subr.mxu0 0.0
    %3416 = vmatpush1.msra.mxu0 0.0
    %3417 = vmatprep.subr.mxu0 0.0
    %3418 = vmatpush1.msra.mxu0 0.0
    %3419 = vmatprep.subr.mxu0 0.0
    %3420 = vmatpush1.msra.mxu0 0.0
    %3421 = vmatprep.subr.mxu0 0.0
    %3422 = vmatpush1.msra.mxu0 0.0
    %3423 = vmatprep.mubr.f32.mxu0 0.0
    %v3424 = vand.u32 %v3257, 4294901760
    %3425 = vmatmul.mubr.f32.gmra.mrb[0].mxu0 %v3424
    %v3426 = vpop.f32.mrb[0].mxu0
    %v3427 = vadd.f32 %v3336, %v3426
    %v3428 = vpop.f32.mrb[0].mxu0
    %3429 = vmatprep.mubr.f32.mxu0 0.0
    %v3430 = vand.u32 %v3260, 4294901760
    %3431 = vmatmul.mubr.f32.gmra.mrb[0].mxu0 %v3430
    %v3432 = vpop.f32.mrb[0].mxu0
    %v3433 = vadd.f32 %v3346, %v3432
    %v3434 = vpop.f32.mrb[0].mxu0
    %3435 = vdwg.mxu0
    %3436 = vmatprep.subr.mxu0 0.0
    %v3437 = vand.u32 %v56, 4294901760
    %v3438 = vsub.f32 %v56, %v3437
    %3439 = vmatpush1.msra.mxu0 %v3438
    %3440 = vmatprep.subr.mxu0 0.0
    %v3441 = vand.u32 %v57, 4294901760
    %v3442 = vsub.f32 %v57, %v3441
    %3443 = vmatpush1.msra.mxu0 %v3442
    %3444 = vmatprep.subr.mxu0 0.0
    %3445 = vmatpush1.msra.mxu0 0.0
    %3446 = vmatprep.subr.mxu0 0.0
    %3447 = vmatpush1.msra.mxu0 0.0
    %3448 = vmatprep.subr.mxu0 0.0
    %3449 = vmatpush1.msra.mxu0 0.0
    %3450 = vmatprep.subr.mxu0 0.0
    %3451 = vmatpush1.msra.mxu0 0.0
    %3452 = vmatprep.subr.mxu0 0.0
    %3453 = vmatpush1.msra.mxu0 0.0
    %3454 = vmatprep.subr.mxu0 0.0
    %3455 = vmatpush1.msra.mxu0 0.0
    %3456 = vmatprep.subr.mxu0 0.0
    %3457 = vmatpush1.msra.mxu0 0.0
    %3458 = vmatprep.subr.mxu0 0.0
    %3459 = vmatpush1.msra.mxu0 0.0
    %3460 = vmatprep.subr.mxu0 0.0
    %3461 = vmatpush1.msra.mxu0 0.0
    %3462 = vmatprep.subr.mxu0 0.0
    %3463 = vmatpush1.msra.mxu0 0.0
    %3464 = vmatprep.subr.mxu0 0.0
    %3465 = vmatpush1.msra.mxu0 0.0
    %3466 = vmatprep.subr.mxu0 0.0
    %3467 = vmatpush1.msra.mxu0 0.0
    %3468 = vmatprep.subr.mxu0 0.0
    %3469 = vmatpush1.msra.mxu0 0.0
    %3470 = vmatprep.subr.mxu0 0.0
    %3471 = vmatpush1.msra.mxu0 0.0
    %3472 = vmatprep.subr.mxu0 0.0
    %3473 = vmatpush1.msra.mxu0 0.0
    %3474 = vmatprep.subr.mxu0 0.0
    %3475 = vmatpush1.msra.mxu0 0.0
    %3476 = vmatprep.subr.mxu0 0.0
    %3477 = vmatpush1.msra.mxu0 0.0
    %3478 = vmatprep.subr.mxu0 0.0
    %3479 = vmatpush1.msra.mxu0 0.0
    %3480 = vmatprep.subr.mxu0 0.0
    %3481 = vmatpush1.msra.mxu0 0.0
    %3482 = vmatprep.subr.mxu0 0.0
    %3483 = vmatpush1.msra.mxu0 0.0
    %3484 = vmatprep.subr.mxu0 0.0
    %3485 = vmatpush1.msra.mxu0 0.0
    %3486 = vmatprep.subr.mxu0 0.0
    %3487 = vmatpush1.msra.mxu0 0.0
    %3488 = vmatprep.subr.mxu0 0.0
    %3489 = vmatpush1.msra.mxu0 0.0
    %3490 = vmatprep.subr.mxu0 0.0
    %3491 = vmatpush1.msra.mxu0 0.0
    %3492 = vmatprep.subr.mxu0 0.0
    %3493 = vmatpush1.msra.mxu0 0.0
    %3494 = vmatprep.subr.mxu0 0.0
    %3495 = vmatpush1.msra.mxu0 0.0
    %3496 = vmatprep.subr.mxu0 0.0
    %3497 = vmatpush1.msra.mxu0 0.0
    %3498 = vmatprep.subr.mxu0 0.0
    %3499 = vmatpush1.msra.mxu0 0.0
    %3500 = vmatprep.subr.mxu0 0.0
    %3501 = vmatpush1.msra.mxu0 0.0
    %3502 = vmatprep.subr.mxu0 0.0
    %3503 = vmatpush1.msra.mxu0 0.0
    %3504 = vmatprep.mubr.f32.mxu0 0.0
    %v3505 = vand.u32 %v3257, 4294901760
    %v3506 = vsub.f32 %v3257, %v3505
    %3507 = vmatmul.mubr.f32.gmra.mrb[0].mxu0 %v3506
    %v3508 = vpop.f32.mrb[0].mxu0
    %v3509 = vadd.f32 %v3427, %v3508
    %v3510 = vpop.f32.mrb[0].mxu0
    %3511 = vmatprep.mubr.f32.mxu0 0.0
    %v3512 = vand.u32 %v3260, 4294901760
    %v3513 = vsub.f32 %v3260, %v3512
    %3514 = vmatmul.mubr.f32.gmra.mrb[0].mxu0 %v3513
    %v3515 = vpop.f32.mrb[0].mxu0
    %v3516 = vadd.f32 %v3433, %v3515
    %v3517 = vpop.f32.mrb[0].mxu0
    %3518 = vdwg.mxu0
    %3519 = vmatprep.subr.mxu0 0.0
    %v3520 = vand.u32 %v56, 4294901760
    %3521 = vmatpush1.msra.mxu0 %v3520
    %3522 = vmatprep.subr.mxu0 0.0
    %v3523 = vand.u32 %v57, 4294901760
    %3524 = vmatpush1.msra.mxu0 %v3523
    %3525 = vmatprep.subr.mxu0 0.0
    %3526 = vmatpush1.msra.mxu0 0.0
    %3527 = vmatprep.subr.mxu0 0.0
    %3528 = vmatpush1.msra.mxu0 0.0
    %3529 = vmatprep.subr.mxu0 0.0
    %3530 = vmatpush1.msra.mxu0 0.0
    %3531 = vmatprep.subr.mxu0 0.0
    %3532 = vmatpush1.msra.mxu0 0.0
    %3533 = vmatprep.subr.mxu0 0.0
    %3534 = vmatpush1.msra.mxu0 0.0
    %3535 = vmatprep.subr.mxu0 0.0
    %3536 = vmatpush1.msra.mxu0 0.0
    %3537 = vmatprep.subr.mxu0 0.0
    %3538 = vmatpush1.msra.mxu0 0.0
    %3539 = vmatprep.subr.mxu0 0.0
    %3540 = vmatpush1.msra.mxu0 0.0
    %3541 = vmatprep.subr.mxu0 0.0
    %3542 = vmatpush1.msra.mxu0 0.0
    %3543 = vmatprep.subr.mxu0 0.0
    %3544 = vmatpush1.msra.mxu0 0.0
    %3545 = vmatprep.subr.mxu0 0.0
    %3546 = vmatpush1.msra.mxu0 0.0
    %3547 = vmatprep.subr.mxu0 0.0
    %3548 = vmatpush1.msra.mxu0 0.0
    %3549 = vmatprep.subr.mxu0 0.0
    %3550 = vmatpush1.msra.mxu0 0.0
    %3551 = vmatprep.subr.mxu0 0.0
    %3552 = vmatpush1.msra.mxu0 0.0
    %3553 = vmatprep.subr.mxu0 0.0
    %3554 = vmatpush1.msra.mxu0 0.0
    %3555 = vmatprep.subr.mxu0 0.0
    %3556 = vmatpush1.msra.mxu0 0.0
    %3557 = vmatprep.subr.mxu0 0.0
    %3558 = vmatpush1.msra.mxu0 0.0
    %3559 = vmatprep.subr.mxu0 0.0
    %3560 = vmatpush1.msra.mxu0 0.0
    %3561 = vmatprep.subr.mxu0 0.0
    %3562 = vmatpush1.msra.mxu0 0.0
    %3563 = vmatprep.subr.mxu0 0.0
    %3564 = vmatpush1.msra.mxu0 0.0
    %3565 = vmatprep.subr.mxu0 0.0
    %3566 = vmatpush1.msra.mxu0 0.0
    %3567 = vmatprep.subr.mxu0 0.0
    %3568 = vmatpush1.msra.mxu0 0.0
    %3569 = vmatprep.subr.mxu0 0.0
    %3570 = vmatpush1.msra.mxu0 0.0
    %3571 = vmatprep.subr.mxu0 0.0
    %3572 = vmatpush1.msra.mxu0 0.0
    %3573 = vmatprep.subr.mxu0 0.0
    %3574 = vmatpush1.msra.mxu0 0.0
    %3575 = vmatprep.subr.mxu0 0.0
    %3576 = vmatpush1.msra.mxu0 0.0
    %3577 = vmatprep.subr.mxu0 0.0
    %3578 = vmatpush1.msra.mxu0 0.0
    %3579 = vmatprep.subr.mxu0 0.0
    %3580 = vmatpush1.msra.mxu0 0.0
    %3581 = vmatprep.subr.mxu0 0.0
    %3582 = vmatpush1.msra.mxu0 0.0
    %3583 = vmatprep.subr.mxu0 0.0
    %3584 = vmatpush1.msra.mxu0 0.0
    %3585 = vmatprep.mubr.f32.mxu0 0.0
    %v3586 = vand.u32 %v3257, 4294901760
    %v3587 = vsub.f32 %v3257, %v3586
    %v3588 = vand.u32 %v3587, 4294901760
    %3589 = vmatmul.mubr.f32.gmra.mrb[0].mxu0 %v3588
    %v3590 = vpop.f32.mrb[0].mxu0
    %v3591 = vadd.f32 %v3509, %v3590
    %v3592 = vpop.f32.mrb[0].mxu0
    %3593 = vmatprep.mubr.f32.mxu0 0.0
    %v3594 = vand.u32 %v3260, 4294901760
    %v3595 = vsub.f32 %v3260, %v3594
    %v3596 = vand.u32 %v3595, 4294901760
    %3597 = vmatmul.mubr.f32.gmra.mrb[0].mxu0 %v3596
    %v3598 = vpop.f32.mrb[0].mxu0
    %v3599 = vadd.f32 %v3516, %v3598
    %v3600 = vpop.f32.mrb[0].mxu0
    %3601 = vdwg.mxu0
    %3602 = vmatprep.subr.mxu0 0.0
    %v3603 = vand.u32 %v56, 4294901760
    %v3604 = vsub.f32 %v56, %v3603
    %v3605 = vand.u32 %v3604, 4294901760
    %3606 = vmatpush1.msra.mxu0 %v3605
    %3607 = vmatprep.subr.mxu0 0.0
    %v3608 = vand.u32 %v57, 4294901760
    %v3609 = vsub.f32 %v57, %v3608
    %v3610 = vand.u32 %v3609, 4294901760
    %3611 = vmatpush1.msra.mxu0 %v3610
    %3612 = vmatprep.subr.mxu0 0.0
    %3613 = vmatpush1.msra.mxu0 0.0
    %3614 = vmatprep.subr.mxu0 0.0
    %3615 = vmatpush1.msra.mxu0 0.0
    %3616 = vmatprep.subr.mxu0 0.0
    %3617 = vmatpush1.msra.mxu0 0.0
    %3618 = vmatprep.subr.mxu0 0.0
    %3619 = vmatpush1.msra.mxu0 0.0
    %3620 = vmatprep.subr.mxu0 0.0
    %3621 = vmatpush1.msra.mxu0 0.0
    %3622 = vmatprep.subr.mxu0 0.0
    %3623 = vmatpush1.msra.mxu0 0.0
    %3624 = vmatprep.subr.mxu0 0.0
    %3625 = vmatpush1.msra.mxu0 0.0
    %3626 = vmatprep.subr.mxu0 0.0
    %3627 = vmatpush1.msra.mxu0 0.0
    %3628 = vmatprep.subr.mxu0 0.0
    %3629 = vmatpush1.msra.mxu0 0.0
    %3630 = vmatprep.subr.mxu0 0.0
    %3631 = vmatpush1.msra.mxu0 0.0
    %3632 = vmatprep.subr.mxu0 0.0
    %3633 = vmatpush1.msra.mxu0 0.0
    %3634 = vmatprep.subr.mxu0 0.0
    %3635 = vmatpush1.msra.mxu0 0.0
    %3636 = vmatprep.subr.mxu0 0.0
    %3637 = vmatpush1.msra.mxu0 0.0
    %3638 = vmatprep.subr.mxu0 0.0
    %3639 = vmatpush1.msra.mxu0 0.0
    %3640 = vmatprep.subr.mxu0 0.0
    %3641 = vmatpush1.msra.mxu0 0.0
    %3642 = vmatprep.subr.mxu0 0.0
    %3643 = vmatpush1.msra.mxu0 0.0
    %3644 = vmatprep.subr.mxu0 0.0
    %3645 = vmatpush1.msra.mxu0 0.0
    %3646 = vmatprep.subr.mxu0 0.0
    %3647 = vmatpush1.msra.mxu0 0.0
    %3648 = vmatprep.subr.mxu0 0.0
    %3649 = vmatpush1.msra.mxu0 0.0
    %3650 = vmatprep.subr.mxu0 0.0
    %3651 = vmatpush1.msra.mxu0 0.0
    %3652 = vmatprep.subr.mxu0 0.0
    %3653 = vmatpush1.msra.mxu0 0.0
    %3654 = vmatprep.subr.mxu0 0.0
    %3655 = vmatpush1.msra.mxu0 0.0
    %3656 = vmatprep.subr.mxu0 0.0
    %3657 = vmatpush1.msra.mxu0 0.0
    %3658 = vmatprep.subr.mxu0 0.0
    %3659 = vmatpush1.msra.mxu0 0.0
    %3660 = vmatprep.subr.mxu0 0.0
    %3661 = vmatpush1.msra.mxu0 0.0
    %3662 = vmatprep.subr.mxu0 0.0
    %3663 = vmatpush1.msra.mxu0 0.0
    %3664 = vmatprep.subr.mxu0 0.0
    %3665 = vmatpush1.msra.mxu0 0.0
    %3666 = vmatprep.subr.mxu0 0.0
    %3667 = vmatpush1.msra.mxu0 0.0
    %3668 = vmatprep.subr.mxu0 0.0
    %3669 = vmatpush1.msra.mxu0 0.0
    %3670 = vmatprep.subr.mxu0 0.0
    %3671 = vmatpush1.msra.mxu0 0.0
    %3672 = vmatprep.mubr.f32.mxu0 0.0
    %v3673 = vand.u32 %v3257, 4294901760
    %3674 = vmatmul.mubr.f32.gmra.mrb[0].mxu0 %v3673
    %v3675 = vpop.f32.mrb[0].mxu0
    %v3676 = vadd.f32 %v3591, %v3675
    %v3677 = vpop.f32.mrb[0].mxu0
    %3678 = vmatprep.mubr.f32.mxu0 0.0
    %v3679 = vand.u32 %v3260, 4294901760
    %3680 = vmatmul.mubr.f32.gmra.mrb[0].mxu0 %v3679
    %v3681 = vpop.f32.mrb[0].mxu0
    %v3682 = vadd.f32 %v3599, %v3681
    %v3683 = vpop.f32.mrb[0].mxu0
    %3684 = vdwg.mxu0
    %3685 = vmatprep.subr.mxu0 0.0
    %v3686 = vand.u32 %v56, 4294901760
    %3687 = vmatpush1.msra.mxu0 %v3686
    %3688 = vmatprep.subr.mxu0 0.0
    %v3689 = vand.u32 %v57, 4294901760
    %3690 = vmatpush1.msra.mxu0 %v3689
    %3691 = vmatprep.subr.mxu0 0.0
    %3692 = vmatpush1.msra.mxu0 0.0
    %3693 = vmatprep.subr.mxu0 0.0
    %3694 = vmatpush1.msra.mxu0 0.0
    %3695 = vmatprep.subr.mxu0 0.0
    %3696 = vmatpush1.msra.mxu0 0.0
    %3697 = vmatprep.subr.mxu0 0.0
    %3698 = vmatpush1.msra.mxu0 0.0
    %3699 = vmatprep.subr.mxu0 0.0
    %3700 = vmatpush1.msra.mxu0 0.0
    %3701 = vmatprep.subr.mxu0 0.0
    %3702 = vmatpush1.msra.mxu0 0.0
    %3703 = vmatprep.subr.mxu0 0.0
    %3704 = vmatpush1.msra.mxu0 0.0
    %3705 = vmatprep.subr.mxu0 0.0
    %3706 = vmatpush1.msra.mxu0 0.0
    %3707 = vmatprep.subr.mxu0 0.0
    %3708 = vmatpush1.msra.mxu0 0.0
    %3709 = vmatprep.subr.mxu0 0.0
    %3710 = vmatpush1.msra.mxu0 0.0
    %3711 = vmatprep.subr.mxu0 0.0
    %3712 = vmatpush1.msra.mxu0 0.0
    %3713 = vmatprep.subr.mxu0 0.0
    %3714 = vmatpush1.msra.mxu0 0.0
    %3715 = vmatprep.subr.mxu0 0.0
    %3716 = vmatpush1.msra.mxu0 0.0
    %3717 = vmatprep.subr.mxu0 0.0
    %3718 = vmatpush1.msra.mxu0 0.0
    %3719 = vmatprep.subr.mxu0 0.0
    %3720 = vmatpush1.msra.mxu0 0.0
    %3721 = vmatprep.subr.mxu0 0.0
    %3722 = vmatpush1.msra.mxu0 0.0
    %3723 = vmatprep.subr.mxu0 0.0
    %3724 = vmatpush1.msra.mxu0 0.0
    %3725 = vmatprep.subr.mxu0 0.0
    %3726 = vmatpush1.msra.mxu0 0.0
    %3727 = vmatprep.subr.mxu0 0.0
    %3728 = vmatpush1.msra.mxu0 0.0
    %3729 = vmatprep.subr.mxu0 0.0
    %3730 = vmatpush1.msra.mxu0 0.0
    %3731 = vmatprep.subr.mxu0 0.0
    %3732 = vmatpush1.msra.mxu0 0.0
    %3733 = vmatprep.subr.mxu0 0.0
    %3734 = vmatpush1.msra.mxu0 0.0
    %3735 = vmatprep.subr.mxu0 0.0
    %3736 = vmatpush1.msra.mxu0 0.0
    %3737 = vmatprep.subr.mxu0 0.0
    %3738 = vmatpush1.msra.mxu0 0.0
    %3739 = vmatprep.subr.mxu0 0.0
    %3740 = vmatpush1.msra.mxu0 0.0
    %3741 = vmatprep.subr.mxu0 0.0
    %3742 = vmatpush1.msra.mxu0 0.0
    %3743 = vmatprep.subr.mxu0 0.0
    %3744 = vmatpush1.msra.mxu0 0.0
    %3745 = vmatprep.subr.mxu0 0.0
    %3746 = vmatpush1.msra.mxu0 0.0
    %3747 = vmatprep.subr.mxu0 0.0
    %3748 = vmatpush1.msra.mxu0 0.0
    %3749 = vmatprep.subr.mxu0 0.0
    %3750 = vmatpush1.msra.mxu0 0.0
    %3751 = vmatprep.mubr.f32.mxu0 0.0
    %v3752 = vand.u32 %v3257, 4294901760
    %3753 = vmatmul.mubr.f32.gmra.mrb[0].mxu0 %v3752
    %v3754 = vpop.f32.mrb[0].mxu0
    %v3755 = vadd.f32 %v3676, %v3754
    %v3756 = vpop.f32.mrb[0].mxu0
    %3757 = vmatprep.mubr.f32.mxu0 0.0
    %v3758 = vand.u32 %v3260, 4294901760
    %3759 = vmatmul.mubr.f32.gmra.mrb[0].mxu0 %v3758
    %v3760 = vpop.f32.mrb[0].mxu0
    %v3761 = vadd.f32 %v3682, %v3760
    %v3762 = vpop.f32.mrb[0].mxu0
    %3763 = vdwg.mxu0
    %v3764 = vmul.f32 %v3755, 0.04
    %v3765 = vmul.f32 %v3761, 0.04
    %3768 = vrot.lane.b32.xlu0 %v3764, 2
    %v3769 = vpop.permute.xlu0 %3768
    %3770 = vrot.lane.b32.xlu0 %v3765, 2
    %v3771 = vpop.permute.xlu0 %3770
    %v3774 = vsub.f32 %v3238, %v3769
    %v3775 = vsub.f32 %v3239, %v3771
    %v3776 = vmul.f32 %v3236, %v3774
    %v3777 = vmul.f32 %v3237, %v3775
    %3780 = vrot.lane.b32.xlu0 %v3776, 126
    %v3781 = vpop.permute.xlu0 %3780
    %3782 = vrot.lane.b32.xlu0 %v3777, 126
    %v3783 = vpop.permute.xlu0 %3782
    %3786 = vst.msk [vmem:[#allocation2] sm:$0xff] %vm1185, %v3781
    %3787 = vst.msk [vmem:[#allocation2 + $0x8] sm:$0xf] %vm1187, %v3783
    %v3788 = vld [vmem:[#allocation2] sm:$0xff]
    %v3789 = vld [vmem:[#allocation2 + $0x1] sm:$0xff]
    %v3790 = vadd.f32 %v3788, %v3789
    %v3791 = vld [vmem:[#allocation2 + $0x2] sm:$0xff]
    %v3792 = vadd.f32 %v3790, %v3791
    %v3793 = vld [vmem:[#allocation2 + $0x3] sm:$0xff]
    %v3794 = vadd.f32 %v3792, %v3793
    %v3795 = vld [vmem:[#allocation2 + $0x4] sm:$0xff]
    %v3796 = vadd.f32 %v3794, %v3795
    %v3798 = vsel %vm1185, %v3796, 0
    %3800 = vmatprep.subr.mxu0 0.0
    %v3801 = vand.u32 %v56, 4294901760
    %3802 = vmatpush1.msra.mxu0 %v3801
    %3803 = vmatprep.subr.mxu0 0.0
    %v3804 = vand.u32 %v1203, 4294901760
    %3805 = vmatpush1.msra.mxu0 %v3804
    %3806 = vmatprep.subr.mxu0 0.0
    %3807 = vmatpush1.msra.mxu0 0.0
    %3808 = vmatprep.subr.mxu0 0.0
    %3809 = vmatpush1.msra.mxu0 0.0
    %3810 = vmatprep.subr.mxu0 0.0
    %3811 = vmatpush1.msra.mxu0 0.0
    %3812 = vmatprep.subr.mxu0 0.0
    %3813 = vmatpush1.msra.mxu0 0.0
    %3814 = vmatprep.subr.mxu0 0.0
    %3815 = vmatpush1.msra.mxu0 0.0
    %3816 = vmatprep.subr.mxu0 0.0
    %3817 = vmatpush1.msra.mxu0 0.0
    %3818 = vmatprep.subr.mxu0 0.0
    %3819 = vmatpush1.msra.mxu0 0.0
    %3820 = vmatprep.subr.mxu0 0.0
    %3821 = vmatpush1.msra.mxu0 0.0
    %3822 = vmatprep.subr.mxu0 0.0
    %3823 = vmatpush1.msra.mxu0 0.0
    %3824 = vmatprep.subr.mxu0 0.0
    %3825 = vmatpush1.msra.mxu0 0.0
    %3826 = vmatprep.subr.mxu0 0.0
    %3827 = vmatpush1.msra.mxu0 0.0
    %3828 = vmatprep.subr.mxu0 0.0
    %3829 = vmatpush1.msra.mxu0 0.0
    %3830 = vmatprep.subr.mxu0 0.0
    %3831 = vmatpush1.msra.mxu0 0.0
    %3832 = vmatprep.subr.mxu0 0.0
    %3833 = vmatpush1.msra.mxu0 0.0
    %3834 = vmatprep.subr.mxu0 0.0
    %3835 = vmatpush1.msra.mxu0 0.0
    %3836 = vmatprep.subr.mxu0 0.0
    %3837 = vmatpush1.msra.mxu0 0.0
    %3838 = vmatprep.subr.mxu0 0.0
    %3839 = vmatpush1.msra.mxu0 0.0
    %3840 = vmatprep.subr.mxu0 0.0
    %3841 = vmatpush1.msra.mxu0 0.0
    %3842 = vmatprep.subr.mxu0 0.0
    %3843 = vmatpush1.msra.mxu0 0.0
    %3844 = vmatprep.subr.mxu0 0.0
    %3845 = vmatpush1.msra.mxu0 0.0
    %3846 = vmatprep.subr.mxu0 0.0
    %3847 = vmatpush1.msra.mxu0 0.0
    %3848 = vmatprep.subr.mxu0 0.0
    %3849 = vmatpush1.msra.mxu0 0.0
    %3850 = vmatprep.subr.mxu0 0.0
    %3851 = vmatpush1.msra.mxu0 0.0
    %3852 = vmatprep.subr.mxu0 0.0
    %3853 = vmatpush1.msra.mxu0 0.0
    %3854 = vmatprep.subr.mxu0 0.0
    %3855 = vmatpush1.msra.mxu0 0.0
    %3856 = vmatprep.subr.mxu0 0.0
    %3857 = vmatpush1.msra.mxu0 0.0
    %3858 = vmatprep.subr.mxu0 0.0
    %3859 = vmatpush1.msra.mxu0 0.0
    %3860 = vmatprep.subr.mxu0 0.0
    %3861 = vmatpush1.msra.mxu0 0.0
    %3862 = vmatprep.subr.mxu0 0.0
    %3863 = vmatpush1.msra.mxu0 0.0
    %3864 = vmatprep.subr.mxu0 0.0
    %3865 = vmatpush1.msra.mxu0 0.0
    %3866 = vmatprep.mubr.f32.mxu0 0.0
    %v3867 = vand.u32 %v3798, 4294901760
    %v3868 = vsub.f32 %v3798, %v3867
    %v3869 = vand.u32 %v3868, 4294901760
    %v3870 = vsub.f32 %v3868, %v3869
    %v3871 = vand.u32 %v3870, 4294901760
    %3872 = vmatmul.mubr.f32.gmra.mrb[0].mxu0 %v3871
    %v3873 = vpop.f32.mrb[0].mxu0
    %v3874 = vadd.f32 0.0, %v3873
    %v3875 = vpop.f32.mrb[0].mxu0
    %3876 = vdwg.mxu0
    %3877 = vmatprep.subr.mxu0 0.0
    %v3878 = vand.u32 %v56, 4294901760
    %v3879 = vsub.f32 %v56, %v3878
    %v3880 = vand.u32 %v3879, 4294901760
    %v3881 = vsub.f32 %v3879, %v3880
    %v3882 = vand.u32 %v3881, 4294901760
    %3883 = vmatpush1.msra.mxu0 %v3882
    %3884 = vmatprep.subr.mxu0 0.0
    %v3885 = vand.u32 %v1203, 4294901760
    %v3886 = vsub.f32 %v1203, %v3885
    %v3887 = vand.u32 %v3886, 4294901760
    %v3888 = vsub.f32 %v3886, %v3887
    %v3889 = vand.u32 %v3888, 4294901760
    %3890 = vmatpush1.msra.mxu0 %v3889
    %3891 = vmatprep.subr.mxu0 0.0
    %3892 = vmatpush1.msra.mxu0 0.0
    %3893 = vmatprep.subr.mxu0 0.0
    %3894 = vmatpush1.msra.mxu0 0.0
    %3895 = vmatprep.subr.mxu0 0.0
    %3896 = vmatpush1.msra.mxu0 0.0
    %3897 = vmatprep.subr.mxu0 0.0
    %3898 = vmatpush1.msra.mxu0 0.0
    %3899 = vmatprep.subr.mxu0 0.0
    %3900 = vmatpush1.msra.mxu0 0.0
    %3901 = vmatprep.subr.mxu0 0.0
    %3902 = vmatpush1.msra.mxu0 0.0
    %3903 = vmatprep.subr.mxu0 0.0
    %3904 = vmatpush1.msra.mxu0 0.0
    %3905 = vmatprep.subr.mxu0 0.0
    %3906 = vmatpush1.msra.mxu0 0.0
    %3907 = vmatprep.subr.mxu0 0.0
    %3908 = vmatpush1.msra.mxu0 0.0
    %3909 = vmatprep.subr.mxu0 0.0
    %3910 = vmatpush1.msra.mxu0 0.0
    %3911 = vmatprep.subr.mxu0 0.0
    %3912 = vmatpush1.msra.mxu0 0.0
    %3913 = vmatprep.subr.mxu0 0.0
    %3914 = vmatpush1.msra.mxu0 0.0
    %3915 = vmatprep.subr.mxu0 0.0
    %3916 = vmatpush1.msra.mxu0 0.0
    %3917 = vmatprep.subr.mxu0 0.0
    %3918 = vmatpush1.msra.mxu0 0.0
    %3919 = vmatprep.subr.mxu0 0.0
    %3920 = vmatpush1.msra.mxu0 0.0
    %3921 = vmatprep.subr.mxu0 0.0
    %3922 = vmatpush1.msra.mxu0 0.0
    %3923 = vmatprep.subr.mxu0 0.0
    %3924 = vmatpush1.msra.mxu0 0.0
    %3925 = vmatprep.subr.mxu0 0.0
    %3926 = vmatpush1.msra.mxu0 0.0
    %3927 = vmatprep.subr.mxu0 0.0
    %3928 = vmatpush1.msra.mxu0 0.0
    %3929 = vmatprep.subr.mxu0 0.0
    %3930 = vmatpush1.msra.mxu0 0.0
    %3931 = vmatprep.subr.mxu0 0.0
    %3932 = vmatpush1.msra.mxu0 0.0
    %3933 = vmatprep.subr.mxu0 0.0
    %3934 = vmatpush1.msra.mxu0 0.0
    %3935 = vmatprep.subr.mxu0 0.0
    %3936 = vmatpush1.msra.mxu0 0.0
    %3937 = vmatprep.subr.mxu0 0.0
    %3938 = vmatpush1.msra.mxu0 0.0
    %3939 = vmatprep.subr.mxu0 0.0
    %3940 = vmatpush1.msra.mxu0 0.0
    %3941 = vmatprep.subr.mxu0 0.0
    %3942 = vmatpush1.msra.mxu0 0.0
    %3943 = vmatprep.subr.mxu0 0.0
    %3944 = vmatpush1.msra.mxu0 0.0
    %3945 = vmatprep.subr.mxu0 0.0
    %3946 = vmatpush1.msra.mxu0 0.0
    %3947 = vmatprep.subr.mxu0 0.0
    %3948 = vmatpush1.msra.mxu0 0.0
    %3949 = vmatprep.subr.mxu0 0.0
    %3950 = vmatpush1.msra.mxu0 0.0
    %3951 = vmatprep.mubr.f32.mxu0 0.0
    %v3952 = vand.u32 %v3798, 4294901760
    %3953 = vmatmul.mubr.f32.gmra.mrb[0].mxu0 %v3952
    %v3954 = vpop.f32.mrb[0].mxu0
    %v3955 = vadd.f32 %v3874, %v3954
    %v3956 = vpop.f32.mrb[0].mxu0
    %3957 = vdwg.mxu0
    %3958 = vmatprep.subr.mxu0 0.0
    %v3959 = vand.u32 %v56, 4294901760
    %v3960 = vsub.f32 %v56, %v3959
    %3961 = vmatpush1.msra.mxu0 %v3960
    %3962 = vmatprep.subr.mxu0 0.0
    %v3963 = vand.u32 %v1203, 4294901760
    %v3964 = vsub.f32 %v1203, %v3963
    %3965 = vmatpush1.msra.mxu0 %v3964
    %3966 = vmatprep.subr.mxu0 0.0
    %3967 = vmatpush1.msra.mxu0 0.0
    %3968 = vmatprep.subr.mxu0 0.0
    %3969 = vmatpush1.msra.mxu0 0.0
    %3970 = vmatprep.subr.mxu0 0.0
    %3971 = vmatpush1.msra.mxu0 0.0
    %3972 = vmatprep.subr.mxu0 0.0
    %3973 = vmatpush1.msra.mxu0 0.0
    %3974 = vmatprep.subr.mxu0 0.0
    %3975 = vmatpush1.msra.mxu0 0.0
    %3976 = vmatprep.subr.mxu0 0.0
    %3977 = vmatpush1.msra.mxu0 0.0
    %3978 = vmatprep.subr.mxu0 0.0
    %3979 = vmatpush1.msra.mxu0 0.0
    %3980 = vmatprep.subr.mxu0 0.0
    %3981 = vmatpush1.msra.mxu0 0.0
    %3982 = vmatprep.subr.mxu0 0.0
    %3983 = vmatpush1.msra.mxu0 0.0
    %3984 = vmatprep.subr.mxu0 0.0
    %3985 = vmatpush1.msra.mxu0 0.0
    %3986 = vmatprep.subr.mxu0 0.0
    %3987 = vmatpush1.msra.mxu0 0.0
    %3988 = vmatprep.subr.mxu0 0.0
    %3989 = vmatpush1.msra.mxu0 0.0
    %3990 = vmatprep.subr.mxu0 0.0
    %3991 = vmatpush1.msra.mxu0 0.0
    %3992 = vmatprep.subr.mxu0 0.0
    %3993 = vmatpush1.msra.mxu0 0.0
    %3994 = vmatprep.subr.mxu0 0.0
    %3995 = vmatpush1.msra.mxu0 0.0
    %3996 = vmatprep.subr.mxu0 0.0
    %3997 = vmatpush1.msra.mxu0 0.0
    %3998 = vmatprep.subr.mxu0 0.0
    %3999 = vmatpush1.msra.mxu0 0.0
    %4000 = vmatprep.subr.mxu0 0.0
    %4001 = vmatpush1.msra.mxu0 0.0
    %4002 = vmatprep.subr.mxu0 0.0
    %4003 = vmatpush1.msra.mxu0 0.0
    %4004 = vmatprep.subr.mxu0 0.0
    %4005 = vmatpush1.msra.mxu0 0.0
    %4006 = vmatprep.subr.mxu0 0.0
    %4007 = vmatpush1.msra.mxu0 0.0
    %4008 = vmatprep.subr.mxu0 0.0
    %4009 = vmatpush1.msra.mxu0 0.0
    %4010 = vmatprep.subr.mxu0 0.0
    %4011 = vmatpush1.msra.mxu0 0.0
    %4012 = vmatprep.subr.mxu0 0.0
    %4013 = vmatpush1.msra.mxu0 0.0
    %4014 = vmatprep.subr.mxu0 0.0
    %4015 = vmatpush1.msra.mxu0 0.0
    %4016 = vmatprep.subr.mxu0 0.0
    %4017 = vmatpush1.msra.mxu0 0.0
    %4018 = vmatprep.subr.mxu0 0.0
    %4019 = vmatpush1.msra.mxu0 0.0
    %4020 = vmatprep.subr.mxu0 0.0
    %4021 = vmatpush1.msra.mxu0 0.0
    %4022 = vmatprep.subr.mxu0 0.0
    %4023 = vmatpush1.msra.mxu0 0.0
    %4024 = vmatprep.subr.mxu0 0.0
    %4025 = vmatpush1.msra.mxu0 0.0
    %4026 = vmatprep.mubr.f32.mxu0 0.0
    %v4027 = vand.u32 %v3798, 4294901760
    %v4028 = vsub.f32 %v3798, %v4027
    %4029 = vmatmul.mubr.f32.gmra.mrb[0].mxu0 %v4028
    %v4030 = vpop.f32.mrb[0].mxu0
    %v4031 = vadd.f32 %v3955, %v4030
    %v4032 = vpop.f32.mrb[0].mxu0
    %4033 = vdwg.mxu0
    %4034 = vmatprep.subr.mxu0 0.0
    %v4035 = vand.u32 %v56, 4294901760
    %4036 = vmatpush1.msra.mxu0 %v4035
    %4037 = vmatprep.subr.mxu0 0.0
    %v4038 = vand.u32 %v1203, 4294901760
    %4039 = vmatpush1.msra.mxu0 %v4038
    %4040 = vmatprep.subr.mxu0 0.0
    %4041 = vmatpush1.msra.mxu0 0.0
    %4042 = vmatprep.subr.mxu0 0.0
    %4043 = vmatpush1.msra.mxu0 0.0
    %4044 = vmatprep.subr.mxu0 0.0
    %4045 = vmatpush1.msra.mxu0 0.0
    %4046 = vmatprep.subr.mxu0 0.0
    %4047 = vmatpush1.msra.mxu0 0.0
    %4048 = vmatprep.subr.mxu0 0.0
    %4049 = vmatpush1.msra.mxu0 0.0
    %4050 = vmatprep.subr.mxu0 0.0
    %4051 = vmatpush1.msra.mxu0 0.0
    %4052 = vmatprep.subr.mxu0 0.0
    %4053 = vmatpush1.msra.mxu0 0.0
    %4054 = vmatprep.subr.mxu0 0.0
    %4055 = vmatpush1.msra.mxu0 0.0
    %4056 = vmatprep.subr.mxu0 0.0
    %4057 = vmatpush1.msra.mxu0 0.0
    %4058 = vmatprep.subr.mxu0 0.0
    %4059 = vmatpush1.msra.mxu0 0.0
    %4060 = vmatprep.subr.mxu0 0.0
    %4061 = vmatpush1.msra.mxu0 0.0
    %4062 = vmatprep.subr.mxu0 0.0
    %4063 = vmatpush1.msra.mxu0 0.0
    %4064 = vmatprep.subr.mxu0 0.0
    %4065 = vmatpush1.msra.mxu0 0.0
    %4066 = vmatprep.subr.mxu0 0.0
    %4067 = vmatpush1.msra.mxu0 0.0
    %4068 = vmatprep.subr.mxu0 0.0
    %4069 = vmatpush1.msra.mxu0 0.0
    %4070 = vmatprep.subr.mxu0 0.0
    %4071 = vmatpush1.msra.mxu0 0.0
    %4072 = vmatprep.subr.mxu0 0.0
    %4073 = vmatpush1.msra.mxu0 0.0
    %4074 = vmatprep.subr.mxu0 0.0
    %4075 = vmatpush1.msra.mxu0 0.0
    %4076 = vmatprep.subr.mxu0 0.0
    %4077 = vmatpush1.msra.mxu0 0.0
    %4078 = vmatprep.subr.mxu0 0.0
    %4079 = vmatpush1.msra.mxu0 0.0
    %4080 = vmatprep.subr.mxu0 0.0
    %4081 = vmatpush1.msra.mxu0 0.0
    %4082 = vmatprep.subr.mxu0 0.0
    %4083 = vmatpush1.msra.mxu0 0.0
    %4084 = vmatprep.subr.mxu0 0.0
    %4085 = vmatpush1.msra.mxu0 0.0
    %4086 = vmatprep.subr.mxu0 0.0
    %4087 = vmatpush1.msra.mxu0 0.0
    %4088 = vmatprep.subr.mxu0 0.0
    %4089 = vmatpush1.msra.mxu0 0.0
    %4090 = vmatprep.subr.mxu0 0.0
    %4091 = vmatpush1.msra.mxu0 0.0
    %4092 = vmatprep.subr.mxu0 0.0
    %4093 = vmatpush1.msra.mxu0 0.0
    %4094 = vmatprep.subr.mxu0 0.0
    %4095 = vmatpush1.msra.mxu0 0.0
    %4096 = vmatprep.subr.mxu0 0.0
    %4097 = vmatpush1.msra.mxu0 0.0
    %4098 = vmatprep.subr.mxu0 0.0
    %4099 = vmatpush1.msra.mxu0 0.0
    %4100 = vmatprep.mubr.f32.mxu0 0.0
    %v4101 = vand.u32 %v3798, 4294901760
    %v4102 = vsub.f32 %v3798, %v4101
    %v4103 = vand.u32 %v4102, 4294901760
    %4104 = vmatmul.mubr.f32.gmra.mrb[0].mxu0 %v4103
    %v4105 = vpop.f32.mrb[0].mxu0
    %v4106 = vadd.f32 %v4031, %v4105
    %v4107 = vpop.f32.mrb[0].mxu0
    %4108 = vdwg.mxu0
    %4109 = vmatprep.subr.mxu0 0.0
    %v4110 = vand.u32 %v56, 4294901760
    %v4111 = vsub.f32 %v56, %v4110
    %v4112 = vand.u32 %v4111, 4294901760
    %4113 = vmatpush1.msra.mxu0 %v4112
    %4114 = vmatprep.subr.mxu0 0.0
    %v4115 = vand.u32 %v1203, 4294901760
    %v4116 = vsub.f32 %v1203, %v4115
    %v4117 = vand.u32 %v4116, 4294901760
    %4118 = vmatpush1.msra.mxu0 %v4117
    %4119 = vmatprep.subr.mxu0 0.0
    %4120 = vmatpush1.msra.mxu0 0.0
    %4121 = vmatprep.subr.mxu0 0.0
    %4122 = vmatpush1.msra.mxu0 0.0
    %4123 = vmatprep.subr.mxu0 0.0
    %4124 = vmatpush1.msra.mxu0 0.0
    %4125 = vmatprep.subr.mxu0 0.0
    %4126 = vmatpush1.msra.mxu0 0.0
    %4127 = vmatprep.subr.mxu0 0.0
    %4128 = vmatpush1.msra.mxu0 0.0
    %4129 = vmatprep.subr.mxu0 0.0
    %4130 = vmatpush1.msra.mxu0 0.0
    %4131 = vmatprep.subr.mxu0 0.0
    %4132 = vmatpush1.msra.mxu0 0.0
    %4133 = vmatprep.subr.mxu0 0.0
    %4134 = vmatpush1.msra.mxu0 0.0
    %4135 = vmatprep.subr.mxu0 0.0
    %4136 = vmatpush1.msra.mxu0 0.0
    %4137 = vmatprep.subr.mxu0 0.0
    %4138 = vmatpush1.msra.mxu0 0.0
    %4139 = vmatprep.subr.mxu0 0.0
    %4140 = vmatpush1.msra.mxu0 0.0
    %4141 = vmatprep.subr.mxu0 0.0
    %4142 = vmatpush1.msra.mxu0 0.0
    %4143 = vmatprep.subr.mxu0 0.0
    %4144 = vmatpush1.msra.mxu0 0.0
    %4145 = vmatprep.subr.mxu0 0.0
    %4146 = vmatpush1.msra.mxu0 0.0
    %4147 = vmatprep.subr.mxu0 0.0
    %4148 = vmatpush1.msra.mxu0 0.0
    %4149 = vmatprep.subr.mxu0 0.0
    %4150 = vmatpush1.msra.mxu0 0.0
    %4151 = vmatprep.subr.mxu0 0.0
    %4152 = vmatpush1.msra.mxu0 0.0
    %4153 = vmatprep.subr.mxu0 0.0
    %4154 = vmatpush1.msra.mxu0 0.0
    %4155 = vmatprep.subr.mxu0 0.0
    %4156 = vmatpush1.msra.mxu0 0.0
    %4157 = vmatprep.subr.mxu0 0.0
    %4158 = vmatpush1.msra.mxu0 0.0
    %4159 = vmatprep.subr.mxu0 0.0
    %4160 = vmatpush1.msra.mxu0 0.0
    %4161 = vmatprep.subr.mxu0 0.0
    %4162 = vmatpush1.msra.mxu0 0.0
    %4163 = vmatprep.subr.mxu0 0.0
    %4164 = vmatpush1.msra.mxu0 0.0
    %4165 = vmatprep.subr.mxu0 0.0
    %4166 = vmatpush1.msra.mxu0 0.0
    %4167 = vmatprep.subr.mxu0 0.0
    %4168 = vmatpush1.msra.mxu0 0.0
    %4169 = vmatprep.subr.mxu0 0.0
    %4170 = vmatpush1.msra.mxu0 0.0
    %4171 = vmatprep.subr.mxu0 0.0
    %4172 = vmatpush1.msra.mxu0 0.0
    %4173 = vmatprep.subr.mxu0 0.0
    %4174 = vmatpush1.msra.mxu0 0.0
    %4175 = vmatprep.subr.mxu0 0.0
    %4176 = vmatpush1.msra.mxu0 0.0
    %4177 = vmatprep.subr.mxu0 0.0
    %4178 = vmatpush1.msra.mxu0 0.0
    %4179 = vmatprep.mubr.f32.mxu0 0.0
    %v4180 = vand.u32 %v3798, 4294901760
    %4181 = vmatmul.mubr.f32.gmra.mrb[0].mxu0 %v4180
    %v4182 = vpop.f32.mrb[0].mxu0
    %v4183 = vadd.f32 %v4106, %v4182
    %v4184 = vpop.f32.mrb[0].mxu0
    %4185 = vdwg.mxu0
    %4186 = vmatprep.subr.mxu0 0.0
    %v4187 = vand.u32 %v56, 4294901760
    %4188 = vmatpush1.msra.mxu0 %v4187
    %4189 = vmatprep.subr.mxu0 0.0
    %v4190 = vand.u32 %v1203, 4294901760
    %4191 = vmatpush1.msra.mxu0 %v4190
    %4192 = vmatprep.subr.mxu0 0.0
    %4193 = vmatpush1.msra.mxu0 0.0
    %4194 = vmatprep.subr.mxu0 0.0
    %4195 = vmatpush1.msra.mxu0 0.0
    %4196 = vmatprep.subr.mxu0 0.0
    %4197 = vmatpush1.msra.mxu0 0.0
    %4198 = vmatprep.subr.mxu0 0.0
    %4199 = vmatpush1.msra.mxu0 0.0
    %4200 = vmatprep.subr.mxu0 0.0
    %4201 = vmatpush1.msra.mxu0 0.0
    %4202 = vmatprep.subr.mxu0 0.0
    %4203 = vmatpush1.msra.mxu0 0.0
    %4204 = vmatprep.subr.mxu0 0.0
    %4205 = vmatpush1.msra.mxu0 0.0
    %4206 = vmatprep.subr.mxu0 0.0
    %4207 = vmatpush1.msra.mxu0 0.0
    %4208 = vmatprep.subr.mxu0 0.0
    %4209 = vmatpush1.msra.mxu0 0.0
    %4210 = vmatprep.subr.mxu0 0.0
    %4211 = vmatpush1.msra.mxu0 0.0
    %4212 = vmatprep.subr.mxu0 0.0
    %4213 = vmatpush1.msra.mxu0 0.0
    %4214 = vmatprep.subr.mxu0 0.0
    %4215 = vmatpush1.msra.mxu0 0.0
    %4216 = vmatprep.subr.mxu0 0.0
    %4217 = vmatpush1.msra.mxu0 0.0
    %4218 = vmatprep.subr.mxu0 0.0
    %4219 = vmatpush1.msra.mxu0 0.0
    %4220 = vmatprep.subr.mxu0 0.0
    %4221 = vmatpush1.msra.mxu0 0.0
    %4222 = vmatprep.subr.mxu0 0.0
    %4223 = vmatpush1.msra.mxu0 0.0
    %4224 = vmatprep.subr.mxu0 0.0
    %4225 = vmatpush1.msra.mxu0 0.0
    %4226 = vmatprep.subr.mxu0 0.0
    %4227 = vmatpush1.msra.mxu0 0.0
    %4228 = vmatprep.subr.mxu0 0.0
    %4229 = vmatpush1.msra.mxu0 0.0
    %4230 = vmatprep.subr.mxu0 0.0
    %4231 = vmatpush1.msra.mxu0 0.0
    %4232 = vmatprep.subr.mxu0 0.0
    %4233 = vmatpush1.msra.mxu0 0.0
    %4234 = vmatprep.subr.mxu0 0.0
    %4235 = vmatpush1.msra.mxu0 0.0
    %4236 = vmatprep.subr.mxu0 0.0
    %4237 = vmatpush1.msra.mxu0 0.0
    %4238 = vmatprep.subr.mxu0 0.0
    %4239 = vmatpush1.msra.mxu0 0.0
    %4240 = vmatprep.subr.mxu0 0.0
    %4241 = vmatpush1.msra.mxu0 0.0
    %4242 = vmatprep.subr.mxu0 0.0
    %4243 = vmatpush1.msra.mxu0 0.0
    %4244 = vmatprep.subr.mxu0 0.0
    %4245 = vmatpush1.msra.mxu0 0.0
    %4246 = vmatprep.subr.mxu0 0.0
    %4247 = vmatpush1.msra.mxu0 0.0
    %4248 = vmatprep.subr.mxu0 0.0
    %4249 = vmatpush1.msra.mxu0 0.0
    %4250 = vmatprep.subr.mxu0 0.0
    %4251 = vmatpush1.msra.mxu0 0.0
    %4252 = vmatprep.mubr.f32.mxu0 0.0
    %v4253 = vand.u32 %v3798, 4294901760
    %4254 = vmatmul.mubr.f32.gmra.mrb[0].mxu0 %v4253
    %v4255 = vpop.f32.mrb[0].mxu0
    %v4256 = vadd.f32 %v4183, %v4255
    %v4257 = vpop.f32.mrb[0].mxu0
    %4258 = vdwg.mxu0
    %v4259 = vmul.f32 %v4256, 0.04
    %v4260 = vmul.f32 %v4259, %v4259
    %v4261 = vsel %vm1666, %v4260, 0.0
    %4262 = vadd.xlane.f32.xlu0 %v4261
    %v4263 = vpop.xlane.xlu0 %4262
    %v4264 = vrot.slane %v4263, 4
    %v4265 = vadd.f32 %v4263, %v4264
    %v4266 = vrot.slane %v4265, 2
    %v4267 = vadd.f32 %v4265, %v4266
    %v4268 = vrot.slane %v4267, 1
    %v4269 = vadd.f32 %v4267, %v4268
    %s4270 = vtos %v4269
    %s4271 = sadd.f32 %s1677, %s4270
    %v4272 = vmul.f32 %v3236, %v3236
    %v4273 = vmul.f32 %v3237, %v3237
    %4276 = vrot.lane.b32.xlu0 %v4272, 126
    %v4277 = vpop.permute.xlu0 %4276
    %4278 = vrot.lane.b32.xlu0 %v4273, 126
    %v4279 = vpop.permute.xlu0 %4278
    %4282 = vst.msk [vmem:[#allocation2] sm:$0xff] %vm1185, %v4277
    %4283 = vst.msk [vmem:[#allocation2 + $0x8] sm:$0xf] %vm1187, %v4279
    %v4284 = vld [vmem:[#allocation2] sm:$0xff]
    %v4285 = vld [vmem:[#allocation2 + $0x1] sm:$0xff]
    %v4286 = vadd.f32 %v4284, %v4285
    %v4287 = vld [vmem:[#allocation2 + $0x2] sm:$0xff]
    %v4288 = vadd.f32 %v4286, %v4287
    %v4289 = vld [vmem:[#allocation2 + $0x3] sm:$0xff]
    %v4290 = vadd.f32 %v4288, %v4289
    %v4291 = vld [vmem:[#allocation2 + $0x4] sm:$0xff]
    %v4292 = vadd.f32 %v4290, %v4291
    %v4294 = vsel %vm1185, %v4292, 0
    %4296 = vmatprep.subr.mxu0 0.0
    %v4297 = vand.u32 %v56, 4294901760
    %4298 = vmatpush1.msra.mxu0 %v4297
    %4299 = vmatprep.subr.mxu0 0.0
    %v4300 = vand.u32 %v1203, 4294901760
    %4301 = vmatpush1.msra.mxu0 %v4300
    %4302 = vmatprep.subr.mxu0 0.0
    %4303 = vmatpush1.msra.mxu0 0.0
    %4304 = vmatprep.subr.mxu0 0.0
    %4305 = vmatpush1.msra.mxu0 0.0
    %4306 = vmatprep.subr.mxu0 0.0
    %4307 = vmatpush1.msra.mxu0 0.0
    %4308 = vmatprep.subr.mxu0 0.0
    %4309 = vmatpush1.msra.mxu0 0.0
    %4310 = vmatprep.subr.mxu0 0.0
    %4311 = vmatpush1.msra.mxu0 0.0
    %4312 = vmatprep.subr.mxu0 0.0
    %4313 = vmatpush1.msra.mxu0 0.0
    %4314 = vmatprep.subr.mxu0 0.0
    %4315 = vmatpush1.msra.mxu0 0.0
    %4316 = vmatprep.subr.mxu0 0.0
    %4317 = vmatpush1.msra.mxu0 0.0
    %4318 = vmatprep.subr.mxu0 0.0
    %4319 = vmatpush1.msra.mxu0 0.0
    %4320 = vmatprep.subr.mxu0 0.0
    %4321 = vmatpush1.msra.mxu0 0.0
    %4322 = vmatprep.subr.mxu0 0.0
    %4323 = vmatpush1.msra.mxu0 0.0
    %4324 = vmatprep.subr.mxu0 0.0
    %4325 = vmatpush1.msra.mxu0 0.0
    %4326 = vmatprep.subr.mxu0 0.0
    %4327 = vmatpush1.msra.mxu0 0.0
    %4328 = vmatprep.subr.mxu0 0.0
    %4329 = vmatpush1.msra.mxu0 0.0
    %4330 = vmatprep.subr.mxu0 0.0
    %4331 = vmatpush1.msra.mxu0 0.0
    %4332 = vmatprep.subr.mxu0 0.0
    %4333 = vmatpush1.msra.mxu0 0.0
    %4334 = vmatprep.subr.mxu0 0.0
    %4335 = vmatpush1.msra.mxu0 0.0
    %4336 = vmatprep.subr.mxu0 0.0
    %4337 = vmatpush1.msra.mxu0 0.0
    %4338 = vmatprep.subr.mxu0 0.0
    %4339 = vmatpush1.msra.mxu0 0.0
    %4340 = vmatprep.subr.mxu0 0.0
    %4341 = vmatpush1.msra.mxu0 0.0
    %4342 = vmatprep.subr.mxu0 0.0
    %4343 = vmatpush1.msra.mxu0 0.0
    %4344 = vmatprep.subr.mxu0 0.0
    %4345 = vmatpush1.msra.mxu0 0.0
    %4346 = vmatprep.subr.mxu0 0.0
    %4347 = vmatpush1.msra.mxu0 0.0
    %4348 = vmatprep.subr.mxu0 0.0
    %4349 = vmatpush1.msra.mxu0 0.0
    %4350 = vmatprep.subr.mxu0 0.0
    %4351 = vmatpush1.msra.mxu0 0.0
    %4352 = vmatprep.subr.mxu0 0.0
    %4353 = vmatpush1.msra.mxu0 0.0
    %4354 = vmatprep.subr.mxu0 0.0
    %4355 = vmatpush1.msra.mxu0 0.0
    %4356 = vmatprep.subr.mxu0 0.0
    %4357 = vmatpush1.msra.mxu0 0.0
    %4358 = vmatprep.subr.mxu0 0.0
    %4359 = vmatpush1.msra.mxu0 0.0
    %4360 = vmatprep.subr.mxu0 0.0
    %4361 = vmatpush1.msra.mxu0 0.0
    %4362 = vmatprep.mubr.f32.mxu0 0.0
    %v4363 = vand.u32 %v4294, 4294901760
    %v4364 = vsub.f32 %v4294, %v4363
    %v4365 = vand.u32 %v4364, 4294901760
    %v4366 = vsub.f32 %v4364, %v4365
    %v4367 = vand.u32 %v4366, 4294901760
    %4368 = vmatmul.mubr.f32.gmra.mrb[0].mxu0 %v4367
    %v4369 = vpop.f32.mrb[0].mxu0
    %v4370 = vadd.f32 0.0, %v4369
    %v4371 = vpop.f32.mrb[0].mxu0
    %4372 = vdwg.mxu0
    %4373 = vmatprep.subr.mxu0 0.0
    %v4374 = vand.u32 %v56, 4294901760
    %v4375 = vsub.f32 %v56, %v4374
    %v4376 = vand.u32 %v4375, 4294901760
    %v4377 = vsub.f32 %v4375, %v4376
    %v4378 = vand.u32 %v4377, 4294901760
    %4379 = vmatpush1.msra.mxu0 %v4378
    %4380 = vmatprep.subr.mxu0 0.0
    %v4381 = vand.u32 %v1203, 4294901760
    %v4382 = vsub.f32 %v1203, %v4381
    %v4383 = vand.u32 %v4382, 4294901760
    %v4384 = vsub.f32 %v4382, %v4383
    %v4385 = vand.u32 %v4384, 4294901760
    %4386 = vmatpush1.msra.mxu0 %v4385
    %4387 = vmatprep.subr.mxu0 0.0
    %4388 = vmatpush1.msra.mxu0 0.0
    %4389 = vmatprep.subr.mxu0 0.0
    %4390 = vmatpush1.msra.mxu0 0.0
    %4391 = vmatprep.subr.mxu0 0.0
    %4392 = vmatpush1.msra.mxu0 0.0
    %4393 = vmatprep.subr.mxu0 0.0
    %4394 = vmatpush1.msra.mxu0 0.0
    %4395 = vmatprep.subr.mxu0 0.0
    %4396 = vmatpush1.msra.mxu0 0.0
    %4397 = vmatprep.subr.mxu0 0.0
    %4398 = vmatpush1.msra.mxu0 0.0
    %4399 = vmatprep.subr.mxu0 0.0
    %4400 = vmatpush1.msra.mxu0 0.0
    %4401 = vmatprep.subr.mxu0 0.0
    %4402 = vmatpush1.msra.mxu0 0.0
    %4403 = vmatprep.subr.mxu0 0.0
    %4404 = vmatpush1.msra.mxu0 0.0
    %4405 = vmatprep.subr.mxu0 0.0
    %4406 = vmatpush1.msra.mxu0 0.0
    %4407 = vmatprep.subr.mxu0 0.0
    %4408 = vmatpush1.msra.mxu0 0.0
    %4409 = vmatprep.subr.mxu0 0.0
    %4410 = vmatpush1.msra.mxu0 0.0
    %4411 = vmatprep.subr.mxu0 0.0
    %4412 = vmatpush1.msra.mxu0 0.0
    %4413 = vmatprep.subr.mxu0 0.0
    %4414 = vmatpush1.msra.mxu0 0.0
    %4415 = vmatprep.subr.mxu0 0.0
    %4416 = vmatpush1.msra.mxu0 0.0
    %4417 = vmatprep.subr.mxu0 0.0
    %4418 = vmatpush1.msra.mxu0 0.0
    %4419 = vmatprep.subr.mxu0 0.0
    %4420 = vmatpush1.msra.mxu0 0.0
    %4421 = vmatprep.subr.mxu0 0.0
    %4422 = vmatpush1.msra.mxu0 0.0
    %4423 = vmatprep.subr.mxu0 0.0
    %4424 = vmatpush1.msra.mxu0 0.0
    %4425 = vmatprep.subr.mxu0 0.0
    %4426 = vmatpush1.msra.mxu0 0.0
    %4427 = vmatprep.subr.mxu0 0.0
    %4428 = vmatpush1.msra.mxu0 0.0
    %4429 = vmatprep.subr.mxu0 0.0
    %4430 = vmatpush1.msra.mxu0 0.0
    %4431 = vmatprep.subr.mxu0 0.0
    %4432 = vmatpush1.msra.mxu0 0.0
    %4433 = vmatprep.subr.mxu0 0.0
    %4434 = vmatpush1.msra.mxu0 0.0
    %4435 = vmatprep.subr.mxu0 0.0
    %4436 = vmatpush1.msra.mxu0 0.0
    %4437 = vmatprep.subr.mxu0 0.0
    %4438 = vmatpush1.msra.mxu0 0.0
    %4439 = vmatprep.subr.mxu0 0.0
    %4440 = vmatpush1.msra.mxu0 0.0
    %4441 = vmatprep.subr.mxu0 0.0
    %4442 = vmatpush1.msra.mxu0 0.0
    %4443 = vmatprep.subr.mxu0 0.0
    %4444 = vmatpush1.msra.mxu0 0.0
    %4445 = vmatprep.subr.mxu0 0.0
    %4446 = vmatpush1.msra.mxu0 0.0
    %4447 = vmatprep.mubr.f32.mxu0 0.0
    %v4448 = vand.u32 %v4294, 4294901760
    %4449 = vmatmul.mubr.f32.gmra.mrb[0].mxu0 %v4448
    %v4450 = vpop.f32.mrb[0].mxu0
    %v4451 = vadd.f32 %v4370, %v4450
    %v4452 = vpop.f32.mrb[0].mxu0
    %4453 = vdwg.mxu0
    %4454 = vmatprep.subr.mxu0 0.0
    %v4455 = vand.u32 %v56, 4294901760
    %v4456 = vsub.f32 %v56, %v4455
    %4457 = vmatpush1.msra.mxu0 %v4456
    %4458 = vmatprep.subr.mxu0 0.0
    %v4459 = vand.u32 %v1203, 4294901760
    %v4460 = vsub.f32 %v1203, %v4459
    %4461 = vmatpush1.msra.mxu0 %v4460
    %4462 = vmatprep.subr.mxu0 0.0
    %4463 = vmatpush1.msra.mxu0 0.0
    %4464 = vmatprep.subr.mxu0 0.0
    %4465 = vmatpush1.msra.mxu0 0.0
    %4466 = vmatprep.subr.mxu0 0.0
    %4467 = vmatpush1.msra.mxu0 0.0
    %4468 = vmatprep.subr.mxu0 0.0
    %4469 = vmatpush1.msra.mxu0 0.0
    %4470 = vmatprep.subr.mxu0 0.0
    %4471 = vmatpush1.msra.mxu0 0.0
    %4472 = vmatprep.subr.mxu0 0.0
    %4473 = vmatpush1.msra.mxu0 0.0
    %4474 = vmatprep.subr.mxu0 0.0
    %4475 = vmatpush1.msra.mxu0 0.0
    %4476 = vmatprep.subr.mxu0 0.0
    %4477 = vmatpush1.msra.mxu0 0.0
    %4478 = vmatprep.subr.mxu0 0.0
    %4479 = vmatpush1.msra.mxu0 0.0
    %4480 = vmatprep.subr.mxu0 0.0
    %4481 = vmatpush1.msra.mxu0 0.0
    %4482 = vmatprep.subr.mxu0 0.0
    %4483 = vmatpush1.msra.mxu0 0.0
    %4484 = vmatprep.subr.mxu0 0.0
    %4485 = vmatpush1.msra.mxu0 0.0
    %4486 = vmatprep.subr.mxu0 0.0
    %4487 = vmatpush1.msra.mxu0 0.0
    %4488 = vmatprep.subr.mxu0 0.0
    %4489 = vmatpush1.msra.mxu0 0.0
    %4490 = vmatprep.subr.mxu0 0.0
    %4491 = vmatpush1.msra.mxu0 0.0
    %4492 = vmatprep.subr.mxu0 0.0
    %4493 = vmatpush1.msra.mxu0 0.0
    %4494 = vmatprep.subr.mxu0 0.0
    %4495 = vmatpush1.msra.mxu0 0.0
    %4496 = vmatprep.subr.mxu0 0.0
    %4497 = vmatpush1.msra.mxu0 0.0
    %4498 = vmatprep.subr.mxu0 0.0
    %4499 = vmatpush1.msra.mxu0 0.0
    %4500 = vmatprep.subr.mxu0 0.0
    %4501 = vmatpush1.msra.mxu0 0.0
    %4502 = vmatprep.subr.mxu0 0.0
    %4503 = vmatpush1.msra.mxu0 0.0
    %4504 = vmatprep.subr.mxu0 0.0
    %4505 = vmatpush1.msra.mxu0 0.0
    %4506 = vmatprep.subr.mxu0 0.0
    %4507 = vmatpush1.msra.mxu0 0.0
    %4508 = vmatprep.subr.mxu0 0.0
    %4509 = vmatpush1.msra.mxu0 0.0
    %4510 = vmatprep.subr.mxu0 0.0
    %4511 = vmatpush1.msra.mxu0 0.0
    %4512 = vmatprep.subr.mxu0 0.0
    %4513 = vmatpush1.msra.mxu0 0.0
    %4514 = vmatprep.subr.mxu0 0.0
    %4515 = vmatpush1.msra.mxu0 0.0
    %4516 = vmatprep.subr.mxu0 0.0
    %4517 = vmatpush1.msra.mxu0 0.0
    %4518 = vmatprep.subr.mxu0 0.0
    %4519 = vmatpush1.msra.mxu0 0.0
    %4520 = vmatprep.subr.mxu0 0.0
    %4521 = vmatpush1.msra.mxu0 0.0
    %4522 = vmatprep.mubr.f32.mxu0 0.0
    %v4523 = vand.u32 %v4294, 4294901760
    %v4524 = vsub.f32 %v4294, %v4523
    %4525 = vmatmul.mubr.f32.gmra.mrb[0].mxu0 %v4524
    %v4526 = vpop.f32.mrb[0].mxu0
    %v4527 = vadd.f32 %v4451, %v4526
    %v4528 = vpop.f32.mrb[0].mxu0
    %4529 = vdwg.mxu0
    %4530 = vmatprep.subr.mxu0 0.0
    %v4531 = vand.u32 %v56, 4294901760
    %4532 = vmatpush1.msra.mxu0 %v4531
    %4533 = vmatprep.subr.mxu0 0.0
    %v4534 = vand.u32 %v1203, 4294901760
    %4535 = vmatpush1.msra.mxu0 %v4534
    %4536 = vmatprep.subr.mxu0 0.0
    %4537 = vmatpush1.msra.mxu0 0.0
    %4538 = vmatprep.subr.mxu0 0.0
    %4539 = vmatpush1.msra.mxu0 0.0
    %4540 = vmatprep.subr.mxu0 0.0
    %4541 = vmatpush1.msra.mxu0 0.0
    %4542 = vmatprep.subr.mxu0 0.0
    %4543 = vmatpush1.msra.mxu0 0.0
    %4544 = vmatprep.subr.mxu0 0.0
    %4545 = vmatpush1.msra.mxu0 0.0
    %4546 = vmatprep.subr.mxu0 0.0
    %4547 = vmatpush1.msra.mxu0 0.0
    %4548 = vmatprep.subr.mxu0 0.0
    %4549 = vmatpush1.msra.mxu0 0.0
    %4550 = vmatprep.subr.mxu0 0.0
    %4551 = vmatpush1.msra.mxu0 0.0
    %4552 = vmatprep.subr.mxu0 0.0
    %4553 = vmatpush1.msra.mxu0 0.0
    %4554 = vmatprep.subr.mxu0 0.0
    %4555 = vmatpush1.msra.mxu0 0.0
    %4556 = vmatprep.subr.mxu0 0.0
    %4557 = vmatpush1.msra.mxu0 0.0
    %4558 = vmatprep.subr.mxu0 0.0
    %4559 = vmatpush1.msra.mxu0 0.0
    %4560 = vmatprep.subr.mxu0 0.0
    %4561 = vmatpush1.msra.mxu0 0.0
    %4562 = vmatprep.subr.mxu0 0.0
    %4563 = vmatpush1.msra.mxu0 0.0
    %4564 = vmatprep.subr.mxu0 0.0
    %4565 = vmatpush1.msra.mxu0 0.0
    %4566 = vmatprep.subr.mxu0 0.0
    %4567 = vmatpush1.msra.mxu0 0.0
    %4568 = vmatprep.subr.mxu0 0.0
    %4569 = vmatpush1.msra.mxu0 0.0
    %4570 = vmatprep.subr.mxu0 0.0
    %4571 = vmatpush1.msra.mxu0 0.0
    %4572 = vmatprep.subr.mxu0 0.0
    %4573 = vmatpush1.msra.mxu0 0.0
    %4574 = vmatprep.subr.mxu0 0.0
    %4575 = vmatpush1.msra.mxu0 0.0
    %4576 = vmatprep.subr.mxu0 0.0
    %4577 = vmatpush1.msra.mxu0 0.0
    %4578 = vmatprep.subr.mxu0 0.0
    %4579 = vmatpush1.msra.mxu0 0.0
    %4580 = vmatprep.subr.mxu0 0.0
    %4581 = vmatpush1.msra.mxu0 0.0
    %4582 = vmatprep.subr.mxu0 0.0
    %4583 = vmatpush1.msra.mxu0 0.0
    %4584 = vmatprep.subr.mxu0 0.0
    %4585 = vmatpush1.msra.mxu0 0.0
    %4586 = vmatprep.subr.mxu0 0.0
    %4587 = vmatpush1.msra.mxu0 0.0
    %4588 = vmatprep.subr.mxu0 0.0
    %4589 = vmatpush1.msra.mxu0 0.0
    %4590 = vmatprep.subr.mxu0 0.0
    %4591 = vmatpush1.msra.mxu0 0.0
    %4592 = vmatprep.subr.mxu0 0.0
    %4593 = vmatpush1.msra.mxu0 0.0
    %4594 = vmatprep.subr.mxu0 0.0
    %4595 = vmatpush1.msra.mxu0 0.0
    %4596 = vmatprep.mubr.f32.mxu0 0.0
    %v4597 = vand.u32 %v4294, 4294901760
    %v4598 = vsub.f32 %v4294, %v4597
    %v4599 = vand.u32 %v4598, 4294901760
    %4600 = vmatmul.mubr.f32.gmra.mrb[0].mxu0 %v4599
    %v4601 = vpop.f32.mrb[0].mxu0
    %v4602 = vadd.f32 %v4527, %v4601
    %v4603 = vpop.f32.mrb[0].mxu0
    %4604 = vdwg.mxu0
    %4605 = vmatprep.subr.mxu0 0.0
    %v4606 = vand.u32 %v56, 4294901760
    %v4607 = vsub.f32 %v56, %v4606
    %v4608 = vand.u32 %v4607, 4294901760
    %4609 = vmatpush1.msra.mxu0 %v4608
    %4610 = vmatprep.subr.mxu0 0.0
    %v4611 = vand.u32 %v1203, 4294901760
    %v4612 = vsub.f32 %v1203, %v4611
    %v4613 = vand.u32 %v4612, 4294901760
    %4614 = vmatpush1.msra.mxu0 %v4613
    %4615 = vmatprep.subr.mxu0 0.0
    %4616 = vmatpush1.msra.mxu0 0.0
    %4617 = vmatprep.subr.mxu0 0.0
    %4618 = vmatpush1.msra.mxu0 0.0
    %4619 = vmatprep.subr.mxu0 0.0
    %4620 = vmatpush1.msra.mxu0 0.0
    %4621 = vmatprep.subr.mxu0 0.0
    %4622 = vmatpush1.msra.mxu0 0.0
    %4623 = vmatprep.subr.mxu0 0.0
    %4624 = vmatpush1.msra.mxu0 0.0
    %4625 = vmatprep.subr.mxu0 0.0
    %4626 = vmatpush1.msra.mxu0 0.0
    %4627 = vmatprep.subr.mxu0 0.0
    %4628 = vmatpush1.msra.mxu0 0.0
    %4629 = vmatprep.subr.mxu0 0.0
    %4630 = vmatpush1.msra.mxu0 0.0
    %4631 = vmatprep.subr.mxu0 0.0
    %4632 = vmatpush1.msra.mxu0 0.0
    %4633 = vmatprep.subr.mxu0 0.0
    %4634 = vmatpush1.msra.mxu0 0.0
    %4635 = vmatprep.subr.mxu0 0.0
    %4636 = vmatpush1.msra.mxu0 0.0
    %4637 = vmatprep.subr.mxu0 0.0
    %4638 = vmatpush1.msra.mxu0 0.0
    %4639 = vmatprep.subr.mxu0 0.0
    %4640 = vmatpush1.msra.mxu0 0.0
    %4641 = vmatprep.subr.mxu0 0.0
    %4642 = vmatpush1.msra.mxu0 0.0
    %4643 = vmatprep.subr.mxu0 0.0
    %4644 = vmatpush1.msra.mxu0 0.0
    %4645 = vmatprep.subr.mxu0 0.0
    %4646 = vmatpush1.msra.mxu0 0.0
    %4647 = vmatprep.subr.mxu0 0.0
    %4648 = vmatpush1.msra.mxu0 0.0
    %4649 = vmatprep.subr.mxu0 0.0
    %4650 = vmatpush1.msra.mxu0 0.0
    %4651 = vmatprep.subr.mxu0 0.0
    %4652 = vmatpush1.msra.mxu0 0.0
    %4653 = vmatprep.subr.mxu0 0.0
    %4654 = vmatpush1.msra.mxu0 0.0
    %4655 = vmatprep.subr.mxu0 0.0
    %4656 = vmatpush1.msra.mxu0 0.0
    %4657 = vmatprep.subr.mxu0 0.0
    %4658 = vmatpush1.msra.mxu0 0.0
    %4659 = vmatprep.subr.mxu0 0.0
    %4660 = vmatpush1.msra.mxu0 0.0
    %4661 = vmatprep.subr.mxu0 0.0
    %4662 = vmatpush1.msra.mxu0 0.0
    %4663 = vmatprep.subr.mxu0 0.0
    %4664 = vmatpush1.msra.mxu0 0.0
    %4665 = vmatprep.subr.mxu0 0.0
    %4666 = vmatpush1.msra.mxu0 0.0
    %4667 = vmatprep.subr.mxu0 0.0
    %4668 = vmatpush1.msra.mxu0 0.0
    %4669 = vmatprep.subr.mxu0 0.0
    %4670 = vmatpush1.msra.mxu0 0.0
    %4671 = vmatprep.subr.mxu0 0.0
    %4672 = vmatpush1.msra.mxu0 0.0
    %4673 = vmatprep.subr.mxu0 0.0
    %4674 = vmatpush1.msra.mxu0 0.0
    %4675 = vmatprep.mubr.f32.mxu0 0.0
    %v4676 = vand.u32 %v4294, 4294901760
    %4677 = vmatmul.mubr.f32.gmra.mrb[0].mxu0 %v4676
    %v4678 = vpop.f32.mrb[0].mxu0
    %v4679 = vadd.f32 %v4602, %v4678
    %v4680 = vpop.f32.mrb[0].mxu0
    %4681 = vdwg.mxu0
    %4682 = vmatprep.subr.mxu0 0.0
    %v4683 = vand.u32 %v56, 4294901760
    %4684 = vmatpush1.msra.mxu0 %v4683
    %4685 = vmatprep.subr.mxu0 0.0
    %v4686 = vand.u32 %v1203, 4294901760
    %4687 = vmatpush1.msra.mxu0 %v4686
    %4688 = vmatprep.subr.mxu0 0.0
    %4689 = vmatpush1.msra.mxu0 0.0
    %4690 = vmatprep.subr.mxu0 0.0
    %4691 = vmatpush1.msra.mxu0 0.0
    %4692 = vmatprep.subr.mxu0 0.0
    %4693 = vmatpush1.msra.mxu0 0.0
    %4694 = vmatprep.subr.mxu0 0.0
    %4695 = vmatpush1.msra.mxu0 0.0
    %4696 = vmatprep.subr.mxu0 0.0
    %4697 = vmatpush1.msra.mxu0 0.0
    %4698 = vmatprep.subr.mxu0 0.0
    %4699 = vmatpush1.msra.mxu0 0.0
    %4700 = vmatprep.subr.mxu0 0.0
    %4701 = vmatpush1.msra.mxu0 0.0
    %4702 = vmatprep.subr.mxu0 0.0
    %4703 = vmatpush1.msra.mxu0 0.0
    %4704 = vmatprep.subr.mxu0 0.0
    %4705 = vmatpush1.msra.mxu0 0.0
    %4706 = vmatprep.subr.mxu0 0.0
    %4707 = vmatpush1.msra.mxu0 0.0
    %4708 = vmatprep.subr.mxu0 0.0
    %4709 = vmatpush1.msra.mxu0 0.0
    %4710 = vmatprep.subr.mxu0 0.0
    %4711 = vmatpush1.msra.mxu0 0.0
    %4712 = vmatprep.subr.mxu0 0.0
    %4713 = vmatpush1.msra.mxu0 0.0
    %4714 = vmatprep.subr.mxu0 0.0
    %4715 = vmatpush1.msra.mxu0 0.0
    %4716 = vmatprep.subr.mxu0 0.0
    %4717 = vmatpush1.msra.mxu0 0.0
    %4718 = vmatprep.subr.mxu0 0.0
    %4719 = vmatpush1.msra.mxu0 0.0
    %4720 = vmatprep.subr.mxu0 0.0
    %4721 = vmatpush1.msra.mxu0 0.0
    %4722 = vmatprep.subr.mxu0 0.0
    %4723 = vmatpush1.msra.mxu0 0.0
    %4724 = vmatprep.subr.mxu0 0.0
    %4725 = vmatpush1.msra.mxu0 0.0
    %4726 = vmatprep.subr.mxu0 0.0
    %4727 = vmatpush1.msra.mxu0 0.0
    %4728 = vmatprep.subr.mxu0 0.0
    %4729 = vmatpush1.msra.mxu0 0.0
    %4730 = vmatprep.subr.mxu0 0.0
    %4731 = vmatpush1.msra.mxu0 0.0
    %4732 = vmatprep.subr.mxu0 0.0
    %4733 = vmatpush1.msra.mxu0 0.0
    %4734 = vmatprep.subr.mxu0 0.0
    %4735 = vmatpush1.msra.mxu0 0.0
    %4736 = vmatprep.subr.mxu0 0.0
    %4737 = vmatpush1.msra.mxu0 0.0
    %4738 = vmatprep.subr.mxu0 0.0
    %4739 = vmatpush1.msra.mxu0 0.0
    %4740 = vmatprep.subr.mxu0 0.0
    %4741 = vmatpush1.msra.mxu0 0.0
    %4742 = vmatprep.subr.mxu0 0.0
    %4743 = vmatpush1.msra.mxu0 0.0
    %4744 = vmatprep.subr.mxu0 0.0
    %4745 = vmatpush1.msra.mxu0 0.0
    %4746 = vmatprep.subr.mxu0 0.0
    %4747 = vmatpush1.msra.mxu0 0.0
    %4748 = vmatprep.mubr.f32.mxu0 0.0
    %v4749 = vand.u32 %v4294, 4294901760
    %4750 = vmatmul.mubr.f32.gmra.mrb[0].mxu0 %v4749
    %v4751 = vpop.f32.mrb[0].mxu0
    %v4752 = vadd.f32 %v4679, %v4751
    %v4753 = vpop.f32.mrb[0].mxu0
    %4754 = vdwg.mxu0
    %v4755 = vmul.f32 %v4752, 0.04
    %v4756 = vmul.f32 %v3774, %v3774
    %v4757 = vmul.f32 %v3775, %v3775
    %4760 = vrot.lane.b32.xlu0 %v4756, 126
    %v4761 = vpop.permute.xlu0 %4760
    %4762 = vrot.lane.b32.xlu0 %v4757, 126
    %v4763 = vpop.permute.xlu0 %4762
    %4766 = vst.msk [vmem:[#allocation3] sm:$0xff] %vm1185, %v4761
    %4767 = vst.msk [vmem:[#allocation3 + $0x8] sm:$0xf] %vm1187, %v4763
    %v4768 = vld [vmem:[#allocation3] sm:$0xff]
    %v4769 = vld [vmem:[#allocation3 + $0x1] sm:$0xff]
    %v4770 = vadd.f32 %v4768, %v4769
    %v4771 = vld [vmem:[#allocation3 + $0x2] sm:$0xff]
    %v4772 = vadd.f32 %v4770, %v4771
    %v4773 = vld [vmem:[#allocation3 + $0x3] sm:$0xff]
    %v4774 = vadd.f32 %v4772, %v4773
    %v4775 = vld [vmem:[#allocation3 + $0x4] sm:$0xff]
    %v4776 = vadd.f32 %v4774, %v4775
    %v4778 = vsel %vm1185, %v4776, 0
    %4780 = vmatprep.subr.mxu0 0.0
    %v4781 = vand.u32 %v56, 4294901760
    %4782 = vmatpush1.msra.mxu0 %v4781
    %4783 = vmatprep.subr.mxu0 0.0
    %v4784 = vand.u32 %v1203, 4294901760
    %4785 = vmatpush1.msra.mxu0 %v4784
    %4786 = vmatprep.subr.mxu0 0.0
    %4787 = vmatpush1.msra.mxu0 0.0
    %4788 = vmatprep.subr.mxu0 0.0
    %4789 = vmatpush1.msra.mxu0 0.0
    %4790 = vmatprep.subr.mxu0 0.0
    %4791 = vmatpush1.msra.mxu0 0.0
    %4792 = vmatprep.subr.mxu0 0.0
    %4793 = vmatpush1.msra.mxu0 0.0
    %4794 = vmatprep.subr.mxu0 0.0
    %4795 = vmatpush1.msra.mxu0 0.0
    %4796 = vmatprep.subr.mxu0 0.0
    %4797 = vmatpush1.msra.mxu0 0.0
    %4798 = vmatprep.subr.mxu0 0.0
    %4799 = vmatpush1.msra.mxu0 0.0
    %4800 = vmatprep.subr.mxu0 0.0
    %4801 = vmatpush1.msra.mxu0 0.0
    %4802 = vmatprep.subr.mxu0 0.0
    %4803 = vmatpush1.msra.mxu0 0.0
    %4804 = vmatprep.subr.mxu0 0.0
    %4805 = vmatpush1.msra.mxu0 0.0
    %4806 = vmatprep.subr.mxu0 0.0
    %4807 = vmatpush1.msra.mxu0 0.0
    %4808 = vmatprep.subr.mxu0 0.0
    %4809 = vmatpush1.msra.mxu0 0.0
    %4810 = vmatprep.subr.mxu0 0.0
    %4811 = vmatpush1.msra.mxu0 0.0
    %4812 = vmatprep.subr.mxu0 0.0
    %4813 = vmatpush1.msra.mxu0 0.0
    %4814 = vmatprep.subr.mxu0 0.0
    %4815 = vmatpush1.msra.mxu0 0.0
    %4816 = vmatprep.subr.mxu0 0.0
    %4817 = vmatpush1.msra.mxu0 0.0
    %4818 = vmatprep.subr.mxu0 0.0
    %4819 = vmatpush1.msra.mxu0 0.0
    %4820 = vmatprep.subr.mxu0 0.0
    %4821 = vmatpush1.msra.mxu0 0.0
    %4822 = vmatprep.subr.mxu0 0.0
    %4823 = vmatpush1.msra.mxu0 0.0
    %4824 = vmatprep.subr.mxu0 0.0
    %4825 = vmatpush1.msra.mxu0 0.0
    %4826 = vmatprep.subr.mxu0 0.0
    %4827 = vmatpush1.msra.mxu0 0.0
    %4828 = vmatprep.subr.mxu0 0.0
    %4829 = vmatpush1.msra.mxu0 0.0
    %4830 = vmatprep.subr.mxu0 0.0
    %4831 = vmatpush1.msra.mxu0 0.0
    %4832 = vmatprep.subr.mxu0 0.0
    %4833 = vmatpush1.msra.mxu0 0.0
    %4834 = vmatprep.subr.mxu0 0.0
    %4835 = vmatpush1.msra.mxu0 0.0
    %4836 = vmatprep.subr.mxu0 0.0
    %4837 = vmatpush1.msra.mxu0 0.0
    %4838 = vmatprep.subr.mxu0 0.0
    %4839 = vmatpush1.msra.mxu0 0.0
    %4840 = vmatprep.subr.mxu0 0.0
    %4841 = vmatpush1.msra.mxu0 0.0
    %4842 = vmatprep.subr.mxu0 0.0
    %4843 = vmatpush1.msra.mxu0 0.0
    %4844 = vmatprep.subr.mxu0 0.0
    %4845 = vmatpush1.msra.mxu0 0.0
    %4846 = vmatprep.mubr.f32.mxu0 0.0
    %v4847 = vand.u32 %v4778, 4294901760
    %v4848 = vsub.f32 %v4778, %v4847
    %v4849 = vand.u32 %v4848, 4294901760
    %v4850 = vsub.f32 %v4848, %v4849
    %v4851 = vand.u32 %v4850, 4294901760
    %4852 = vmatmul.mubr.f32.gmra.mrb[0].mxu0 %v4851
    %v4853 = vpop.f32.mrb[0].mxu0
    %v4854 = vadd.f32 0.0, %v4853
    %v4855 = vpop.f32.mrb[0].mxu0
    %4856 = vdwg.mxu0
    %4857 = vmatprep.subr.mxu0 0.0
    %v4858 = vand.u32 %v56, 4294901760
    %v4859 = vsub.f32 %v56, %v4858
    %v4860 = vand.u32 %v4859, 4294901760
    %v4861 = vsub.f32 %v4859, %v4860
    %v4862 = vand.u32 %v4861, 4294901760
    %4863 = vmatpush1.msra.mxu0 %v4862
    %4864 = vmatprep.subr.mxu0 0.0
    %v4865 = vand.u32 %v1203, 4294901760
    %v4866 = vsub.f32 %v1203, %v4865
    %v4867 = vand.u32 %v4866, 4294901760
    %v4868 = vsub.f32 %v4866, %v4867
    %v4869 = vand.u32 %v4868, 4294901760
    %4870 = vmatpush1.msra.mxu0 %v4869
    %4871 = vmatprep.subr.mxu0 0.0
    %4872 = vmatpush1.msra.mxu0 0.0
    %4873 = vmatprep.subr.mxu0 0.0
    %4874 = vmatpush1.msra.mxu0 0.0
    %4875 = vmatprep.subr.mxu0 0.0
    %4876 = vmatpush1.msra.mxu0 0.0
    %4877 = vmatprep.subr.mxu0 0.0
    %4878 = vmatpush1.msra.mxu0 0.0
    %4879 = vmatprep.subr.mxu0 0.0
    %4880 = vmatpush1.msra.mxu0 0.0
    %4881 = vmatprep.subr.mxu0 0.0
    %4882 = vmatpush1.msra.mxu0 0.0
    %4883 = vmatprep.subr.mxu0 0.0
    %4884 = vmatpush1.msra.mxu0 0.0
    %4885 = vmatprep.subr.mxu0 0.0
    %4886 = vmatpush1.msra.mxu0 0.0
    %4887 = vmatprep.subr.mxu0 0.0
    %4888 = vmatpush1.msra.mxu0 0.0
    %4889 = vmatprep.subr.mxu0 0.0
    %4890 = vmatpush1.msra.mxu0 0.0
    %4891 = vmatprep.subr.mxu0 0.0
    %4892 = vmatpush1.msra.mxu0 0.0
    %4893 = vmatprep.subr.mxu0 0.0
    %4894 = vmatpush1.msra.mxu0 0.0
    %4895 = vmatprep.subr.mxu0 0.0
    %4896 = vmatpush1.msra.mxu0 0.0
    %4897 = vmatprep.subr.mxu0 0.0
    %4898 = vmatpush1.msra.mxu0 0.0
    %4899 = vmatprep.subr.mxu0 0.0
    %4900 = vmatpush1.msra.mxu0 0.0
    %4901 = vmatprep.subr.mxu0 0.0
    %4902 = vmatpush1.msra.mxu0 0.0
    %4903 = vmatprep.subr.mxu0 0.0
    %4904 = vmatpush1.msra.mxu0 0.0
    %4905 = vmatprep.subr.mxu0 0.0
    %4906 = vmatpush1.msra.mxu0 0.0
    %4907 = vmatprep.subr.mxu0 0.0
    %4908 = vmatpush1.msra.mxu0 0.0
    %4909 = vmatprep.subr.mxu0 0.0
    %4910 = vmatpush1.msra.mxu0 0.0
    %4911 = vmatprep.subr.mxu0 0.0
    %4912 = vmatpush1.msra.mxu0 0.0
    %4913 = vmatprep.subr.mxu0 0.0
    %4914 = vmatpush1.msra.mxu0 0.0
    %4915 = vmatprep.subr.mxu0 0.0
    %4916 = vmatpush1.msra.mxu0 0.0
    %4917 = vmatprep.subr.mxu0 0.0
    %4918 = vmatpush1.msra.mxu0 0.0
    %4919 = vmatprep.subr.mxu0 0.0
    %4920 = vmatpush1.msra.mxu0 0.0
    %4921 = vmatprep.subr.mxu0 0.0
    %4922 = vmatpush1.msra.mxu0 0.0
    %4923 = vmatprep.subr.mxu0 0.0
    %4924 = vmatpush1.msra.mxu0 0.0
    %4925 = vmatprep.subr.mxu0 0.0
    %4926 = vmatpush1.msra.mxu0 0.0
    %4927 = vmatprep.subr.mxu0 0.0
    %4928 = vmatpush1.msra.mxu0 0.0
    %4929 = vmatprep.subr.mxu0 0.0
    %4930 = vmatpush1.msra.mxu0 0.0
    %4931 = vmatprep.mubr.f32.mxu0 0.0
    %v4932 = vand.u32 %v4778, 4294901760
    %4933 = vmatmul.mubr.f32.gmra.mrb[0].mxu0 %v4932
    %v4934 = vpop.f32.mrb[0].mxu0
    %v4935 = vadd.f32 %v4854, %v4934
    %v4936 = vpop.f32.mrb[0].mxu0
    %4937 = vdwg.mxu0
    %4938 = vmatprep.subr.mxu0 0.0
    %v4939 = vand.u32 %v56, 4294901760
    %v4940 = vsub.f32 %v56, %v4939
    %4941 = vmatpush1.msra.mxu0 %v4940
    %4942 = vmatprep.subr.mxu0 0.0
    %v4943 = vand.u32 %v1203, 4294901760
    %v4944 = vsub.f32 %v1203, %v4943
    %4945 = vmatpush1.msra.mxu0 %v4944
    %4946 = vmatprep.subr.mxu0 0.0
    %4947 = vmatpush1.msra.mxu0 0.0
    %4948 = vmatprep.subr.mxu0 0.0
    %4949 = vmatpush1.msra.mxu0 0.0
    %4950 = vmatprep.subr.mxu0 0.0
    %4951 = vmatpush1.msra.mxu0 0.0
    %4952 = vmatprep.subr.mxu0 0.0
    %4953 = vmatpush1.msra.mxu0 0.0
    %4954 = vmatprep.subr.mxu0 0.0
    %4955 = vmatpush1.msra.mxu0 0.0
    %4956 = vmatprep.subr.mxu0 0.0
    %4957 = vmatpush1.msra.mxu0 0.0
    %4958 = vmatprep.subr.mxu0 0.0
    %4959 = vmatpush1.msra.mxu0 0.0
    %4960 = vmatprep.subr.mxu0 0.0
    %4961 = vmatpush1.msra.mxu0 0.0
    %4962 = vmatprep.subr.mxu0 0.0
    %4963 = vmatpush1.msra.mxu0 0.0
    %4964 = vmatprep.subr.mxu0 0.0
    %4965 = vmatpush1.msra.mxu0 0.0
    %4966 = vmatprep.subr.mxu0 0.0
    %4967 = vmatpush1.msra.mxu0 0.0
    %4968 = vmatprep.subr.mxu0 0.0
    %4969 = vmatpush1.msra.mxu0 0.0
    %4970 = vmatprep.subr.mxu0 0.0
    %4971 = vmatpush1.msra.mxu0 0.0
    %4972 = vmatprep.subr.mxu0 0.0
    %4973 = vmatpush1.msra.mxu0 0.0
    %4974 = vmatprep.subr.mxu0 0.0
    %4975 = vmatpush1.msra.mxu0 0.0
    %4976 = vmatprep.subr.mxu0 0.0
    %4977 = vmatpush1.msra.mxu0 0.0
    %4978 = vmatprep.subr.mxu0 0.0
    %4979 = vmatpush1.msra.mxu0 0.0
    %4980 = vmatprep.subr.mxu0 0.0
    %4981 = vmatpush1.msra.mxu0 0.0
    %4982 = vmatprep.subr.mxu0 0.0
    %4983 = vmatpush1.msra.mxu0 0.0
    %4984 = vmatprep.subr.mxu0 0.0
    %4985 = vmatpush1.msra.mxu0 0.0
    %4986 = vmatprep.subr.mxu0 0.0
    %4987 = vmatpush1.msra.mxu0 0.0
    %4988 = vmatprep.subr.mxu0 0.0
    %4989 = vmatpush1.msra.mxu0 0.0
    %4990 = vmatprep.subr.mxu0 0.0
    %4991 = vmatpush1.msra.mxu0 0.0
    %4992 = vmatprep.subr.mxu0 0.0
    %4993 = vmatpush1.msra.mxu0 0.0
    %4994 = vmatprep.subr.mxu0 0.0
    %4995 = vmatpush1.msra.mxu0 0.0
    %4996 = vmatprep.subr.mxu0 0.0
    %4997 = vmatpush1.msra.mxu0 0.0
    %4998 = vmatprep.subr.mxu0 0.0
    %4999 = vmatpush1.msra.mxu0 0.0
    %5000 = vmatprep.subr.mxu0 0.0
    %5001 = vmatpush1.msra.mxu0 0.0
    %5002 = vmatprep.subr.mxu0 0.0
    %5003 = vmatpush1.msra.mxu0 0.0
    %5004 = vmatprep.subr.mxu0 0.0
    %5005 = vmatpush1.msra.mxu0 0.0
    %5006 = vmatprep.mubr.f32.mxu0 0.0
    %v5007 = vand.u32 %v4778, 4294901760
    %v5008 = vsub.f32 %v4778, %v5007
    %5009 = vmatmul.mubr.f32.gmra.mrb[0].mxu0 %v5008
    %v5010 = vpop.f32.mrb[0].mxu0
    %v5011 = vadd.f32 %v4935, %v5010
    %v5012 = vpop.f32.mrb[0].mxu0
    %5013 = vdwg.mxu0
    %5014 = vmatprep.subr.mxu0 0.0
    %v5015 = vand.u32 %v56, 4294901760
    %5016 = vmatpush1.msra.mxu0 %v5015
    %5017 = vmatprep.subr.mxu0 0.0
    %v5018 = vand.u32 %v1203, 4294901760
    %5019 = vmatpush1.msra.mxu0 %v5018
    %5020 = vmatprep.subr.mxu0 0.0
    %5021 = vmatpush1.msra.mxu0 0.0
    %5022 = vmatprep.subr.mxu0 0.0
    %5023 = vmatpush1.msra.mxu0 0.0
    %5024 = vmatprep.subr.mxu0 0.0
    %5025 = vmatpush1.msra.mxu0 0.0
    %5026 = vmatprep.subr.mxu0 0.0
    %5027 = vmatpush1.msra.mxu0 0.0
    %5028 = vmatprep.subr.mxu0 0.0
    %5029 = vmatpush1.msra.mxu0 0.0
    %5030 = vmatprep.subr.mxu0 0.0
    %5031 = vmatpush1.msra.mxu0 0.0
    %5032 = vmatprep.subr.mxu0 0.0
    %5033 = vmatpush1.msra.mxu0 0.0
    %5034 = vmatprep.subr.mxu0 0.0
    %5035 = vmatpush1.msra.mxu0 0.0
    %5036 = vmatprep.subr.mxu0 0.0
    %5037 = vmatpush1.msra.mxu0 0.0
    %5038 = vmatprep.subr.mxu0 0.0
    %5039 = vmatpush1.msra.mxu0 0.0
    %5040 = vmatprep.subr.mxu0 0.0
    %5041 = vmatpush1.msra.mxu0 0.0
    %5042 = vmatprep.subr.mxu0 0.0
    %5043 = vmatpush1.msra.mxu0 0.0
    %5044 = vmatprep.subr.mxu0 0.0
    %5045 = vmatpush1.msra.mxu0 0.0
    %5046 = vmatprep.subr.mxu0 0.0
    %5047 = vmatpush1.msra.mxu0 0.0
    %5048 = vmatprep.subr.mxu0 0.0
    %5049 = vmatpush1.msra.mxu0 0.0
    %5050 = vmatprep.subr.mxu0 0.0
    %5051 = vmatpush1.msra.mxu0 0.0
    %5052 = vmatprep.subr.mxu0 0.0
    %5053 = vmatpush1.msra.mxu0 0.0
    %5054 = vmatprep.subr.mxu0 0.0
    %5055 = vmatpush1.msra.mxu0 0.0
    %5056 = vmatprep.subr.mxu0 0.0
    %5057 = vmatpush1.msra.mxu0 0.0
    %5058 = vmatprep.subr.mxu0 0.0
    %5059 = vmatpush1.msra.mxu0 0.0
    %5060 = vmatprep.subr.mxu0 0.0
    %5061 = vmatpush1.msra.mxu0 0.0
    %5062 = vmatprep.subr.mxu0 0.0
    %5063 = vmatpush1.msra.mxu0 0.0
    %5064 = vmatprep.subr.mxu0 0.0
    %5065 = vmatpush1.msra.mxu0 0.0
    %5066 = vmatprep.subr.mxu0 0.0
    %5067 = vmatpush1.msra.mxu0 0.0
    %5068 = vmatprep.subr.mxu0 0.0
    %5069 = vmatpush1.msra.mxu0 0.0
    %5070 = vmatprep.subr.mxu0 0.0
    %5071 = vmatpush1.msra.mxu0 0.0
    %5072 = vmatprep.subr.mxu0 0.0
    %5073 = vmatpush1.msra.mxu0 0.0
    %5074 = vmatprep.subr.mxu0 0.0
    %5075 = vmatpush1.msra.mxu0 0.0
    %5076 = vmatprep.subr.mxu0 0.0
    %5077 = vmatpush1.msra.mxu0 0.0
    %5078 = vmatprep.subr.mxu0 0.0
    %5079 = vmatpush1.msra.mxu0 0.0
    %5080 = vmatprep.mubr.f32.mxu0 0.0
    %v5081 = vand.u32 %v4778, 4294901760
    %v5082 = vsub.f32 %v4778, %v5081
    %v5083 = vand.u32 %v5082, 4294901760
    %5084 = vmatmul.mubr.f32.gmra.mrb[0].mxu0 %v5083
    %v5085 = vpop.f32.mrb[0].mxu0
    %v5086 = vadd.f32 %v5011, %v5085
    %v5087 = vpop.f32.mrb[0].mxu0
    %5088 = vdwg.mxu0
    %5089 = vmatprep.subr.mxu0 0.0
    %v5090 = vand.u32 %v56, 4294901760
    %v5091 = vsub.f32 %v56, %v5090
    %v5092 = vand.u32 %v5091, 4294901760
    %5093 = vmatpush1.msra.mxu0 %v5092
    %5094 = vmatprep.subr.mxu0 0.0
    %v5095 = vand.u32 %v1203, 4294901760
    %v5096 = vsub.f32 %v1203, %v5095
    %v5097 = vand.u32 %v5096, 4294901760
    %5098 = vmatpush1.msra.mxu0 %v5097
    %5099 = vmatprep.subr.mxu0 0.0
    %5100 = vmatpush1.msra.mxu0 0.0
    %5101 = vmatprep.subr.mxu0 0.0
    %5102 = vmatpush1.msra.mxu0 0.0
    %5103 = vmatprep.subr.mxu0 0.0
    %5104 = vmatpush1.msra.mxu0 0.0
    %5105 = vmatprep.subr.mxu0 0.0
    %5106 = vmatpush1.msra.mxu0 0.0
    %5107 = vmatprep.subr.mxu0 0.0
    %5108 = vmatpush1.msra.mxu0 0.0
    %5109 = vmatprep.subr.mxu0 0.0
    %5110 = vmatpush1.msra.mxu0 0.0
    %5111 = vmatprep.subr.mxu0 0.0
    %5112 = vmatpush1.msra.mxu0 0.0
    %5113 = vmatprep.subr.mxu0 0.0
    %5114 = vmatpush1.msra.mxu0 0.0
    %5115 = vmatprep.subr.mxu0 0.0
    %5116 = vmatpush1.msra.mxu0 0.0
    %5117 = vmatprep.subr.mxu0 0.0
    %5118 = vmatpush1.msra.mxu0 0.0
    %5119 = vmatprep.subr.mxu0 0.0
    %5120 = vmatpush1.msra.mxu0 0.0
    %5121 = vmatprep.subr.mxu0 0.0
    %5122 = vmatpush1.msra.mxu0 0.0
    %5123 = vmatprep.subr.mxu0 0.0
    %5124 = vmatpush1.msra.mxu0 0.0
    %5125 = vmatprep.subr.mxu0 0.0
    %5126 = vmatpush1.msra.mxu0 0.0
    %5127 = vmatprep.subr.mxu0 0.0
    %5128 = vmatpush1.msra.mxu0 0.0
    %5129 = vmatprep.subr.mxu0 0.0
    %5130 = vmatpush1.msra.mxu0 0.0
    %5131 = vmatprep.subr.mxu0 0.0
    %5132 = vmatpush1.msra.mxu0 0.0
    %5133 = vmatprep.subr.mxu0 0.0
    %5134 = vmatpush1.msra.mxu0 0.0
    %5135 = vmatprep.subr.mxu0 0.0
    %5136 = vmatpush1.msra.mxu0 0.0
    %5137 = vmatprep.subr.mxu0 0.0
    %5138 = vmatpush1.msra.mxu0 0.0
    %5139 = vmatprep.subr.mxu0 0.0
    %5140 = vmatpush1.msra.mxu0 0.0
    %5141 = vmatprep.subr.mxu0 0.0
    %5142 = vmatpush1.msra.mxu0 0.0
    %5143 = vmatprep.subr.mxu0 0.0
    %5144 = vmatpush1.msra.mxu0 0.0
    %5145 = vmatprep.subr.mxu0 0.0
    %5146 = vmatpush1.msra.mxu0 0.0
    %5147 = vmatprep.subr.mxu0 0.0
    %5148 = vmatpush1.msra.mxu0 0.0
    %5149 = vmatprep.subr.mxu0 0.0
    %5150 = vmatpush1.msra.mxu0 0.0
    %5151 = vmatprep.subr.mxu0 0.0
    %5152 = vmatpush1.msra.mxu0 0.0
    %5153 = vmatprep.subr.mxu0 0.0
    %5154 = vmatpush1.msra.mxu0 0.0
    %5155 = vmatprep.subr.mxu0 0.0
    %5156 = vmatpush1.msra.mxu0 0.0
    %5157 = vmatprep.subr.mxu0 0.0
    %5158 = vmatpush1.msra.mxu0 0.0
    %5159 = vmatprep.mubr.f32.mxu0 0.0
    %v5160 = vand.u32 %v4778, 4294901760
    %5161 = vmatmul.mubr.f32.gmra.mrb[0].mxu0 %v5160
    %v5162 = vpop.f32.mrb[0].mxu0
    %v5163 = vadd.f32 %v5086, %v5162
    %v5164 = vpop.f32.mrb[0].mxu0
    %5165 = vdwg.mxu0
    %5166 = vmatprep.subr.mxu0 0.0
    %v5167 = vand.u32 %v56, 4294901760
    %5168 = vmatpush1.msra.mxu0 %v5167
    %5169 = vmatprep.subr.mxu0 0.0
    %v5170 = vand.u32 %v1203, 4294901760
    %5171 = vmatpush1.msra.mxu0 %v5170
    %5172 = vmatprep.subr.mxu0 0.0
    %5173 = vmatpush1.msra.mxu0 0.0
    %5174 = vmatprep.subr.mxu0 0.0
    %5175 = vmatpush1.msra.mxu0 0.0
    %5176 = vmatprep.subr.mxu0 0.0
    %5177 = vmatpush1.msra.mxu0 0.0
    %5178 = vmatprep.subr.mxu0 0.0
    %5179 = vmatpush1.msra.mxu0 0.0
    %5180 = vmatprep.subr.mxu0 0.0
    %5181 = vmatpush1.msra.mxu0 0.0
    %5182 = vmatprep.subr.mxu0 0.0
    %5183 = vmatpush1.msra.mxu0 0.0
    %5184 = vmatprep.subr.mxu0 0.0
    %5185 = vmatpush1.msra.mxu0 0.0
    %5186 = vmatprep.subr.mxu0 0.0
    %5187 = vmatpush1.msra.mxu0 0.0
    %5188 = vmatprep.subr.mxu0 0.0
    %5189 = vmatpush1.msra.mxu0 0.0
    %5190 = vmatprep.subr.mxu0 0.0
    %5191 = vmatpush1.msra.mxu0 0.0
    %5192 = vmatprep.subr.mxu0 0.0
    %5193 = vmatpush1.msra.mxu0 0.0
    %5194 = vmatprep.subr.mxu0 0.0
    %5195 = vmatpush1.msra.mxu0 0.0
    %5196 = vmatprep.subr.mxu0 0.0
    %5197 = vmatpush1.msra.mxu0 0.0
    %5198 = vmatprep.subr.mxu0 0.0
    %5199 = vmatpush1.msra.mxu0 0.0
    %5200 = vmatprep.subr.mxu0 0.0
    %5201 = vmatpush1.msra.mxu0 0.0
    %5202 = vmatprep.subr.mxu0 0.0
    %5203 = vmatpush1.msra.mxu0 0.0
    %5204 = vmatprep.subr.mxu0 0.0
    %5205 = vmatpush1.msra.mxu0 0.0
    %5206 = vmatprep.subr.mxu0 0.0
    %5207 = vmatpush1.msra.mxu0 0.0
    %5208 = vmatprep.subr.mxu0 0.0
    %5209 = vmatpush1.msra.mxu0 0.0
    %5210 = vmatprep.subr.mxu0 0.0
    %5211 = vmatpush1.msra.mxu0 0.0
    %5212 = vmatprep.subr.mxu0 0.0
    %5213 = vmatpush1.msra.mxu0 0.0
    %5214 = vmatprep.subr.mxu0 0.0
    %5215 = vmatpush1.msra.mxu0 0.0
    %5216 = vmatprep.subr.mxu0 0.0
    %5217 = vmatpush1.msra.mxu0 0.0
    %5218 = vmatprep.subr.mxu0 0.0
    %5219 = vmatpush1.msra.mxu0 0.0
    %5220 = vmatprep.subr.mxu0 0.0
    %5221 = vmatpush1.msra.mxu0 0.0
    %5222 = vmatprep.subr.mxu0 0.0
    %5223 = vmatpush1.msra.mxu0 0.0
    %5224 = vmatprep.subr.mxu0 0.0
    %5225 = vmatpush1.msra.mxu0 0.0
    %5226 = vmatprep.subr.mxu0 0.0
    %5227 = vmatpush1.msra.mxu0 0.0
    %5228 = vmatprep.subr.mxu0 0.0
    %5229 = vmatpush1.msra.mxu0 0.0
    %5230 = vmatprep.subr.mxu0 0.0
    %5231 = vmatpush1.msra.mxu0 0.0
    %5232 = vmatprep.mubr.f32.mxu0 0.0
    %v5233 = vand.u32 %v4778, 4294901760
    %5234 = vmatmul.mubr.f32.gmra.mrb[0].mxu0 %v5233
    %v5235 = vpop.f32.mrb[0].mxu0
    %v5236 = vadd.f32 %v5163, %v5235
    %v5237 = vpop.f32.mrb[0].mxu0
    %5238 = vdwg.mxu0
    %v5239 = vmul.f32 %v5236, 0.04
    %v5240 = vmul.f32 %v4755, %v5239
    %v5241 = vsel %vm1666, %v5240, 0.0
    %5242 = vadd.xlane.f32.xlu0 %v5241
    %v5243 = vpop.xlane.xlu0 %5242
    %v5244 = vrot.slane %v5243, 4
    %v5245 = vadd.f32 %v5243, %v5244
    %v5246 = vrot.slane %v5245, 2
    %v5247 = vadd.f32 %v5245, %v5246
    %v5248 = vrot.slane %v5247, 1
    %v5249 = vadd.f32 %v5247, %v5248
    %s5250 = vtos %v5249
    %s5251 = sadd.f32 %s2657, %s5250
    %v5252 = vstv %s4271
    %5253 = vst [vmem:[#allocation10] sm:$0xff] %v5252
    %v5254 = vstv %s5251
    %5255 = vst [vmem:[#allocation10 + $0x8] sm:$0xff] %v5254
    // Predicated region
    $region26: #{tpu_custom_call.1} parent=1 // pred_check
      _
    $region27: #{tpu_custom_call.1} parent=1 // pred_check_branch
      %5257 = sbr.rel (0) target = $region29
    $region28: #{tpu_custom_call.1} parent=1 // pred_region
      %s5259 = ssub.s32 256, 256
      %5260 = vsyncadd [#allocation6], %s5259
      %s5262 = sshll.u32 [#allocation10], 4
      %s5263 = int_to_ptr.vmem [resolvable:$true] %s5262
      %5265 = dma.vmem_to_hbm [thread:$0]  %s5263, 256, %s3, [#allocation6]
    $region29: #{tpu_custom_call.1} parent=1 // pred_fallthru
      _
    // Predicated region
    $region30: #{tpu_custom_call.1} parent=1 // pred_check
      _
    $region31: #{tpu_custom_call.1} parent=1 // pred_check_branch
      %5267 = sbr.rel (0) target = $region33
    $region32: #{tpu_custom_call.1} parent=1 // pred_region
      %5268 = dma.done [#allocation6], 256
    $region33: #{tpu_custom_call.1} parent=1 // pred_fallthru
      _
    %5269 = vsyncpa [#allocation5], 1
    %5270 = vsyncpa [#allocation8], 1
    %5271 = vsyncpa [#allocation6], 1

</llo_original>
